<compile_context>
chip_gen: v7x
topology: tpu7x:2x2x1
jax: 0.10.0
libtpu: 0.0.40
codegen_flags: <defaults>
</compile_context>

<pallas_src>
import functools

import jax
import jax.numpy as jnp
from jax import lax
from jax.experimental import pallas as pl
from jax.experimental.pallas import tpu as pltpu

_EPS = 1e-5


# ----------------------------- kernel helpers -------------------------------

def _layernorm(z, g, b, eps):
    # single-pass statistics: var = E[x^2] - mu^2 (halves XLU reduction passes)
    mu = jnp.mean(z, axis=-1, keepdims=True)
    mu2 = jnp.mean(z * z, axis=-1, keepdims=True)
    var = jnp.maximum(mu2 - mu * mu, 0.0)
    return (z - mu) * lax.rsqrt(var + eps) * g + b


def _mha_proj(q2, k2, v2, wo, bo, *, bg, tq, tk, nhead, want_weights):
    """Multi-head attention + output projection.

    q2: (bg*tq, D) f32, k2/v2: (bg*tk, D) f32, wo: (D, D) bf16, bo: (1, D) f32.
    Returns (bg*tq, D) f32 projected attention output (wo/bo folded in) and,
    optionally, the head-averaged attention probabilities (bg, tq, tk) f32.
    Heads are lane-column slices; per-head outputs are accumulated into the
    output projection (no concatenate / relayout).
    """
    mq, D = q2.shape
    dh = D // nhead
    scale = 1.0 / float(dh) ** 0.5
    q3 = q2.reshape(bg, tq, D)
    k3 = k2.reshape(bg, tk, D)
    v3 = v2.reshape(bg, tk, D)
    proj = jnp.zeros((mq, D), jnp.float32) + bo
    aw = jnp.zeros((bg, tq, tk), jnp.float32) if want_weights else None
    for h in range(nhead):                      # static unroll over heads
        sl = slice(h * dh, (h + 1) * dh)
        qh = q3[:, :, sl].astype(jnp.bfloat16)
        kh = k3[:, :, sl].astype(jnp.bfloat16)
        vh = v3[:, :, sl].astype(jnp.bfloat16)
        # scores: batched over the batch-group dimension
        s = lax.dot_general(qh, kh, (((2,), (2,)), ((0,), (0,))),
                            preferred_element_type=jnp.float32) * scale
        s = s - jnp.max(s, axis=-1, keepdims=True)
        p = jnp.exp(s)
        p = p / jnp.sum(p, axis=-1, keepdims=True)     # exact softmax
        if want_weights:
            aw = aw + p
        oh = lax.dot_general(p.astype(jnp.bfloat16), vh,
                             (((2,), (1,)), ((0,), (0,))),
                             preferred_element_type=jnp.float32)  # (bg,tq,dh)
        # fold head concat into the output projection
        proj = proj + lax.dot_general(
            oh.reshape(mq, dh).astype(jnp.bfloat16), wo[sl, :],
            (((1,), (0,)), ((), ())),
            preferred_element_type=jnp.float32)
    if want_weights:
        aw = aw * (1.0 / nhead)
    return proj, aw


# --------------------------- fused decoder kernel ----------------------------

def _decoder_stack_kernel(
        x_in_ref, mem_ref,
        w_qkv_ref, b_qkv_ref, wo_s_ref, bo_s_ref, ln1_g_ref, ln1_b_ref,
        wq_c_ref, bq_c_ref, wkv_c_ref, bkv_c_ref, wo_c_ref, bo_c_ref,
        ln2_g_ref, ln2_b_ref,
        w1_ref, b1_ref, w2_ref, b2_ref, ln3_g_ref, ln3_b_ref,
        normf_g_ref, normf_b_ref,
        out_ref, aw_ref,
        x_s,
        *, bg, T, S, nhead, num_layers, eps):
    l = pl.program_id(1)                       # layer index (arbitrary axis)

    @pl.when(l == 0)
    def _load_input():
        x_s[...] = x_in_ref[...]               # start the carry for this group

    x = x_s[...]                               # (bg*T, D) f32 residual stream
    D = x.shape[-1]

    # ---------------- self-attention + residual + LayerNorm1 ----------------
    qkv = (jnp.dot(x.astype(jnp.bfloat16), w_qkv_ref[0],
                   preferred_element_type=jnp.float32) + b_qkv_ref[0])
    sa, _ = _mha_proj(qkv[:, :D], qkv[:, D:2 * D], qkv[:, 2 * D:],
                      wo_s_ref[0], bo_s_ref[0],
                      bg=bg, tq=T, tk=T, nhead=nhead, want_weights=False)
    x = _layernorm(x + sa, ln1_g_ref[0], ln1_b_ref[0], eps)

    # ---------------- cross-attention + residual + LayerNorm2 ---------------
    q = (jnp.dot(x.astype(jnp.bfloat16), wq_c_ref[0],
                 preferred_element_type=jnp.float32) + bq_c_ref[0])
    kv = (jnp.dot(mem_ref[...], wkv_c_ref[0],
                  preferred_element_type=jnp.float32) + bkv_c_ref[0])
    ca, aw = _mha_proj(q, kv[:, :D], kv[:, D:],
                       wo_c_ref[0], bo_c_ref[0],
                       bg=bg, tq=T, tk=S, nhead=nhead, want_weights=True)
    x = _layernorm(x + ca, ln2_g_ref[0], ln2_b_ref[0], eps)
    aw_ref[0] = aw                             # (bg, T, S), head-averaged

    # ---------------- feed-forward + residual + LayerNorm3 ------------------
    h = (jnp.dot(x.astype(jnp.bfloat16), w1_ref[0],
                 preferred_element_type=jnp.float32) + b1_ref[0])
    h = jnp.maximum(h, 0.0)
    y = (jnp.dot(h.astype(jnp.bfloat16), w2_ref[0],
                 preferred_element_type=jnp.float32) + b2_ref[0])
    x = _layernorm(x + y, ln3_g_ref[0], ln3_b_ref[0], eps)

    x_s[...] = x                               # carry to the next layer

    @pl.when(l == num_layers - 1)
    def _finalize():
        # fused final decoder LayerNorm + single HBM writeback
        out_ref[...] = _layernorm(x, normf_g_ref[...], normf_b_ref[...], eps)


# ------------------------------ pallas wrapper --------------------------------

def transformer_decoder(tgt, memory, params, nhead):
    # tgt: (T, B, D), memory: (S, B, D)
    T, B, D = tgt.shape
    S = memory.shape[0]
    L = params["w_qkv"].shape[0]
    F = params["w1"].shape[-1]
    assert D % nhead == 0

    # >=2 grid steps on the parallel axis when alignment allows (v7x megacore)
    ngroups = 1
    if B % 2 == 0 and B >= 2 and ((B // 2) * T) % 8 == 0 and ((B // 2) * S) % 8 == 0:
        ngroups = 2
    bg = B // ngroups

    # one layout change at the decoder boundary: (T,B,D) -> (B*T, D)
    x2d = jnp.transpose(tgt, (1, 0, 2)).reshape(B * T, D)
    m2d = jnp.transpose(memory, (1, 0, 2)).reshape(B * S, D).astype(jnp.bfloat16)

    kernel = functools.partial(
        _decoder_stack_kernel, bg=bg, T=T, S=S, nhead=nhead,
        num_layers=L, eps=_EPS)

    def w_spec(*shp):
        return pl.BlockSpec((1,) + shp, lambda g, l: (l, 0, 0))

    in_specs = [
        pl.BlockSpec((bg * T, D), lambda g, l: (g, 0)),    # x_in (per group)
        pl.BlockSpec((bg * S, D), lambda g, l: (g, 0)),    # memory (per group)
        w_spec(D, 3 * D), w_spec(1, 3 * D),                # w_qkv, b_qkv
        w_spec(D, D), w_spec(1, D),                        # wo_s, bo_s
        w_spec(1, D), w_spec(1, D),                        # ln1_g, ln1_b
        w_spec(D, D), w_spec(1, D),                        # wq_c, bq_c
        w_spec(D, 2 * D), w_spec(1, 2 * D),                # wkv_c, bkv_c
        w_spec(D, D), w_spec(1, D),                        # wo_c, bo_c
        w_spec(1, D), w_spec(1, D),                        # ln2_g, ln2_b
        w_spec(D, F), w_spec(1, F),                        # w1, b1
        w_spec(F, D), w_spec(1, D),                        # w2, b2
        w_spec(1, D), w_spec(1, D),                        # ln3_g, ln3_b
        pl.BlockSpec((1, D), lambda g, l: (0, 0)),         # final norm gamma
        pl.BlockSpec((1, D), lambda g, l: (0, 0)),         # final norm beta
    ]
    out_specs = [
        pl.BlockSpec((bg * T, D), lambda g, l: (g, 0)),        # x out
        pl.BlockSpec((1, bg, T, S), lambda g, l: (l, g, 0, 0)),  # attn weights
    ]
    out_shape = [
        jax.ShapeDtypeStruct((B * T, D), jnp.float32),
        jax.ShapeDtypeStruct((L, B, T, S), jnp.float32),
    ]

    out2d, aw = pl.pallas_call(
        kernel,
        grid=(ngroups, L),
        in_specs=in_specs,
        out_specs=out_specs,
        out_shape=out_shape,
        scratch_shapes=[pltpu.VMEM((bg * T, D), jnp.float32)],  # x carry
        compiler_params=pltpu.CompilerParams(
            dimension_semantics=("parallel", "arbitrary"),
            vmem_limit_bytes=32 * 1024 * 1024),
    )(x2d, m2d,
      params["w_qkv"], params["b_qkv"], params["wo_s"], params["bo_s"],
      params["ln1_g"], params["ln1_b"],
      params["wq_c"], params["bq_c"], params["wkv_c"], params["bkv_c"],
      params["wo_c"], params["bo_c"], params["ln2_g"], params["ln2_b"],
      params["w1"], params["b1"], params["w2"], params["b2"],
      params["ln3_g"], params["ln3_b"],
      params["norm_g"], params["norm_b"])

    out = jnp.transpose(out2d.reshape(B, T, D), (1, 0, 2))     # back to (T,B,D)
    attn_weights = [aw[i] for i in range(L)]                   # per-layer (B,T,S)
    # TODO(synk): tgt_mask / memory_mask / key_padding_mask support (None in
    # this example, matching the default call signature).
    return out, attn_weights


# ------------------------------- init helpers -------------------------------

def init_params(key, num_layers, D, dim_ff):
    """Per-layer weights stacked along a leading layer axis (bf16 matmul weights)."""
    def normal(k, shape):
        return 0.02 * jax.random.normal(k, shape, jnp.float32)

    L = num_layers
    ks = jax.random.split(key, 7)
    return {
        # self-attention (packed QKV)
        "w_qkv": normal(ks[0], (L, D, 3 * D)).astype(jnp.bfloat16),
        "b_qkv": jnp.zeros((L, 1, 3 * D), jnp.float32),
        "wo_s": normal(ks[1], (L, D, D)).astype(jnp.bfloat16),
        "bo_s": jnp.zeros((L, 1, D), jnp.float32),
        # cross-attention (packed KV)
        "wq_c": normal(ks[2], (L, D, D)).astype(jnp.bfloat16),
        "bq_c": jnp.zeros((L, 1, D), jnp.float32),
        "wkv_c": normal(ks[3], (L, D, 2 * D)).astype(jnp.bfloat16),
        "bkv_c": jnp.zeros((L, 1, 2 * D), jnp.float32),
        "wo_c": normal(ks[4], (L, D, D)).astype(jnp.bfloat16),
        "bo_c": jnp.zeros((L, 1, D), jnp.float32),
        # feed-forward
        "w1": normal(ks[5], (L, D, dim_ff)).astype(jnp.bfloat16),
        "b1": jnp.zeros((L, 1, dim_ff), jnp.float32),
        "w2": normal(ks[6], (L, dim_ff, D)).astype(jnp.bfloat16),
        "b2": jnp.zeros((L, 1, D), jnp.float32),
        # layer norms (f32)
        "ln1_g": jnp.ones((L, 1, D), jnp.float32),
        "ln1_b": jnp.zeros((L, 1, D), jnp.float32),
        "ln2_g": jnp.ones((L, 1, D), jnp.float32),
        "ln2_b": jnp.zeros((L, 1, D), jnp.float32),
        "ln3_g": jnp.ones((L, 1, D), jnp.float32),
        "ln3_b": jnp.zeros((L, 1, D), jnp.float32),
        # final decoder norm
        "norm_g": jnp.ones((1, D), jnp.float32),
        "norm_b": jnp.zeros((1, D), jnp.float32),
    }


# ----------------------------------- main ------------------------------------

if __name__ == "__main__":
    # small, lane-aligned shapes consistent with the module's forward
    T, S, B = 8, 16, 2          # tgt seq len, memory seq len, batch
    D, nhead, dim_ff = 128, 4, 256
    num_layers = 2

    key = jax.random.PRNGKey(0)
    k_tgt, k_mem, k_par = jax.random.split(key, 3)
    tgt = jax.random.normal(k_tgt, (T, B, D), jnp.float32)
    memory = jax.random.normal(k_mem, (S, B, D), jnp.float32)
    params = init_params(k_par, num_layers, D, dim_ff)

    fwd = jax.jit(functools.partial(transformer_decoder, nhead=nhead))
    out, attn_weights = fwd(tgt, memory, params)
    out = jax.block_until_ready(out)
    attn_weights = [jax.block_until_ready(a) for a in attn_weights]

    assert out.shape == (T, B, D)
    assert len(attn_weights) == num_layers
    assert all(a.shape == (B, T, S) for a in attn_weights)
    assert bool(jnp.all(jnp.isfinite(out)))
    assert all(bool(jnp.all(jnp.isfinite(a))) for a in attn_weights)
    # head-averaged softmax rows should sum to ~1 (exact division now)
    row_sums = jnp.sum(attn_weights[0], axis=-1)
    assert bool(jnp.all(jnp.abs(row_sums - 1.0) < 1e-3))
    print("KERNEL_OK")
</pallas_src>

<mosaic_0001>
module attributes {stable_mosaic.version = 11 : i64} {
  func.func @_decoder_stack_kernel(%arg0: i32, %arg1: i32, %arg2: memref<8x128xf32, #tpu.memory_space<vmem>>, %arg3: memref<16x128xbf16, #tpu.memory_space<vmem>>, %arg4: memref<1x128x384xbf16, #tpu.memory_space<vmem>>, %arg5: memref<1x1x384xf32, #tpu.memory_space<vmem>>, %arg6: memref<1x128x128xbf16, #tpu.memory_space<vmem>>, %arg7: memref<1x1x128xf32, #tpu.memory_space<vmem>>, %arg8: memref<1x1x128xf32, #tpu.memory_space<vmem>>, %arg9: memref<1x1x128xf32, #tpu.memory_space<vmem>>, %arg10: memref<1x128x128xbf16, #tpu.memory_space<vmem>>, %arg11: memref<1x1x128xf32, #tpu.memory_space<vmem>>, %arg12: memref<1x128x256xbf16, #tpu.memory_space<vmem>>, %arg13: memref<1x1x256xf32, #tpu.memory_space<vmem>>, %arg14: memref<1x128x128xbf16, #tpu.memory_space<vmem>>, %arg15: memref<1x1x128xf32, #tpu.memory_space<vmem>>, %arg16: memref<1x1x128xf32, #tpu.memory_space<vmem>>, %arg17: memref<1x1x128xf32, #tpu.memory_space<vmem>>, %arg18: memref<1x128x256xbf16, #tpu.memory_space<vmem>>, %arg19: memref<1x1x256xf32, #tpu.memory_space<vmem>>, %arg20: memref<1x256x128xbf16, #tpu.memory_space<vmem>>, %arg21: memref<1x1x128xf32, #tpu.memory_space<vmem>>, %arg22: memref<1x1x128xf32, #tpu.memory_space<vmem>>, %arg23: memref<1x1x128xf32, #tpu.memory_space<vmem>>, %arg24: memref<1x128xf32, #tpu.memory_space<vmem>>, %arg25: memref<1x128xf32, #tpu.memory_space<vmem>>, %arg26: memref<8x128xf32, #tpu.memory_space<vmem>>, %arg27: memref<1x1x8x16xf32, #tpu.memory_space<vmem>>, %arg28: memref<8x128xf32, #tpu.memory_space<vmem>>) attributes {dimension_semantics = [#tpu.dimension_semantics<parallel>, #tpu.dimension_semantics<arbitrary>], iteration_bounds = array<i64: 2, 2>, scalar_prefetch = 0 : i64, scratch_operands = 1 : i64, tpu.core_type = #tpu.core_type<tc>, window_params = [{transform_indices = @transform_0, window_bounds = array<i64: 8, 128>}, {transform_indices = @transform_1, window_bounds = array<i64: 16, 128>}, {transform_indices = @transform_2, window_bounds = array<i64: 1, 128, 384>}, {transform_indices = @transform_3, window_bounds = array<i64: 1, 1, 384>}, {transform_indices = @transform_4, window_bounds = array<i64: 1, 128, 128>}, {transform_indices = @transform_5, window_bounds = array<i64: 1, 1, 128>}, {transform_indices = @transform_6, window_bounds = array<i64: 1, 1, 128>}, {transform_indices = @transform_7, window_bounds = array<i64: 1, 1, 128>}, {transform_indices = @transform_8, window_bounds = array<i64: 1, 128, 128>}, {transform_indices = @transform_9, window_bounds = array<i64: 1, 1, 128>}, {transform_indices = @transform_10, window_bounds = array<i64: 1, 128, 256>}, {transform_indices = @transform_11, window_bounds = array<i64: 1, 1, 256>}, {transform_indices = @transform_12, window_bounds = array<i64: 1, 128, 128>}, {transform_indices = @transform_13, window_bounds = array<i64: 1, 1, 128>}, {transform_indices = @transform_14, window_bounds = array<i64: 1, 1, 128>}, {transform_indices = @transform_15, window_bounds = array<i64: 1, 1, 128>}, {transform_indices = @transform_16, window_bounds = array<i64: 1, 128, 256>}, {transform_indices = @transform_17, window_bounds = array<i64: 1, 1, 256>}, {transform_indices = @transform_18, window_bounds = array<i64: 1, 256, 128>}, {transform_indices = @transform_19, window_bounds = array<i64: 1, 1, 128>}, {transform_indices = @transform_20, window_bounds = array<i64: 1, 1, 128>}, {transform_indices = @transform_21, window_bounds = array<i64: 1, 1, 128>}, {pipeline_mode = #tpu.pipeline_mode<synchronous>, transform_indices = @transform_22, window_bounds = array<i64: 1, 128>}, {pipeline_mode = #tpu.pipeline_mode<synchronous>, transform_indices = @transform_23, window_bounds = array<i64: 1, 128>}, {transform_indices = @transform_24, window_bounds = array<i64: 8, 128>}, {transform_indices = @transform_25, window_bounds = array<i64: 1, 1, 8, 16>}]} {
    %c0_i32 = arith.constant 0 : i32
    %0 = arith.cmpi eq, %arg1, %c0_i32 : i32
    %1 = arith.extui %0 : i1 to i32
    %c0_i32_0 = arith.constant 0 : i32
    %2 = arith.cmpi ne, %1, %c0_i32_0 : i32
    scf.if %2 {
      %c0_146 = arith.constant 0 : index
      %c0_147 = arith.constant 0 : index
      %372 = vector.load %arg2[%c0_146, %c0_147] : memref<8x128xf32, #tpu.memory_space<vmem>>, vector<8x128xf32>
      %c0_148 = arith.constant 0 : index
      %c0_149 = arith.constant 0 : index
      %373 = vector.load %arg28[%c0_148, %c0_149] : memref<8x128xf32, #tpu.memory_space<vmem>>, vector<8x128xf32>
      tpu.vector_store %arg28[%c0_148, %c0_149], %372 {strides = array<i32>} : memref<8x128xf32, #tpu.memory_space<vmem>>, vector<8x128xf32>,
    } else {
    }
    %c0 = arith.constant 0 : index
    %c0_1 = arith.constant 0 : index
    %3 = vector.load %arg28[%c0, %c0_1] : memref<8x128xf32, #tpu.memory_space<vmem>>, vector<8x128xf32>
    %4 = arith.truncf %3 : vector<8x128xf32> to vector<8x128xbf16>
    %c0_2 = arith.constant 0 : index
    %c0_3 = arith.constant 0 : index
    %c0_4 = arith.constant 0 : index
    %5 = vector.load %arg4[%c0_2, %c0_3, %c0_4] : memref<1x128x384xbf16, #tpu.memory_space<vmem>>, vector<1x128x384xbf16>
    %6 = vector.shape_cast %5 : vector<1x128x384xbf16> to vector<128x384xbf16>
    %cst = arith.constant dense<0.000000e+00> : vector<8x384xf32>
    %7 = tpu.matmul %4, %6, %cst {dimension_numbers = #tpu.dot_dimension_numbers<[1], [0], [0], [1], [0, 0, 1, 1], [], []>} : vector<8x128xbf16>, vector<128x384xbf16>, vector<8x384xf32> -> vector<8x384xf32>
    %c0_5 = arith.constant 0 : index
    %c0_6 = arith.constant 0 : index
    %c0_7 = arith.constant 0 : index
    %8 = vector.load %arg5[%c0_5, %c0_6, %c0_7] : memref<1x1x384xf32, #tpu.memory_space<vmem>>, vector<1x1x384xf32>
    %9 = vector.shape_cast %8 : vector<1x1x384xf32> to vector<1x384xf32>
    %10 = vector.broadcast %9 : vector<1x384xf32> to vector<8x384xf32>
    %11 = arith.addf %7, %10 : vector<8x384xf32>
    %12 = vector.extract_strided_slice %11 {offsets = [0, 0], sizes = [8, 128], strides = [1, 1]} : vector<8x384xf32> to vector<8x128xf32>
    %13 = vector.extract_strided_slice %11 {offsets = [0, 128], sizes = [8, 128], strides = [1, 1]} : vector<8x384xf32> to vector<8x128xf32>
    %14 = vector.extract_strided_slice %11 {offsets = [0, 256], sizes = [8, 128], strides = [1, 1]} : vector<8x384xf32> to vector<8x128xf32>
    %c0_8 = arith.constant 0 : index
    %c0_9 = arith.constant 0 : index
    %c0_10 = arith.constant 0 : index
    %15 = vector.load %arg6[%c0_8, %c0_9, %c0_10] : memref<1x128x128xbf16, #tpu.memory_space<vmem>>, vector<1x128x128xbf16>
    %16 = vector.shape_cast %15 : vector<1x128x128xbf16> to vector<128x128xbf16>
    %c0_11 = arith.constant 0 : index
    %c0_12 = arith.constant 0 : index
    %c0_13 = arith.constant 0 : index
    %17 = vector.load %arg7[%c0_11, %c0_12, %c0_13] : memref<1x1x128xf32, #tpu.memory_space<vmem>>, vector<1x1x128xf32>
    %18 = vector.shape_cast %17 : vector<1x1x128xf32> to vector<1x128xf32>
    %19 = vector.shape_cast %12 : vector<8x128xf32> to vector<1x8x128xf32>
    %20 = vector.shape_cast %13 : vector<8x128xf32> to vector<1x8x128xf32>
    %21 = vector.shape_cast %14 : vector<8x128xf32> to vector<1x8x128xf32>
    %cst_14 = arith.constant 0.000000e+00 : f32
    %22 = vector.broadcast %cst_14 : f32 to vector<8x128xf32>
    %23 = vector.broadcast %18 : vector<1x128xf32> to vector<8x128xf32>
    %24 = arith.addf %22, %23 : vector<8x128xf32>
    %25 = vector.extract_strided_slice %19 {offsets = [0, 0, 0], sizes = [1, 8, 32], strides = [1, 1, 1]} : vector<1x8x128xf32> to vector<1x8x32xf32>
    %26 = arith.truncf %25 : vector<1x8x32xf32> to vector<1x8x32xbf16>
    %27 = vector.extract_strided_slice %20 {offsets = [0, 0, 0], sizes = [1, 8, 32], strides = [1, 1, 1]} : vector<1x8x128xf32> to vector<1x8x32xf32>
    %28 = arith.truncf %27 : vector<1x8x32xf32> to vector<1x8x32xbf16>
    %29 = vector.extract_strided_slice %21 {offsets = [0, 0, 0], sizes = [1, 8, 32], strides = [1, 1, 1]} : vector<1x8x128xf32> to vector<1x8x32xf32>
    %30 = arith.truncf %29 : vector<1x8x32xf32> to vector<1x8x32xbf16>
    %cst_15 = arith.constant dense<0.000000e+00> : vector<1x8x8xf32>
    %31 = tpu.matmul %26, %28, %cst_15 {dimension_numbers = #tpu.dot_dimension_numbers<[2], [2], [1], [1], [0, 0, 0, 1, 1, 1], [0], [0]>} : vector<1x8x32xbf16>, vector<1x8x32xbf16>, vector<1x8x8xf32> -> vector<1x8x8xf32>
    %cst_16 = arith.constant 0.176776692 : f32
    %32 = vector.broadcast %cst_16 : f32 to vector<1x8x8xf32>
    %33 = arith.mulf %31, %32 : vector<1x8x8xf32>
    %cst_17 = arith.constant dense<0xFF800000> : vector<1x8xf32>
    %34 = vector.multi_reduction <maximumf>, %33, %cst_17 [2] : vector<1x8x8xf32> to vector<1x8xf32>
    %35 = vector.shape_cast %34 : vector<1x8xf32> to vector<1x8x1xf32>
    %36 = vector.broadcast %35 : vector<1x8x1xf32> to vector<1x8x8xf32>
    %37 = arith.subf %33, %36 : vector<1x8x8xf32>
    %38 = math.exp %37 : vector<1x8x8xf32>
    %cst_18 = arith.constant dense<0.000000e+00> : vector<1x8xf32>
    %39 = vector.multi_reduction <add>, %38, %cst_18 [2] : vector<1x8x8xf32> to vector<1x8xf32>
    %40 = vector.shape_cast %39 : vector<1x8xf32> to vector<1x8x1xf32>
    %41 = vector.broadcast %40 : vector<1x8x1xf32> to vector<1x8x8xf32>
    %42 = arith.divf %38, %41 : vector<1x8x8xf32>
    %43 = arith.truncf %42 : vector<1x8x8xf32> to vector<1x8x8xbf16>
    %cst_19 = arith.constant dense<0.000000e+00> : vector<1x8x32xf32>
    %44 = tpu.matmul %43, %30, %cst_19 {dimension_numbers = #tpu.dot_dimension_numbers<[2], [1], [1], [2], [0, 0, 0, 1, 1, 2], [0], [0]>} : vector<1x8x8xbf16>, vector<1x8x32xbf16>, vector<1x8x32xf32> -> vector<1x8x32xf32>
    %45 = vector.shape_cast %44 : vector<1x8x32xf32> to vector<8x32xf32>
    %46 = arith.truncf %45 : vector<8x32xf32> to vector<8x32xbf16>
    %47 = vector.extract_strided_slice %16 {offsets = [0, 0], sizes = [32, 128], strides = [1, 1]} : vector<128x128xbf16> to vector<32x128xbf16>
    %cst_20 = arith.constant dense<0.000000e+00> : vector<8x128xf32>
    %48 = tpu.matmul %46, %47, %cst_20 {dimension_numbers = #tpu.dot_dimension_numbers<[1], [0], [0], [1], [0, 0, 1, 1], [], []>} : vector<8x32xbf16>, vector<32x128xbf16>, vector<8x128xf32> -> vector<8x128xf32>
    %49 = arith.addf %24, %48 : vector<8x128xf32>
    %50 = vector.extract_strided_slice %19 {offsets = [0, 0, 32], sizes = [1, 8, 32], strides = [1, 1, 1]} : vector<1x8x128xf32> to vector<1x8x32xf32>
    %51 = arith.truncf %50 : vector<1x8x32xf32> to vector<1x8x32xbf16>
    %52 = vector.extract_strided_slice %20 {offsets = [0, 0, 32], sizes = [1, 8, 32], strides = [1, 1, 1]} : vector<1x8x128xf32> to vector<1x8x32xf32>
    %53 = arith.truncf %52 : vector<1x8x32xf32> to vector<1x8x32xbf16>
    %54 = vector.extract_strided_slice %21 {offsets = [0, 0, 32], sizes = [1, 8, 32], strides = [1, 1, 1]} : vector<1x8x128xf32> to vector<1x8x32xf32>
    %55 = arith.truncf %54 : vector<1x8x32xf32> to vector<1x8x32xbf16>
    %cst_21 = arith.constant dense<0.000000e+00> : vector<1x8x8xf32>
    %56 = tpu.matmul %51, %53, %cst_21 {dimension_numbers = #tpu.dot_dimension_numbers<[2], [2], [1], [1], [0, 0, 0, 1, 1, 1], [0], [0]>} : vector<1x8x32xbf16>, vector<1x8x32xbf16>, vector<1x8x8xf32> -> vector<1x8x8xf32>
    %cst_22 = arith.constant 0.176776692 : f32
    %57 = vector.broadcast %cst_22 : f32 to vector<1x8x8xf32>
    %58 = arith.mulf %56, %57 : vector<1x8x8xf32>
    %cst_23 = arith.constant dense<0xFF800000> : vector<1x8xf32>
    %59 = vector.multi_reduction <maximumf>, %58, %cst_23 [2] : vector<1x8x8xf32> to vector<1x8xf32>
    %60 = vector.shape_cast %59 : vector<1x8xf32> to vector<1x8x1xf32>
    %61 = vector.broadcast %60 : vector<1x8x1xf32> to vector<1x8x8xf32>
    %62 = arith.subf %58, %61 : vector<1x8x8xf32>
    %63 = math.exp %62 : vector<1x8x8xf32>
    %cst_24 = arith.constant dense<0.000000e+00> : vector<1x8xf32>
    %64 = vector.multi_reduction <add>, %63, %cst_24 [2] : vector<1x8x8xf32> to vector<1x8xf32>
    %65 = vector.shape_cast %64 : vector<1x8xf32> to vector<1x8x1xf32>
    %66 = vector.broadcast %65 : vector<1x8x1xf32> to vector<1x8x8xf32>
    %67 = arith.divf %63, %66 : vector<1x8x8xf32>
    %68 = arith.truncf %67 : vector<1x8x8xf32> to vector<1x8x8xbf16>
    %cst_25 = arith.constant dense<0.000000e+00> : vector<1x8x32xf32>
    %69 = tpu.matmul %68, %55, %cst_25 {dimension_numbers = #tpu.dot_dimension_numbers<[2], [1], [1], [2], [0, 0, 0, 1, 1, 2], [0], [0]>} : vector<1x8x8xbf16>, vector<1x8x32xbf16>, vector<1x8x32xf32> -> vector<1x8x32xf32>
    %70 = vector.shape_cast %69 : vector<1x8x32xf32> to vector<8x32xf32>
    %71 = arith.truncf %70 : vector<8x32xf32> to vector<8x32xbf16>
    %72 = vector.extract_strided_slice %16 {offsets = [32, 0], sizes = [32, 128], strides = [1, 1]} : vector<128x128xbf16> to vector<32x128xbf16>
    %cst_26 = arith.constant dense<0.000000e+00> : vector<8x128xf32>
    %73 = tpu.matmul %71, %72, %cst_26 {dimension_numbers = #tpu.dot_dimension_numbers<[1], [0], [0], [1], [0, 0, 1, 1], [], []>} : vector<8x32xbf16>, vector<32x128xbf16>, vector<8x128xf32> -> vector<8x128xf32>
    %74 = arith.addf %49, %73 : vector<8x128xf32>
    %75 = vector.extract_strided_slice %19 {offsets = [0, 0, 64], sizes = [1, 8, 32], strides = [1, 1, 1]} : vector<1x8x128xf32> to vector<1x8x32xf32>
    %76 = arith.truncf %75 : vector<1x8x32xf32> to vector<1x8x32xbf16>
    %77 = vector.extract_strided_slice %20 {offsets = [0, 0, 64], sizes = [1, 8, 32], strides = [1, 1, 1]} : vector<1x8x128xf32> to vector<1x8x32xf32>
    %78 = arith.truncf %77 : vector<1x8x32xf32> to vector<1x8x32xbf16>
    %79 = vector.extract_strided_slice %21 {offsets = [0, 0, 64], sizes = [1, 8, 32], strides = [1, 1, 1]} : vector<1x8x128xf32> to vector<1x8x32xf32>
    %80 = arith.truncf %79 : vector<1x8x32xf32> to vector<1x8x32xbf16>
    %cst_27 = arith.constant dense<0.000000e+00> : vector<1x8x8xf32>
    %81 = tpu.matmul %76, %78, %cst_27 {dimension_numbers = #tpu.dot_dimension_numbers<[2], [2], [1], [1], [0, 0, 0, 1, 1, 1], [0], [0]>} : vector<1x8x32xbf16>, vector<1x8x32xbf16>, vector<1x8x8xf32> -> vector<1x8x8xf32>
    %cst_28 = arith.constant 0.176776692 : f32
    %82 = vector.broadcast %cst_28 : f32 to vector<1x8x8xf32>
    %83 = arith.mulf %81, %82 : vector<1x8x8xf32>
    %cst_29 = arith.constant dense<0xFF800000> : vector<1x8xf32>
    %84 = vector.multi_reduction <maximumf>, %83, %cst_29 [2] : vector<1x8x8xf32> to vector<1x8xf32>
    %85 = vector.shape_cast %84 : vector<1x8xf32> to vector<1x8x1xf32>
    %86 = vector.broadcast %85 : vector<1x8x1xf32> to vector<1x8x8xf32>
    %87 = arith.subf %83, %86 : vector<1x8x8xf32>
    %88 = math.exp %87 : vector<1x8x8xf32>
    %cst_30 = arith.constant dense<0.000000e+00> : vector<1x8xf32>
    %89 = vector.multi_reduction <add>, %88, %cst_30 [2] : vector<1x8x8xf32> to vector<1x8xf32>
    %90 = vector.shape_cast %89 : vector<1x8xf32> to vector<1x8x1xf32>
    %91 = vector.broadcast %90 : vector<1x8x1xf32> to vector<1x8x8xf32>
    %92 = arith.divf %88, %91 : vector<1x8x8xf32>
    %93 = arith.truncf %92 : vector<1x8x8xf32> to vector<1x8x8xbf16>
    %cst_31 = arith.constant dense<0.000000e+00> : vector<1x8x32xf32>
    %94 = tpu.matmul %93, %80, %cst_31 {dimension_numbers = #tpu.dot_dimension_numbers<[2], [1], [1], [2], [0, 0, 0, 1, 1, 2], [0], [0]>} : vector<1x8x8xbf16>, vector<1x8x32xbf16>, vector<1x8x32xf32> -> vector<1x8x32xf32>
    %95 = vector.shape_cast %94 : vector<1x8x32xf32> to vector<8x32xf32>
    %96 = arith.truncf %95 : vector<8x32xf32> to vector<8x32xbf16>
    %97 = vector.extract_strided_slice %16 {offsets = [64, 0], sizes = [32, 128], strides = [1, 1]} : vector<128x128xbf16> to vector<32x128xbf16>
    %cst_32 = arith.constant dense<0.000000e+00> : vector<8x128xf32>
    %98 = tpu.matmul %96, %97, %cst_32 {dimension_numbers = #tpu.dot_dimension_numbers<[1], [0], [0], [1], [0, 0, 1, 1], [], []>} : vector<8x32xbf16>, vector<32x128xbf16>, vector<8x128xf32> -> vector<8x128xf32>
    %99 = arith.addf %74, %98 : vector<8x128xf32>
    %100 = vector.extract_strided_slice %19 {offsets = [0, 0, 96], sizes = [1, 8, 32], strides = [1, 1, 1]} : vector<1x8x128xf32> to vector<1x8x32xf32>
    %101 = arith.truncf %100 : vector<1x8x32xf32> to vector<1x8x32xbf16>
    %102 = vector.extract_strided_slice %20 {offsets = [0, 0, 96], sizes = [1, 8, 32], strides = [1, 1, 1]} : vector<1x8x128xf32> to vector<1x8x32xf32>
    %103 = arith.truncf %102 : vector<1x8x32xf32> to vector<1x8x32xbf16>
    %104 = vector.extract_strided_slice %21 {offsets = [0, 0, 96], sizes = [1, 8, 32], strides = [1, 1, 1]} : vector<1x8x128xf32> to vector<1x8x32xf32>
    %105 = arith.truncf %104 : vector<1x8x32xf32> to vector<1x8x32xbf16>
    %cst_33 = arith.constant dense<0.000000e+00> : vector<1x8x8xf32>
    %106 = tpu.matmul %101, %103, %cst_33 {dimension_numbers = #tpu.dot_dimension_numbers<[2], [2], [1], [1], [0, 0, 0, 1, 1, 1], [0], [0]>} : vector<1x8x32xbf16>, vector<1x8x32xbf16>, vector<1x8x8xf32> -> vector<1x8x8xf32>
    %cst_34 = arith.constant 0.176776692 : f32
    %107 = vector.broadcast %cst_34 : f32 to vector<1x8x8xf32>
    %108 = arith.mulf %106, %107 : vector<1x8x8xf32>
    %cst_35 = arith.constant dense<0xFF800000> : vector<1x8xf32>
    %109 = vector.multi_reduction <maximumf>, %108, %cst_35 [2] : vector<1x8x8xf32> to vector<1x8xf32>
    %110 = vector.shape_cast %109 : vector<1x8xf32> to vector<1x8x1xf32>
    %111 = vector.broadcast %110 : vector<1x8x1xf32> to vector<1x8x8xf32>
    %112 = arith.subf %108, %111 : vector<1x8x8xf32>
    %113 = math.exp %112 : vector<1x8x8xf32>
    %cst_36 = arith.constant dense<0.000000e+00> : vector<1x8xf32>
    %114 = vector.multi_reduction <add>, %113, %cst_36 [2] : vector<1x8x8xf32> to vector<1x8xf32>
    %115 = vector.shape_cast %114 : vector<1x8xf32> to vector<1x8x1xf32>
    %116 = vector.broadcast %115 : vector<1x8x1xf32> to vector<1x8x8xf32>
    %117 = arith.divf %113, %116 : vector<1x8x8xf32>
    %118 = arith.truncf %117 : vector<1x8x8xf32> to vector<1x8x8xbf16>
    %cst_37 = arith.constant dense<0.000000e+00> : vector<1x8x32xf32>
    %119 = tpu.matmul %118, %105, %cst_37 {dimension_numbers = #tpu.dot_dimension_numbers<[2], [1], [1], [2], [0, 0, 0, 1, 1, 2], [0], [0]>} : vector<1x8x8xbf16>, vector<1x8x32xbf16>, vector<1x8x32xf32> -> vector<1x8x32xf32>
    %120 = vector.shape_cast %119 : vector<1x8x32xf32> to vector<8x32xf32>
    %121 = arith.truncf %120 : vector<8x32xf32> to vector<8x32xbf16>
    %122 = vector.extract_strided_slice %16 {offsets = [96, 0], sizes = [32, 128], strides = [1, 1]} : vector<128x128xbf16> to vector<32x128xbf16>
    %cst_38 = arith.constant dense<0.000000e+00> : vector<8x128xf32>
    %123 = tpu.matmul %121, %122, %cst_38 {dimension_numbers = #tpu.dot_dimension_numbers<[1], [0], [0], [1], [0, 0, 1, 1], [], []>} : vector<8x32xbf16>, vector<32x128xbf16>, vector<8x128xf32> -> vector<8x128xf32>
    %124 = arith.addf %99, %123 : vector<8x128xf32>
    %125 = arith.addf %3, %124 : vector<8x128xf32>
    %c0_39 = arith.constant 0 : index
    %c0_40 = arith.constant 0 : index
    %c0_41 = arith.constant 0 : index
    %126 = vector.load %arg8[%c0_39, %c0_40, %c0_41] : memref<1x1x128xf32, #tpu.memory_space<vmem>>, vector<1x1x128xf32>
    %127 = vector.shape_cast %126 : vector<1x1x128xf32> to vector<1x128xf32>
    %c0_42 = arith.constant 0 : index
    %c0_43 = arith.constant 0 : index
    %c0_44 = arith.constant 0 : index
    %128 = vector.load %arg9[%c0_42, %c0_43, %c0_44] : memref<1x1x128xf32, #tpu.memory_space<vmem>>, vector<1x1x128xf32>
    %129 = vector.shape_cast %128 : vector<1x1x128xf32> to vector<1x128xf32>
    %cst_45 = arith.constant dense<0.000000e+00> : vector<8xf32>
    %130 = vector.multi_reduction <add>, %125, %cst_45 [1] : vector<8x128xf32> to vector<8xf32>
    %131 = vector.shape_cast %130 : vector<8xf32> to vector<8x1xf32>
    %cst_46 = arith.constant 1.280000e+02 : f32
    %132 = vector.broadcast %cst_46 : f32 to vector<8x1xf32>
    %133 = arith.divf %131, %132 : vector<8x1xf32>
    %134 = arith.mulf %125, %125 : vector<8x128xf32>
    %cst_47 = arith.constant dense<0.000000e+00> : vector<8xf32>
    %135 = vector.multi_reduction <add>, %134, %cst_47 [1] : vector<8x128xf32> to vector<8xf32>
    %136 = vector.shape_cast %135 : vector<8xf32> to vector<8x1xf32>
    %cst_48 = arith.constant 1.280000e+02 : f32
    %137 = vector.broadcast %cst_48 : f32 to vector<8x1xf32>
    %138 = arith.divf %136, %137 : vector<8x1xf32>
    %139 = arith.mulf %133, %133 : vector<8x1xf32>
    %140 = arith.subf %138, %139 : vector<8x1xf32>
    %cst_49 = arith.constant 0.000000e+00 : f32
    %141 = vector.broadcast %cst_49 : f32 to vector<8x1xf32>
    %142 = arith.maximumf %140, %141 : vector<8x1xf32>
    %143 = vector.broadcast %133 : vector<8x1xf32> to vector<8x128xf32>
    %144 = arith.subf %125, %143 : vector<8x128xf32>
    %cst_50 = arith.constant 9.99999974E-6 : f32
    %145 = vector.broadcast %cst_50 : f32 to vector<8x1xf32>
    %146 = arith.addf %142, %145 : vector<8x1xf32>
    %147 = math.rsqrt %146 : vector<8x1xf32>
    %148 = vector.broadcast %147 : vector<8x1xf32> to vector<8x128xf32>
    %149 = arith.mulf %144, %148 : vector<8x128xf32>
    %150 = vector.broadcast %127 : vector<1x128xf32> to vector<8x128xf32>
    %151 = arith.mulf %149, %150 : vector<8x128xf32>
    %152 = vector.broadcast %129 : vector<1x128xf32> to vector<8x128xf32>
    %153 = arith.addf %151, %152 : vector<8x128xf32>
    %154 = arith.truncf %153 : vector<8x128xf32> to vector<8x128xbf16>
    %c0_51 = arith.constant 0 : index
    %c0_52 = arith.constant 0 : index
    %c0_53 = arith.constant 0 : index
    %155 = vector.load %arg10[%c0_51, %c0_52, %c0_53] : memref<1x128x128xbf16, #tpu.memory_space<vmem>>, vector<1x128x128xbf16>
    %156 = vector.shape_cast %155 : vector<1x128x128xbf16> to vector<128x128xbf16>
    %cst_54 = arith.constant dense<0.000000e+00> : vector<8x128xf32>
    %157 = tpu.matmul %154, %156, %cst_54 {dimension_numbers = #tpu.dot_dimension_numbers<[1], [0], [0], [1], [0, 0, 1, 1], [], []>} : vector<8x128xbf16>, vector<128x128xbf16>, vector<8x128xf32> -> vector<8x128xf32>
    %c0_55 = arith.constant 0 : index
    %c0_56 = arith.constant 0 : index
    %c0_57 = arith.constant 0 : index
    %158 = vector.load %arg11[%c0_55, %c0_56, %c0_57] : memref<1x1x128xf32, #tpu.memory_space<vmem>>, vector<1x1x128xf32>
    %159 = vector.shape_cast %158 : vector<1x1x128xf32> to vector<1x128xf32>
    %160 = vector.broadcast %159 : vector<1x128xf32> to vector<8x128xf32>
    %161 = arith.addf %157, %160 : vector<8x128xf32>
    %c0_58 = arith.constant 0 : index
    %c0_59 = arith.constant 0 : index
    %162 = vector.load %arg3[%c0_58, %c0_59] : memref<16x128xbf16, #tpu.memory_space<vmem>>, vector<16x128xbf16>
    %c0_60 = arith.constant 0 : index
    %c0_61 = arith.constant 0 : index
    %c0_62 = arith.constant 0 : index
    %163 = vector.load %arg12[%c0_60, %c0_61, %c0_62] : memref<1x128x256xbf16, #tpu.memory_space<vmem>>, vector<1x128x256xbf16>
    %164 = vector.shape_cast %163 : vector<1x128x256xbf16> to vector<128x256xbf16>
    %cst_63 = arith.constant dense<0.000000e+00> : vector<16x256xf32>
    %165 = tpu.matmul %162, %164, %cst_63 {dimension_numbers = #tpu.dot_dimension_numbers<[1], [0], [0], [1], [0, 0, 1, 1], [], []>} : vector<16x128xbf16>, vector<128x256xbf16>, vector<16x256xf32> -> vector<16x256xf32>
    %c0_64 = arith.constant 0 : index
    %c0_65 = arith.constant 0 : index
    %c0_66 = arith.constant 0 : index
    %166 = vector.load %arg13[%c0_64, %c0_65, %c0_66] : memref<1x1x256xf32, #tpu.memory_space<vmem>>, vector<1x1x256xf32>
    %167 = vector.shape_cast %166 : vector<1x1x256xf32> to vector<1x256xf32>
    %168 = vector.broadcast %167 : vector<1x256xf32> to vector<16x256xf32>
    %169 = arith.addf %165, %168 : vector<16x256xf32>
    %170 = vector.extract_strided_slice %169 {offsets = [0, 0], sizes = [16, 128], strides = [1, 1]} : vector<16x256xf32> to vector<16x128xf32>
    %171 = vector.extract_strided_slice %169 {offsets = [0, 128], sizes = [16, 128], strides = [1, 1]} : vector<16x256xf32> to vector<16x128xf32>
    %c0_67 = arith.constant 0 : index
    %c0_68 = arith.constant 0 : index
    %c0_69 = arith.constant 0 : index
    %172 = vector.load %arg14[%c0_67, %c0_68, %c0_69] : memref<1x128x128xbf16, #tpu.memory_space<vmem>>, vector<1x128x128xbf16>
    %173 = vector.shape_cast %172 : vector<1x128x128xbf16> to vector<128x128xbf16>
    %c0_70 = arith.constant 0 : index
    %c0_71 = arith.constant 0 : index
    %c0_72 = arith.constant 0 : index
    %174 = vector.load %arg15[%c0_70, %c0_71, %c0_72] : memref<1x1x128xf32, #tpu.memory_space<vmem>>, vector<1x1x128xf32>
    %175 = vector.shape_cast %174 : vector<1x1x128xf32> to vector<1x128xf32>
    %176 = vector.shape_cast %161 : vector<8x128xf32> to vector<1x8x128xf32>
    %177 = vector.shape_cast %170 : vector<16x128xf32> to vector<1x16x128xf32>
    %178 = vector.shape_cast %171 : vector<16x128xf32> to vector<1x16x128xf32>
    %cst_73 = arith.constant 0.000000e+00 : f32
    %179 = vector.broadcast %cst_73 : f32 to vector<8x128xf32>
    %180 = vector.broadcast %175 : vector<1x128xf32> to vector<8x128xf32>
    %181 = arith.addf %179, %180 : vector<8x128xf32>
    %cst_74 = arith.constant 0.000000e+00 : f32
    %182 = vector.broadcast %cst_74 : f32 to vector<1x8x16xf32>
    %183 = vector.extract_strided_slice %176 {offsets = [0, 0, 0], sizes = [1, 8, 32], strides = [1, 1, 1]} : vector<1x8x128xf32> to vector<1x8x32xf32>
    %184 = arith.truncf %183 : vector<1x8x32xf32> to vector<1x8x32xbf16>
    %185 = vector.extract_strided_slice %177 {offsets = [0, 0, 0], sizes = [1, 16, 32], strides = [1, 1, 1]} : vector<1x16x128xf32> to vector<1x16x32xf32>
    %186 = arith.truncf %185 : vector<1x16x32xf32> to vector<1x16x32xbf16>
    %187 = vector.extract_strided_slice %178 {offsets = [0, 0, 0], sizes = [1, 16, 32], strides = [1, 1, 1]} : vector<1x16x128xf32> to vector<1x16x32xf32>
    %188 = arith.truncf %187 : vector<1x16x32xf32> to vector<1x16x32xbf16>
    %cst_75 = arith.constant dense<0.000000e+00> : vector<1x8x16xf32>
    %189 = tpu.matmul %184, %186, %cst_75 {dimension_numbers = #tpu.dot_dimension_numbers<[2], [2], [1], [1], [0, 0, 0, 1, 1, 1], [0], [0]>} : vector<1x8x32xbf16>, vector<1x16x32xbf16>, vector<1x8x16xf32> -> vector<1x8x16xf32>
    %cst_76 = arith.constant 0.176776692 : f32
    %190 = vector.broadcast %cst_76 : f32 to vector<1x8x16xf32>
    %191 = arith.mulf %189, %190 : vector<1x8x16xf32>
    %cst_77 = arith.constant dense<0xFF800000> : vector<1x8xf32>
    %192 = vector.multi_reduction <maximumf>, %191, %cst_77 [2] : vector<1x8x16xf32> to vector<1x8xf32>
    %193 = vector.shape_cast %192 : vector<1x8xf32> to vector<1x8x1xf32>
    %194 = vector.broadcast %193 : vector<1x8x1xf32> to vector<1x8x16xf32>
    %195 = arith.subf %191, %194 : vector<1x8x16xf32>
    %196 = math.exp %195 : vector<1x8x16xf32>
    %cst_78 = arith.constant dense<0.000000e+00> : vector<1x8xf32>
    %197 = vector.multi_reduction <add>, %196, %cst_78 [2] : vector<1x8x16xf32> to vector<1x8xf32>
    %198 = vector.shape_cast %197 : vector<1x8xf32> to vector<1x8x1xf32>
    %199 = vector.broadcast %198 : vector<1x8x1xf32> to vector<1x8x16xf32>
    %200 = arith.divf %196, %199 : vector<1x8x16xf32>
    %201 = arith.addf %182, %200 : vector<1x8x16xf32>
    %202 = arith.truncf %200 : vector<1x8x16xf32> to vector<1x8x16xbf16>
    %cst_79 = arith.constant dense<0.000000e+00> : vector<1x8x32xf32>
    %203 = tpu.matmul %202, %188, %cst_79 {dimension_numbers = #tpu.dot_dimension_numbers<[2], [1], [1], [2], [0, 0, 0, 1, 1, 2], [0], [0]>} : vector<1x8x16xbf16>, vector<1x16x32xbf16>, vector<1x8x32xf32> -> vector<1x8x32xf32>
    %204 = vector.shape_cast %203 : vector<1x8x32xf32> to vector<8x32xf32>
    %205 = arith.truncf %204 : vector<8x32xf32> to vector<8x32xbf16>
    %206 = vector.extract_strided_slice %173 {offsets = [0, 0], sizes = [32, 128], strides = [1, 1]} : vector<128x128xbf16> to vector<32x128xbf16>
    %cst_80 = arith.constant dense<0.000000e+00> : vector<8x128xf32>
    %207 = tpu.matmul %205, %206, %cst_80 {dimension_numbers = #tpu.dot_dimension_numbers<[1], [0], [0], [1], [0, 0, 1, 1], [], []>} : vector<8x32xbf16>, vector<32x128xbf16>, vector<8x128xf32> -> vector<8x128xf32>
    %208 = arith.addf %181, %207 : vector<8x128xf32>
    %209 = vector.extract_strided_slice %176 {offsets = [0, 0, 32], sizes = [1, 8, 32], strides = [1, 1, 1]} : vector<1x8x128xf32> to vector<1x8x32xf32>
    %210 = arith.truncf %209 : vector<1x8x32xf32> to vector<1x8x32xbf16>
    %211 = vector.extract_strided_slice %177 {offsets = [0, 0, 32], sizes = [1, 16, 32], strides = [1, 1, 1]} : vector<1x16x128xf32> to vector<1x16x32xf32>
    %212 = arith.truncf %211 : vector<1x16x32xf32> to vector<1x16x32xbf16>
    %213 = vector.extract_strided_slice %178 {offsets = [0, 0, 32], sizes = [1, 16, 32], strides = [1, 1, 1]} : vector<1x16x128xf32> to vector<1x16x32xf32>
    %214 = arith.truncf %213 : vector<1x16x32xf32> to vector<1x16x32xbf16>
    %cst_81 = arith.constant dense<0.000000e+00> : vector<1x8x16xf32>
    %215 = tpu.matmul %210, %212, %cst_81 {dimension_numbers = #tpu.dot_dimension_numbers<[2], [2], [1], [1], [0, 0, 0, 1, 1, 1], [0], [0]>} : vector<1x8x32xbf16>, vector<1x16x32xbf16>, vector<1x8x16xf32> -> vector<1x8x16xf32>
    %cst_82 = arith.constant 0.176776692 : f32
    %216 = vector.broadcast %cst_82 : f32 to vector<1x8x16xf32>
    %217 = arith.mulf %215, %216 : vector<1x8x16xf32>
    %cst_83 = arith.constant dense<0xFF800000> : vector<1x8xf32>
    %218 = vector.multi_reduction <maximumf>, %217, %cst_83 [2] : vector<1x8x16xf32> to vector<1x8xf32>
    %219 = vector.shape_cast %218 : vector<1x8xf32> to vector<1x8x1xf32>
    %220 = vector.broadcast %219 : vector<1x8x1xf32> to vector<1x8x16xf32>
    %221 = arith.subf %217, %220 : vector<1x8x16xf32>
    %222 = math.exp %221 : vector<1x8x16xf32>
    %cst_84 = arith.constant dense<0.000000e+00> : vector<1x8xf32>
    %223 = vector.multi_reduction <add>, %222, %cst_84 [2] : vector<1x8x16xf32> to vector<1x8xf32>
    %224 = vector.shape_cast %223 : vector<1x8xf32> to vector<1x8x1xf32>
    %225 = vector.broadcast %224 : vector<1x8x1xf32> to vector<1x8x16xf32>
    %226 = arith.divf %222, %225 : vector<1x8x16xf32>
    %227 = arith.addf %201, %226 : vector<1x8x16xf32>
    %228 = arith.truncf %226 : vector<1x8x16xf32> to vector<1x8x16xbf16>
    %cst_85 = arith.constant dense<0.000000e+00> : vector<1x8x32xf32>
    %229 = tpu.matmul %228, %214, %cst_85 {dimension_numbers = #tpu.dot_dimension_numbers<[2], [1], [1], [2], [0, 0, 0, 1, 1, 2], [0], [0]>} : vector<1x8x16xbf16>, vector<1x16x32xbf16>, vector<1x8x32xf32> -> vector<1x8x32xf32>
    %230 = vector.shape_cast %229 : vector<1x8x32xf32> to vector<8x32xf32>
    %231 = arith.truncf %230 : vector<8x32xf32> to vector<8x32xbf16>
    %232 = vector.extract_strided_slice %173 {offsets = [32, 0], sizes = [32, 128], strides = [1, 1]} : vector<128x128xbf16> to vector<32x128xbf16>
    %cst_86 = arith.constant dense<0.000000e+00> : vector<8x128xf32>
    %233 = tpu.matmul %231, %232, %cst_86 {dimension_numbers = #tpu.dot_dimension_numbers<[1], [0], [0], [1], [0, 0, 1, 1], [], []>} : vector<8x32xbf16>, vector<32x128xbf16>, vector<8x128xf32> -> vector<8x128xf32>
    %234 = arith.addf %208, %233 : vector<8x128xf32>
    %235 = vector.extract_strided_slice %176 {offsets = [0, 0, 64], sizes = [1, 8, 32], strides = [1, 1, 1]} : vector<1x8x128xf32> to vector<1x8x32xf32>
    %236 = arith.truncf %235 : vector<1x8x32xf32> to vector<1x8x32xbf16>
    %237 = vector.extract_strided_slice %177 {offsets = [0, 0, 64], sizes = [1, 16, 32], strides = [1, 1, 1]} : vector<1x16x128xf32> to vector<1x16x32xf32>
    %238 = arith.truncf %237 : vector<1x16x32xf32> to vector<1x16x32xbf16>
    %239 = vector.extract_strided_slice %178 {offsets = [0, 0, 64], sizes = [1, 16, 32], strides = [1, 1, 1]} : vector<1x16x128xf32> to vector<1x16x32xf32>
    %240 = arith.truncf %239 : vector<1x16x32xf32> to vector<1x16x32xbf16>
    %cst_87 = arith.constant dense<0.000000e+00> : vector<1x8x16xf32>
    %241 = tpu.matmul %236, %238, %cst_87 {dimension_numbers = #tpu.dot_dimension_numbers<[2], [2], [1], [1], [0, 0, 0, 1, 1, 1], [0], [0]>} : vector<1x8x32xbf16>, vector<1x16x32xbf16>, vector<1x8x16xf32> -> vector<1x8x16xf32>
    %cst_88 = arith.constant 0.176776692 : f32
    %242 = vector.broadcast %cst_88 : f32 to vector<1x8x16xf32>
    %243 = arith.mulf %241, %242 : vector<1x8x16xf32>
    %cst_89 = arith.constant dense<0xFF800000> : vector<1x8xf32>
    %244 = vector.multi_reduction <maximumf>, %243, %cst_89 [2] : vector<1x8x16xf32> to vector<1x8xf32>
    %245 = vector.shape_cast %244 : vector<1x8xf32> to vector<1x8x1xf32>
    %246 = vector.broadcast %245 : vector<1x8x1xf32> to vector<1x8x16xf32>
    %247 = arith.subf %243, %246 : vector<1x8x16xf32>
    %248 = math.exp %247 : vector<1x8x16xf32>
    %cst_90 = arith.constant dense<0.000000e+00> : vector<1x8xf32>
    %249 = vector.multi_reduction <add>, %248, %cst_90 [2] : vector<1x8x16xf32> to vector<1x8xf32>
    %250 = vector.shape_cast %249 : vector<1x8xf32> to vector<1x8x1xf32>
    %251 = vector.broadcast %250 : vector<1x8x1xf32> to vector<1x8x16xf32>
    %252 = arith.divf %248, %251 : vector<1x8x16xf32>
    %253 = arith.addf %227, %252 : vector<1x8x16xf32>
    %254 = arith.truncf %252 : vector<1x8x16xf32> to vector<1x8x16xbf16>
    %cst_91 = arith.constant dense<0.000000e+00> : vector<1x8x32xf32>
    %255 = tpu.matmul %254, %240, %cst_91 {dimension_numbers = #tpu.dot_dimension_numbers<[2], [1], [1], [2], [0, 0, 0, 1, 1, 2], [0], [0]>} : vector<1x8x16xbf16>, vector<1x16x32xbf16>, vector<1x8x32xf32> -> vector<1x8x32xf32>
    %256 = vector.shape_cast %255 : vector<1x8x32xf32> to vector<8x32xf32>
    %257 = arith.truncf %256 : vector<8x32xf32> to vector<8x32xbf16>
    %258 = vector.extract_strided_slice %173 {offsets = [64, 0], sizes = [32, 128], strides = [1, 1]} : vector<128x128xbf16> to vector<32x128xbf16>
    %cst_92 = arith.constant dense<0.000000e+00> : vector<8x128xf32>
    %259 = tpu.matmul %257, %258, %cst_92 {dimension_numbers = #tpu.dot_dimension_numbers<[1], [0], [0], [1], [0, 0, 1, 1], [], []>} : vector<8x32xbf16>, vector<32x128xbf16>, vector<8x128xf32> -> vector<8x128xf32>
    %260 = arith.addf %234, %259 : vector<8x128xf32>
    %261 = vector.extract_strided_slice %176 {offsets = [0, 0, 96], sizes = [1, 8, 32], strides = [1, 1, 1]} : vector<1x8x128xf32> to vector<1x8x32xf32>
    %262 = arith.truncf %261 : vector<1x8x32xf32> to vector<1x8x32xbf16>
    %263 = vector.extract_strided_slice %177 {offsets = [0, 0, 96], sizes = [1, 16, 32], strides = [1, 1, 1]} : vector<1x16x128xf32> to vector<1x16x32xf32>
    %264 = arith.truncf %263 : vector<1x16x32xf32> to vector<1x16x32xbf16>
    %265 = vector.extract_strided_slice %178 {offsets = [0, 0, 96], sizes = [1, 16, 32], strides = [1, 1, 1]} : vector<1x16x128xf32> to vector<1x16x32xf32>
    %266 = arith.truncf %265 : vector<1x16x32xf32> to vector<1x16x32xbf16>
    %cst_93 = arith.constant dense<0.000000e+00> : vector<1x8x16xf32>
    %267 = tpu.matmul %262, %264, %cst_93 {dimension_numbers = #tpu.dot_dimension_numbers<[2], [2], [1], [1], [0, 0, 0, 1, 1, 1], [0], [0]>} : vector<1x8x32xbf16>, vector<1x16x32xbf16>, vector<1x8x16xf32> -> vector<1x8x16xf32>
    %cst_94 = arith.constant 0.176776692 : f32
    %268 = vector.broadcast %cst_94 : f32 to vector<1x8x16xf32>
    %269 = arith.mulf %267, %268 : vector<1x8x16xf32>
    %cst_95 = arith.constant dense<0xFF800000> : vector<1x8xf32>
    %270 = vector.multi_reduction <maximumf>, %269, %cst_95 [2] : vector<1x8x16xf32> to vector<1x8xf32>
    %271 = vector.shape_cast %270 : vector<1x8xf32> to vector<1x8x1xf32>
    %272 = vector.broadcast %271 : vector<1x8x1xf32> to vector<1x8x16xf32>
    %273 = arith.subf %269, %272 : vector<1x8x16xf32>
    %274 = math.exp %273 : vector<1x8x16xf32>
    %cst_96 = arith.constant dense<0.000000e+00> : vector<1x8xf32>
    %275 = vector.multi_reduction <add>, %274, %cst_96 [2] : vector<1x8x16xf32> to vector<1x8xf32>
    %276 = vector.shape_cast %275 : vector<1x8xf32> to vector<1x8x1xf32>
    %277 = vector.broadcast %276 : vector<1x8x1xf32> to vector<1x8x16xf32>
    %278 = arith.divf %274, %277 : vector<1x8x16xf32>
    %279 = arith.addf %253, %278 : vector<1x8x16xf32>
    %280 = arith.truncf %278 : vector<1x8x16xf32> to vector<1x8x16xbf16>
    %cst_97 = arith.constant dense<0.000000e+00> : vector<1x8x32xf32>
    %281 = tpu.matmul %280, %266, %cst_97 {dimension_numbers = #tpu.dot_dimension_numbers<[2], [1], [1], [2], [0, 0, 0, 1, 1, 2], [0], [0]>} : vector<1x8x16xbf16>, vector<1x16x32xbf16>, vector<1x8x32xf32> -> vector<1x8x32xf32>
    %282 = vector.shape_cast %281 : vector<1x8x32xf32> to vector<8x32xf32>
    %283 = arith.truncf %282 : vector<8x32xf32> to vector<8x32xbf16>
    %284 = vector.extract_strided_slice %173 {offsets = [96, 0], sizes = [32, 128], strides = [1, 1]} : vector<128x128xbf16> to vector<32x128xbf16>
    %cst_98 = arith.constant dense<0.000000e+00> : vector<8x128xf32>
    %285 = tpu.matmul %283, %284, %cst_98 {dimension_numbers = #tpu.dot_dimension_numbers<[1], [0], [0], [1], [0, 0, 1, 1], [], []>} : vector<8x32xbf16>, vector<32x128xbf16>, vector<8x128xf32> -> vector<8x128xf32>
    %286 = arith.addf %260, %285 : vector<8x128xf32>
    %cst_99 = arith.constant 2.500000e-01 : f32
    %287 = vector.broadcast %cst_99 : f32 to vector<1x8x16xf32>
    %288 = arith.mulf %279, %287 : vector<1x8x16xf32>
    %289 = arith.addf %153, %286 : vector<8x128xf32>
    %c0_100 = arith.constant 0 : index
    %c0_101 = arith.constant 0 : index
    %c0_102 = arith.constant 0 : index
    %290 = vector.load %arg16[%c0_100, %c0_101, %c0_102] : memref<1x1x128xf32, #tpu.memory_space<vmem>>, vector<1x1x128xf32>
    %291 = vector.shape_cast %290 : vector<1x1x128xf32> to vector<1x128xf32>
    %c0_103 = arith.constant 0 : index
    %c0_104 = arith.constant 0 : index
    %c0_105 = arith.constant 0 : index
    %292 = vector.load %arg17[%c0_103, %c0_104, %c0_105] : memref<1x1x128xf32, #tpu.memory_space<vmem>>, vector<1x1x128xf32>
    %293 = vector.shape_cast %292 : vector<1x1x128xf32> to vector<1x128xf32>
    %cst_106 = arith.constant dense<0.000000e+00> : vector<8xf32>
    %294 = vector.multi_reduction <add>, %289, %cst_106 [1] : vector<8x128xf32> to vector<8xf32>
    %295 = vector.shape_cast %294 : vector<8xf32> to vector<8x1xf32>
    %cst_107 = arith.constant 1.280000e+02 : f32
    %296 = vector.broadcast %cst_107 : f32 to vector<8x1xf32>
    %297 = arith.divf %295, %296 : vector<8x1xf32>
    %298 = arith.mulf %289, %289 : vector<8x128xf32>
    %cst_108 = arith.constant dense<0.000000e+00> : vector<8xf32>
    %299 = vector.multi_reduction <add>, %298, %cst_108 [1] : vector<8x128xf32> to vector<8xf32>
    %300 = vector.shape_cast %299 : vector<8xf32> to vector<8x1xf32>
    %cst_109 = arith.constant 1.280000e+02 : f32
    %301 = vector.broadcast %cst_109 : f32 to vector<8x1xf32>
    %302 = arith.divf %300, %301 : vector<8x1xf32>
    %303 = arith.mulf %297, %297 : vector<8x1xf32>
    %304 = arith.subf %302, %303 : vector<8x1xf32>
    %cst_110 = arith.constant 0.000000e+00 : f32
    %305 = vector.broadcast %cst_110 : f32 to vector<8x1xf32>
    %306 = arith.maximumf %304, %305 : vector<8x1xf32>
    %307 = vector.broadcast %297 : vector<8x1xf32> to vector<8x128xf32>
    %308 = arith.subf %289, %307 : vector<8x128xf32>
    %cst_111 = arith.constant 9.99999974E-6 : f32
    %309 = vector.broadcast %cst_111 : f32 to vector<8x1xf32>
    %310 = arith.addf %306, %309 : vector<8x1xf32>
    %311 = math.rsqrt %310 : vector<8x1xf32>
    %312 = vector.broadcast %311 : vector<8x1xf32> to vector<8x128xf32>
    %313 = arith.mulf %308, %312 : vector<8x128xf32>
    %314 = vector.broadcast %291 : vector<1x128xf32> to vector<8x128xf32>
    %315 = arith.mulf %313, %314 : vector<8x128xf32>
    %316 = vector.broadcast %293 : vector<1x128xf32> to vector<8x128xf32>
    %317 = arith.addf %315, %316 : vector<8x128xf32>
    %c0_112 = arith.constant 0 : index
    %c0_113 = arith.constant 0 : index
    %c0_114 = arith.constant 0 : index
    %c0_115 = arith.constant 0 : index
    %318 = vector.load %arg27[%c0_112, %c0_113, %c0_114, %c0_115] : memref<1x1x8x16xf32, #tpu.memory_space<vmem>>, vector<1x1x8x16xf32>
    %319 = vector.shape_cast %318 : vector<1x1x8x16xf32> to vector<1x8x16xf32>
    %320 = vector.shape_cast %288 : vector<1x8x16xf32> to vector<1x1x8x16xf32>
    tpu.vector_store %arg27[%c0_112, %c0_113, %c0_114, %c0_115], %320 {strides = array<i32>} : memref<1x1x8x16xf32, #tpu.memory_space<vmem>>, vector<1x1x8x16xf32>,
    %321 = arith.truncf %317 : vector<8x128xf32> to vector<8x128xbf16>
    %c0_116 = arith.constant 0 : index
    %c0_117 = arith.constant 0 : index
    %c0_118 = arith.constant 0 : index
    %322 = vector.load %arg18[%c0_116, %c0_117, %c0_118] : memref<1x128x256xbf16, #tpu.memory_space<vmem>>, vector<1x128x256xbf16>
    %323 = vector.shape_cast %322 : vector<1x128x256xbf16> to vector<128x256xbf16>
    %cst_119 = arith.constant dense<0.000000e+00> : vector<8x256xf32>
    %324 = tpu.matmul %321, %323, %cst_119 {dimension_numbers = #tpu.dot_dimension_numbers<[1], [0], [0], [1], [0, 0, 1, 1], [], []>} : vector<8x128xbf16>, vector<128x256xbf16>, vector<8x256xf32> -> vector<8x256xf32>
    %c0_120 = arith.constant 0 : index
    %c0_121 = arith.constant 0 : index
    %c0_122 = arith.constant 0 : index
    %325 = vector.load %arg19[%c0_120, %c0_121, %c0_122] : memref<1x1x256xf32, #tpu.memory_space<vmem>>, vector<1x1x256xf32>
    %326 = vector.shape_cast %325 : vector<1x1x256xf32> to vector<1x256xf32>
    %327 = vector.broadcast %326 : vector<1x256xf32> to vector<8x256xf32>
    %328 = arith.addf %324, %327 : vector<8x256xf32>
    %cst_123 = arith.constant 0.000000e+00 : f32
    %329 = vector.broadcast %cst_123 : f32 to vector<8x256xf32>
    %330 = arith.maximumf %328, %329 : vector<8x256xf32>
    %331 = arith.truncf %330 : vector<8x256xf32> to vector<8x256xbf16>
    %c0_124 = arith.constant 0 : index
    %c0_125 = arith.constant 0 : index
    %c0_126 = arith.constant 0 : index
    %332 = vector.load %arg20[%c0_124, %c0_125, %c0_126] : memref<1x256x128xbf16, #tpu.memory_space<vmem>>, vector<1x256x128xbf16>
    %333 = vector.shape_cast %332 : vector<1x256x128xbf16> to vector<256x128xbf16>
    %cst_127 = arith.constant dense<0.000000e+00> : vector<8x128xf32>
    %334 = tpu.matmul %331, %333, %cst_127 {dimension_numbers = #tpu.dot_dimension_numbers<[1], [0], [0], [1], [0, 0, 1, 1], [], []>} : vector<8x256xbf16>, vector<256x128xbf16>, vector<8x128xf32> -> vector<8x128xf32>
    %c0_128 = arith.constant 0 : index
    %c0_129 = arith.constant 0 : index
    %c0_130 = arith.constant 0 : index
    %335 = vector.load %arg21[%c0_128, %c0_129, %c0_130] : memref<1x1x128xf32, #tpu.memory_space<vmem>>, vector<1x1x128xf32>
    %336 = vector.shape_cast %335 : vector<1x1x128xf32> to vector<1x128xf32>
    %337 = vector.broadcast %336 : vector<1x128xf32> to vector<8x128xf32>
    %338 = arith.addf %334, %337 : vector<8x128xf32>
    %339 = arith.addf %317, %338 : vector<8x128xf32>
    %c0_131 = arith.constant 0 : index
    %c0_132 = arith.constant 0 : index
    %c0_133 = arith.constant 0 : index
    %340 = vector.load %arg22[%c0_131, %c0_132, %c0_133] : memref<1x1x128xf32, #tpu.memory_space<vmem>>, vector<1x1x128xf32>
    %341 = vector.shape_cast %340 : vector<1x1x128xf32> to vector<1x128xf32>
    %c0_134 = arith.constant 0 : index
    %c0_135 = arith.constant 0 : index
    %c0_136 = arith.constant 0 : index
    %342 = vector.load %arg23[%c0_134, %c0_135, %c0_136] : memref<1x1x128xf32, #tpu.memory_space<vmem>>, vector<1x1x128xf32>
    %343 = vector.shape_cast %342 : vector<1x1x128xf32> to vector<1x128xf32>
    %cst_137 = arith.constant dense<0.000000e+00> : vector<8xf32>
    %344 = vector.multi_reduction <add>, %339, %cst_137 [1] : vector<8x128xf32> to vector<8xf32>
    %345 = vector.shape_cast %344 : vector<8xf32> to vector<8x1xf32>
    %cst_138 = arith.constant 1.280000e+02 : f32
    %346 = vector.broadcast %cst_138 : f32 to vector<8x1xf32>
    %347 = arith.divf %345, %346 : vector<8x1xf32>
    %348 = arith.mulf %339, %339 : vector<8x128xf32>
    %cst_139 = arith.constant dense<0.000000e+00> : vector<8xf32>
    %349 = vector.multi_reduction <add>, %348, %cst_139 [1] : vector<8x128xf32> to vector<8xf32>
    %350 = vector.shape_cast %349 : vector<8xf32> to vector<8x1xf32>
    %cst_140 = arith.constant 1.280000e+02 : f32
    %351 = vector.broadcast %cst_140 : f32 to vector<8x1xf32>
    %352 = arith.divf %350, %351 : vector<8x1xf32>
    %353 = arith.mulf %347, %347 : vector<8x1xf32>
    %354 = arith.subf %352, %353 : vector<8x1xf32>
    %cst_141 = arith.constant 0.000000e+00 : f32
    %355 = vector.broadcast %cst_141 : f32 to vector<8x1xf32>
    %356 = arith.maximumf %354, %355 : vector<8x1xf32>
    %357 = vector.broadcast %347 : vector<8x1xf32> to vector<8x128xf32>
    %358 = arith.subf %339, %357 : vector<8x128xf32>
    %cst_142 = arith.constant 9.99999974E-6 : f32
    %359 = vector.broadcast %cst_142 : f32 to vector<8x1xf32>
    %360 = arith.addf %356, %359 : vector<8x1xf32>
    %361 = math.rsqrt %360 : vector<8x1xf32>
    %362 = vector.broadcast %361 : vector<8x1xf32> to vector<8x128xf32>
    %363 = arith.mulf %358, %362 : vector<8x128xf32>
    %364 = vector.broadcast %341 : vector<1x128xf32> to vector<8x128xf32>
    %365 = arith.mulf %363, %364 : vector<8x128xf32>
    %366 = vector.broadcast %343 : vector<1x128xf32> to vector<8x128xf32>
    %367 = arith.addf %365, %366 : vector<8x128xf32>
    %c0_143 = arith.constant 0 : index
    %c0_144 = arith.constant 0 : index
    %368 = vector.load %arg28[%c0_143, %c0_144] : memref<8x128xf32, #tpu.memory_space<vmem>>, vector<8x128xf32>
    tpu.vector_store %arg28[%c0_143, %c0_144], %367 {strides = array<i32>} : memref<8x128xf32, #tpu.memory_space<vmem>>, vector<8x128xf32>,
    %c1_i32 = arith.constant 1 : i32
    %369 = arith.cmpi eq, %arg1, %c1_i32 : i32
    %370 = arith.extui %369 : i1 to i32
    %c0_i32_145 = arith.constant 0 : i32
    %371 = arith.cmpi ne, %370, %c0_i32_145 : i32
    scf.if %371 {
      %c0_146 = arith.constant 0 : index
      %c0_147 = arith.constant 0 : index
      %372 = vector.load %arg24[%c0_146, %c0_147] : memref<1x128xf32, #tpu.memory_space<vmem>>, vector<1x128xf32>
      %c0_148 = arith.constant 0 : index
      %c0_149 = arith.constant 0 : index
      %373 = vector.load %arg25[%c0_148, %c0_149] : memref<1x128xf32, #tpu.memory_space<vmem>>, vector<1x128xf32>
      %cst_150 = arith.constant dense<0.000000e+00> : vector<8xf32>
      %374 = vector.multi_reduction <add>, %367, %cst_150 [1] : vector<8x128xf32> to vector<8xf32>
      %375 = vector.shape_cast %374 : vector<8xf32> to vector<8x1xf32>
      %cst_151 = arith.constant 1.280000e+02 : f32
      %376 = vector.broadcast %cst_151 : f32 to vector<8x1xf32>
      %377 = arith.divf %375, %376 : vector<8x1xf32>
      %378 = arith.mulf %367, %367 : vector<8x128xf32>
      %cst_152 = arith.constant dense<0.000000e+00> : vector<8xf32>
      %379 = vector.multi_reduction <add>, %378, %cst_152 [1] : vector<8x128xf32> to vector<8xf32>
      %380 = vector.shape_cast %379 : vector<8xf32> to vector<8x1xf32>
      %cst_153 = arith.constant 1.280000e+02 : f32
      %381 = vector.broadcast %cst_153 : f32 to vector<8x1xf32>
      %382 = arith.divf %380, %381 : vector<8x1xf32>
      %383 = arith.mulf %377, %377 : vector<8x1xf32>
      %384 = arith.subf %382, %383 : vector<8x1xf32>
      %cst_154 = arith.constant 0.000000e+00 : f32
      %385 = vector.broadcast %cst_154 : f32 to vector<8x1xf32>
      %386 = arith.maximumf %384, %385 : vector<8x1xf32>
      %387 = vector.broadcast %377 : vector<8x1xf32> to vector<8x128xf32>
      %388 = arith.subf %367, %387 : vector<8x128xf32>
      %cst_155 = arith.constant 9.99999974E-6 : f32
      %389 = vector.broadcast %cst_155 : f32 to vector<8x1xf32>
      %390 = arith.addf %386, %389 : vector<8x1xf32>
      %391 = math.rsqrt %390 : vector<8x1xf32>
      %392 = vector.broadcast %391 : vector<8x1xf32> to vector<8x128xf32>
      %393 = arith.mulf %388, %392 : vector<8x128xf32>
      %394 = vector.broadcast %372 : vector<1x128xf32> to vector<8x128xf32>
      %395 = arith.mulf %393, %394 : vector<8x128xf32>
      %396 = vector.broadcast %373 : vector<1x128xf32> to vector<8x128xf32>
      %397 = arith.addf %395, %396 : vector<8x128xf32>
      %c0_156 = arith.constant 0 : index
      %c0_157 = arith.constant 0 : index
      %398 = vector.load %arg26[%c0_156, %c0_157] : memref<8x128xf32, #tpu.memory_space<vmem>>, vector<8x128xf32>
      tpu.vector_store %arg26[%c0_156, %c0_157], %397 {strides = array<i32>} : memref<8x128xf32, #tpu.memory_space<vmem>>, vector<8x128xf32>,
    } else {
    }
    return
  }
  func.func @transform_0(%arg0: i32, %arg1: i32) -> (i32, i32) {
    %c0_i32 = arith.constant 0 : i32
    %c0_i32_0 = arith.constant 0 : i32
    return %arg0, %c0_i32 : i32, i32
  }
  func.func @transform_1(%arg0: i32, %arg1: i32) -> (i32, i32) {
    %c0_i32 = arith.constant 0 : i32
    %c0_i32_0 = arith.constant 0 : i32
    return %arg0, %c0_i32 : i32, i32
  }
  func.func @transform_2(%arg0: i32, %arg1: i32) -> (i32, i32, i32) {
    %c0_i32 = arith.constant 0 : i32
    %c0_i32_0 = arith.constant 0 : i32
    %c0_i32_1 = arith.constant 0 : i32
    return %arg1, %c0_i32, %c0_i32_0 : i32, i32, i32
  }
  func.func @transform_3(%arg0: i32, %arg1: i32) -> (i32, i32, i32) {
    %c0_i32 = arith.constant 0 : i32
    %c0_i32_0 = arith.constant 0 : i32
    %c0_i32_1 = arith.constant 0 : i32
    return %arg1, %c0_i32, %c0_i32_0 : i32, i32, i32
  }
  func.func @transform_4(%arg0: i32, %arg1: i32) -> (i32, i32, i32) {
    %c0_i32 = arith.constant 0 : i32
    %c0_i32_0 = arith.constant 0 : i32
    %c0_i32_1 = arith.constant 0 : i32
    return %arg1, %c0_i32, %c0_i32_0 : i32, i32, i32
  }
  func.func @transform_5(%arg0: i32, %arg1: i32) -> (i32, i32, i32) {
    %c0_i32 = arith.constant 0 : i32
    %c0_i32_0 = arith.constant 0 : i32
    %c0_i32_1 = arith.constant 0 : i32
    return %arg1, %c0_i32, %c0_i32_0 : i32, i32, i32
  }
  func.func @transform_6(%arg0: i32, %arg1: i32) -> (i32, i32, i32) {
    %c0_i32 = arith.constant 0 : i32
    %c0_i32_0 = arith.constant 0 : i32
    %c0_i32_1 = arith.constant 0 : i32
    return %arg1, %c0_i32, %c0_i32_0 : i32, i32, i32
  }
  func.func @transform_7(%arg0: i32, %arg1: i32) -> (i32, i32, i32) {
    %c0_i32 = arith.constant 0 : i32
    %c0_i32_0 = arith.constant 0 : i32
    %c0_i32_1 = arith.constant 0 : i32
    return %arg1, %c0_i32, %c0_i32_0 : i32, i32, i32
  }
  func.func @transform_8(%arg0: i32, %arg1: i32) -> (i32, i32, i32) {
    %c0_i32 = arith.constant 0 : i32
    %c0_i32_0 = arith.constant 0 : i32
    %c0_i32_1 = arith.constant 0 : i32
    return %arg1, %c0_i32, %c0_i32_0 : i32, i32, i32
  }
  func.func @transform_9(%arg0: i32, %arg1: i32) -> (i32, i32, i32) {
    %c0_i32 = arith.constant 0 : i32
    %c0_i32_0 = arith.constant 0 : i32
    %c0_i32_1 = arith.constant 0 : i32
    return %arg1, %c0_i32, %c0_i32_0 : i32, i32, i32
  }
  func.func @transform_10(%arg0: i32, %arg1: i32) -> (i32, i32, i32) {
    %c0_i32 = arith.constant 0 : i32
    %c0_i32_0 = arith.constant 0 : i32
    %c0_i32_1 = arith.constant 0 : i32
    return %arg1, %c0_i32, %c0_i32_0 : i32, i32, i32
  }
  func.func @transform_11(%arg0: i32, %arg1: i32) -> (i32, i32, i32) {
    %c0_i32 = arith.constant 0 : i32
    %c0_i32_0 = arith.constant 0 : i32
    %c0_i32_1 = arith.constant 0 : i32
    return %arg1, %c0_i32, %c0_i32_0 : i32, i32, i32
  }
  func.func @transform_12(%arg0: i32, %arg1: i32) -> (i32, i32, i32) {
    %c0_i32 = arith.constant 0 : i32
    %c0_i32_0 = arith.constant 0 : i32
    %c0_i32_1 = arith.constant 0 : i32
    return %arg1, %c0_i32, %c0_i32_0 : i32, i32, i32
  }
  func.func @transform_13(%arg0: i32, %arg1: i32) -> (i32, i32, i32) {
    %c0_i32 = arith.constant 0 : i32
    %c0_i32_0 = arith.constant 0 : i32
    %c0_i32_1 = arith.constant 0 : i32
    return %arg1, %c0_i32, %c0_i32_0 : i32, i32, i32
  }
  func.func @transform_14(%arg0: i32, %arg1: i32) -> (i32, i32, i32) {
    %c0_i32 = arith.constant 0 : i32
    %c0_i32_0 = arith.constant 0 : i32
    %c0_i32_1 = arith.constant 0 : i32
    return %arg1, %c0_i32, %c0_i32_0 : i32, i32, i32
  }
  func.func @transform_15(%arg0: i32, %arg1: i32) -> (i32, i32, i32) {
    %c0_i32 = arith.constant 0 : i32
    %c0_i32_0 = arith.constant 0 : i32
    %c0_i32_1 = arith.constant 0 : i32
    return %arg1, %c0_i32, %c0_i32_0 : i32, i32, i32
  }
  func.func @transform_16(%arg0: i32, %arg1: i32) -> (i32, i32, i32) {
    %c0_i32 = arith.constant 0 : i32
    %c0_i32_0 = arith.constant 0 : i32
    %c0_i32_1 = arith.constant 0 : i32
    return %arg1, %c0_i32, %c0_i32_0 : i32, i32, i32
  }
  func.func @transform_17(%arg0: i32, %arg1: i32) -> (i32, i32, i32) {
    %c0_i32 = arith.constant 0 : i32
    %c0_i32_0 = arith.constant 0 : i32
    %c0_i32_1 = arith.constant 0 : i32
    return %arg1, %c0_i32, %c0_i32_0 : i32, i32, i32
  }
  func.func @transform_18(%arg0: i32, %arg1: i32) -> (i32, i32, i32) {
    %c0_i32 = arith.constant 0 : i32
    %c0_i32_0 = arith.constant 0 : i32
    %c0_i32_1 = arith.constant 0 : i32
    return %arg1, %c0_i32, %c0_i32_0 : i32, i32, i32
  }
  func.func @transform_19(%arg0: i32, %arg1: i32) -> (i32, i32, i32) {
    %c0_i32 = arith.constant 0 : i32
    %c0_i32_0 = arith.constant 0 : i32
    %c0_i32_1 = arith.constant 0 : i32
    return %arg1, %c0_i32, %c0_i32_0 : i32, i32, i32
  }
  func.func @transform_20(%arg0: i32, %arg1: i32) -> (i32, i32, i32) {
    %c0_i32 = arith.constant 0 : i32
    %c0_i32_0 = arith.constant 0 : i32
    %c0_i32_1 = arith.constant 0 : i32
    return %arg1, %c0_i32, %c0_i32_0 : i32, i32, i32
  }
  func.func @transform_21(%arg0: i32, %arg1: i32) -> (i32, i32, i32) {
    %c0_i32 = arith.constant 0 : i32
    %c0_i32_0 = arith.constant 0 : i32
    %c0_i32_1 = arith.constant 0 : i32
    return %arg1, %c0_i32, %c0_i32_0 : i32, i32, i32
  }
  func.func @transform_22(%arg0: i32, %arg1: i32) -> (i32, i32) {
    %c0_i32 = arith.constant 0 : i32
    %c0_i32_0 = arith.constant 0 : i32
    %c0_i32_1 = arith.constant 0 : i32
    return %c0_i32, %c0_i32_0 : i32, i32
  }
  func.func @transform_23(%arg0: i32, %arg1: i32) -> (i32, i32) {
    %c0_i32 = arith.constant 0 : i32
    %c0_i32_0 = arith.constant 0 : i32
    %c0_i32_1 = arith.constant 0 : i32
    return %c0_i32, %c0_i32_0 : i32, i32
  }
  func.func @transform_24(%arg0: i32, %arg1: i32) -> (i32, i32) {
    %c0_i32 = arith.constant 0 : i32
    %c0_i32_0 = arith.constant 0 : i32
    return %arg0, %c0_i32 : i32, i32
  }
  func.func @transform_25(%arg0: i32, %arg1: i32) -> (i32, i32, i32, i32) {
    %c0_i32 = arith.constant 0 : i32
    %c0_i32_0 = arith.constant 0 : i32
    %c0_i32_1 = arith.constant 0 : i32
    return %arg1, %arg0, %c0_i32, %c0_i32_0 : i32, i32, i32, i32
  }
}

</mosaic_0001>

<llo_original>
// kernel: transformer_decoder.1
$region0: #{transformer_decoder.1}
  #allocation0 [shape = 'u32[]', space=smem, size = 0x4, offset = 0x4, fixed_abs, tag = 'smem constant byte address 0x4 - core index']
  #allocation1 [shape = 'u32[144,128]{1,0:T(1,128)}', space=vmem, size = 0x12000, scoped, tag = 'internal scratch']
  #allocation2 [shape = 'f32[8,128]{1,0:T(8,128)}', space=vmem, size = 0x1000, scoped, tag = 'scratch operand']
  %s0 = inlined_call_operand.vmem [shape: f32[16,128], index: 0, kind: input, shape index: {}]
  %s1 = inlined_call_operand.vmem [shape: bf16[32,128], index: 1, kind: input, shape index: {}]
  %s2 = inlined_call_operand.hbm [shape: bf16[2,128,384], index: 2, kind: input, shape index: {}]
  %s3 = inlined_call_operand.vmem [shape: f32[2,1,384], index: 3, kind: input, shape index: {}]
  %s4 = inlined_call_operand.vmem [shape: bf16[2,128,128], index: 4, kind: input, shape index: {}]
  %s5 = inlined_call_operand.vmem [shape: f32[2,1,128], index: 5, kind: input, shape index: {}]
  %s6 = inlined_call_operand.vmem [shape: f32[2,1,128], index: 6, kind: input, shape index: {}]
  %s7 = inlined_call_operand.vmem [shape: f32[2,1,128], index: 7, kind: input, shape index: {}]
  %s8 = inlined_call_operand.hbm [shape: bf16[2,128,128], index: 8, kind: input, shape index: {}]
  %s9 = inlined_call_operand.vmem [shape: f32[2,1,128], index: 9, kind: input, shape index: {}]
  %s10 = inlined_call_operand.hbm [shape: bf16[2,128,256], index: 10, kind: input, shape index: {}]
  %s11 = inlined_call_operand.vmem [shape: f32[2,1,256], index: 11, kind: input, shape index: {}]
  %s12 = inlined_call_operand.hbm [shape: bf16[2,128,128], index: 12, kind: input, shape index: {}]
  %s13 = inlined_call_operand.vmem [shape: f32[2,1,128], index: 13, kind: input, shape index: {}]
  %s14 = inlined_call_operand.vmem [shape: f32[2,1,128], index: 14, kind: input, shape index: {}]
  %s15 = inlined_call_operand.vmem [shape: f32[2,1,128], index: 15, kind: input, shape index: {}]
  %s16 = inlined_call_operand.hbm [shape: bf16[2,128,256], index: 16, kind: input, shape index: {}]
  %s17 = inlined_call_operand.vmem [shape: f32[2,1,256], index: 17, kind: input, shape index: {}]
  %s18 = inlined_call_operand.hbm [shape: bf16[2,256,128], index: 18, kind: input, shape index: {}]
  %s19 = inlined_call_operand.vmem [shape: f32[2,1,128], index: 19, kind: input, shape index: {}]
  %s20 = inlined_call_operand.vmem [shape: f32[2,1,128], index: 20, kind: input, shape index: {}]
  %s21 = inlined_call_operand.vmem [shape: f32[2,1,128], index: 21, kind: input, shape index: {}]
  %s22 = inlined_call_operand.vmem [shape: f32[1,128], index: 22, kind: input, shape index: {}]
  %s23 = inlined_call_operand.vmem [shape: f32[1,128], index: 23, kind: input, shape index: {}]
  %s24 = inlined_call_operand.vmem [shape: f32[16,128], index: 24, kind: output, shape index: {0}]
  %s25 = inlined_call_operand.vmem [shape: f32[2,2,8,16], index: 25, kind: output, shape index: {1}]
  %26 = xla_tuple %s24, %s25
  %s27 = sld [smem:[#allocation0]]
  $region169: #{transformer_decoder.1} parent=0
    _
  %s29 = ssub.s32 1, %s27
  %s30 = scalar_select 0, %s29, %s27
  $region1: #{transformer_decoder.1} parent=0
    #allocation3 [shape = 'u8[196608]{0}', space=vmem, size = 0x30000, scoped, tag = 'input window, operand 2']
    #allocation4 [shape = 's32[2]{0}', space=sflag, size = 0x8, scoped, tag = 'scoped memory for transformer_decoder.1']
    #allocation5 [shape = 'u8[65536]{0}', space=vmem, size = 0x10000, scoped, tag = 'input window, operand 8']
    #allocation6 [shape = 's32[2]{0}', space=sflag, size = 0x8, scoped, tag = 'scoped memory for transformer_decoder.1']
    #allocation7 [shape = 'u8[131072]{0}', space=vmem, size = 0x20000, scoped, tag = 'input window, operand 10']
    #allocation8 [shape = 'u8[65536]{0}', space=vmem, size = 0x10000, scoped, tag = 'input window, operand 12']
    #allocation9 [shape = 's32[2]{0}', space=sflag, size = 0x8, scoped, tag = 'scoped memory for transformer_decoder.1']
    #allocation10 [shape = 'u8[131072]{0}', space=vmem, size = 0x20000, scoped, tag = 'input window, operand 16']
    #allocation11 [shape = 'u8[131072]{0}', space=vmem, size = 0x20000, scoped, tag = 'input window, operand 18']
    #allocation12 [shape = 's32[2]{0}', space=sflag, size = 0x8, scoped, tag = 'scoped memory for transformer_decoder.1']
    %31 = vsyncpa [#allocation4], 0
    %s32 = scalar_lea.sflag [#allocation4], 1
    %33 = vsyncpa %s32, 0
    %34 = vsyncpa [#allocation6], 0
    %s35 = scalar_lea.sflag [#allocation6], 1
    %36 = vsyncpa %s35, 0
    %37 = vsyncpa [#allocation9], 0
    %s38 = scalar_lea.sflag [#allocation9], 1
    %39 = vsyncpa %s38, 0
    %40 = vsyncpa [#allocation12], 0
    %s41 = scalar_lea.sflag [#allocation12], 1
    %42 = vsyncpa %s41, 0
    loop: start=0, step=1, limit=6
    $region2: #{transformer_decoder.1} parent=1 // loop_pre_header
      _
    $region3: #{transformer_decoder.1} parent=1 // loop_header
      %s44 = sphi 0, %s48
      %p45 = scmp.ge.s32.totalorder %s44, 6
      %s51 = sphi 0, %s63
      %s52 = sphi 0, %s59
      %s53 = sphi 0, %s51
      %s54 = sphi 0, %s52
      %s55 = sphi 0, %s53
      %s56 = sphi 0, %s54
      %s66 = sphi 0, %s68
      %s69 = sphi 0, %s66
      %s70 = sphi 0, %s69
      %s86 = sphi 0, %s70
      %s92 = sphi 0, %s94
      %s95 = sphi 0, %s92
      %s96 = sphi 0, %s95
      %s112 = sphi 0, %s96
      %s118 = sphi 0, %s120
      %s121 = sphi 0, %s118
      %s122 = sphi 0, %s121
      %s138 = sphi 0, %s122
      %s144 = sphi 0, %s146
      %s147 = sphi 0, %s144
      %s148 = sphi 0, %s147
      %s164 = sphi 0, %s148
      %s170 = sphi 0, %s172
      %s173 = sphi 0, %s170
      %s174 = sphi 0, %s173
      %s190 = sphi 0, %s174
      %s196 = sphi 0, %s198
      %s199 = sphi 0, %s196
      %s200 = sphi 0, %s199
      %s216 = sphi 0, %s200
      %s222 = sphi 0, %s224
      %s225 = sphi 0, %s222
      %s226 = sphi 0, %s225
      %s242 = sphi 0, %s226
      %s248 = sphi 0, %s250
      %s251 = sphi 0, %s248
      %s252 = sphi 0, %s251
      %s268 = sphi 0, %s252
      %s274 = sphi 0, %s276
      %s277 = sphi 0, %s274
      %s278 = sphi 0, %s277
      %s294 = sphi 0, %s278
      %s300 = sphi 0, %s302
      %s303 = sphi 0, %s300
      %s304 = sphi 0, %s303
      %s320 = sphi 0, %s304
      %s326 = sphi 0, %s328
      %s329 = sphi 0, %s326
      %s330 = sphi 0, %s329
      %s346 = sphi 0, %s330
      %s352 = sphi 0, %s354
      %s355 = sphi 0, %s352
      %s356 = sphi 0, %s355
      %s372 = sphi 0, %s356
      %s378 = sphi 0, %s380
      %s381 = sphi 0, %s378
      %s382 = sphi 0, %s381
      %s398 = sphi 0, %s382
      %s404 = sphi 0, %s406
      %s407 = sphi 0, %s404
      %s408 = sphi 0, %s407
      %s424 = sphi 0, %s408
      %s430 = sphi 0, %s432
      %s433 = sphi 0, %s430
      %s434 = sphi 0, %s433
      %s450 = sphi 0, %s434
      %s456 = sphi 0, %s458
      %s459 = sphi 0, %s456
      %s460 = sphi 0, %s459
      %s476 = sphi 0, %s460
      %s482 = sphi 0, %s484
      %s485 = sphi 0, %s482
      %s486 = sphi 0, %s485
      %s502 = sphi 0, %s486
      %s508 = sphi 0, %s510
      %s511 = sphi 0, %s508
      %s512 = sphi 0, %s511
      %s528 = sphi 0, %s512
      %s534 = sphi 0, %s536
      %s537 = sphi 0, %s534
      %s538 = sphi 0, %s537
      %s554 = sphi 0, %s538
      %s560 = sphi 0, %s562
      %s563 = sphi 0, %s560
      %s564 = sphi 0, %s563
      %s580 = sphi 0, %s564
      %s586 = sphi 0, %s588
      %s589 = sphi 0, %s586
      %s590 = sphi 0, %s589
      %s606 = sphi 0, %s590
      %s612 = sphi 0, %s614
      %s615 = sphi 0, %s612
      %s616 = sphi 0, %s615
      %s632 = sphi 0, %s616
      %s636 = sphi 0, %s636
      %s638 = sphi 0, %s636
      %s639 = sphi 0, %s638
      %s653 = sphi 0, %s639
      %s657 = sphi 0, %s657
      %s659 = sphi 0, %s657
      %s660 = sphi 0, %s659
      %s674 = sphi 0, %s660
      %s680 = sphi 0, %s682
      %s683 = sphi 0, %s680
      %s684 = sphi 0, %s683
      %s700 = sphi 0, %s684
      %s708 = sphi 0, %s710
      %s711 = sphi 0, %s708
      %s712 = sphi 0, %s711
      %s728 = sphi 0, %s712
    $region4: #{transformer_decoder.1} parent=1 // loop_header_branch
      %47 = sbr.rel (%p45) target = $region8
    $region5: #{transformer_decoder.1} parent=1 // loop_body
      %s49 = ssub.s32 %s44, 1
      %s50 = ssub.s32 %s44, 2
      %s57 = sadd.s32 1, %s52
      %p58 = scmp.ge.s32.totalorder %s57, 2
      %s59 = scalar_select %p58, 0, %s57
      %s60 = sadd.s32 1, %s51
      %s61 = scalar_select %p58, %s60, %s51
      %p62 = scmp.ge.s32.totalorder %s61, 2
      %s63 = scalar_select %p62, 0, %s61
      %s64 = ssub.s32 %s51, %s63
      %p65 = scmp.eq.s32.totalorder %s64, 0
      %s67 = sadd.s32 %s66, 1
      %s68 = scalar_select %p65, %s66, %s67
      %p71 = pneg %p65
      %p72 = scmp.eq.s32.totalorder %s44, 3
      %p73 = por %p71, %p72
      %p74 = scmp.ne.s32.totalorder %s66, %s69
      %p75 = scmp.eq.s32.totalorder %s44, 0
      %p76 = por %p74, %p75
      %p77 = scmp.ne.s32.totalorder %s66, %s69
      %p78 = scmp.eq.s32.totalorder %s49, 3
      %p79 = por %p77, %p78
      %p80 = scmp.ne.s32.totalorder %s69, %s70
      %p81 = scmp.eq.s32.totalorder %s49, 0
      %p82 = por %p80, %p81
      %p83 = scmp.ne.s32.totalorder %s69, %s70
      %p84 = scmp.eq.s32.totalorder %s50, 3
      %p85 = por %p83, %p84
      %p87 = scmp.ne.s32.totalorder %s70, %s86
      %p88 = scmp.eq.s32.totalorder %s50, 0
      %p89 = por %p87, %p88
      %s90 = ssub.s32 %s51, %s63
      %p91 = scmp.eq.s32.totalorder %s90, 0
      %s93 = sadd.s32 %s92, 1
      %s94 = scalar_select %p91, %s92, %s93
      %p97 = pneg %p91
      %p98 = scmp.eq.s32.totalorder %s44, 3
      %p99 = por %p97, %p98
      %p100 = scmp.ne.s32.totalorder %s92, %s95
      %p101 = scmp.eq.s32.totalorder %s44, 0
      %p102 = por %p100, %p101
      %p103 = scmp.ne.s32.totalorder %s92, %s95
      %p104 = scmp.eq.s32.totalorder %s49, 3
      %p105 = por %p103, %p104
      %p106 = scmp.ne.s32.totalorder %s95, %s96
      %p107 = scmp.eq.s32.totalorder %s49, 0
      %p108 = por %p106, %p107
      %p109 = scmp.ne.s32.totalorder %s95, %s96
      %p110 = scmp.eq.s32.totalorder %s50, 3
      %p111 = por %p109, %p110
      %p113 = scmp.ne.s32.totalorder %s96, %s112
      %p114 = scmp.eq.s32.totalorder %s50, 0
      %p115 = por %p113, %p114
      %s116 = ssub.s32 %s52, %s59
      %p117 = scmp.eq.s32.totalorder %s116, 0
      %s119 = sadd.s32 %s118, 1
      %s120 = scalar_select %p117, %s118, %s119
      %p123 = pneg %p117
      %p124 = scmp.eq.s32.totalorder %s44, 3
      %p125 = por %p123, %p124
      %p126 = scmp.ne.s32.totalorder %s118, %s121
      %p127 = scmp.eq.s32.totalorder %s44, 0
      %p128 = por %p126, %p127
      %p129 = scmp.ne.s32.totalorder %s118, %s121
      %p130 = scmp.eq.s32.totalorder %s49, 3
      %p131 = por %p129, %p130
      %p132 = scmp.ne.s32.totalorder %s121, %s122
      %p133 = scmp.eq.s32.totalorder %s49, 0
      %p134 = por %p132, %p133
      %p135 = scmp.ne.s32.totalorder %s121, %s122
      %p136 = scmp.eq.s32.totalorder %s50, 3
      %p137 = por %p135, %p136
      %p139 = scmp.ne.s32.totalorder %s122, %s138
      %p140 = scmp.eq.s32.totalorder %s50, 0
      %p141 = por %p139, %p140
      %s142 = ssub.s32 %s52, %s59
      %p143 = scmp.eq.s32.totalorder %s142, 0
      %s145 = sadd.s32 %s144, 1
      %s146 = scalar_select %p143, %s144, %s145
      %p149 = pneg %p143
      %p150 = scmp.eq.s32.totalorder %s44, 3
      %p151 = por %p149, %p150
      %p152 = scmp.ne.s32.totalorder %s144, %s147
      %p153 = scmp.eq.s32.totalorder %s44, 0
      %p154 = por %p152, %p153
      %p155 = scmp.ne.s32.totalorder %s144, %s147
      %p156 = scmp.eq.s32.totalorder %s49, 3
      %p157 = por %p155, %p156
      %p158 = scmp.ne.s32.totalorder %s147, %s148
      %p159 = scmp.eq.s32.totalorder %s49, 0
      %p160 = por %p158, %p159
      %p161 = scmp.ne.s32.totalorder %s147, %s148
      %p162 = scmp.eq.s32.totalorder %s50, 3
      %p163 = por %p161, %p162
      %p165 = scmp.ne.s32.totalorder %s148, %s164
      %p166 = scmp.eq.s32.totalorder %s50, 0
      %p167 = por %p165, %p166
      %s168 = ssub.s32 %s52, %s59
      %p169 = scmp.eq.s32.totalorder %s168, 0
      %s171 = sadd.s32 %s170, 1
      %s172 = scalar_select %p169, %s170, %s171
      %p175 = pneg %p169
      %p176 = scmp.eq.s32.totalorder %s44, 3
      %p177 = por %p175, %p176
      %p178 = scmp.ne.s32.totalorder %s170, %s173
      %p179 = scmp.eq.s32.totalorder %s44, 0
      %p180 = por %p178, %p179
      %p181 = scmp.ne.s32.totalorder %s170, %s173
      %p182 = scmp.eq.s32.totalorder %s49, 3
      %p183 = por %p181, %p182
      %p184 = scmp.ne.s32.totalorder %s173, %s174
      %p185 = scmp.eq.s32.totalorder %s49, 0
      %p186 = por %p184, %p185
      %p187 = scmp.ne.s32.totalorder %s173, %s174
      %p188 = scmp.eq.s32.totalorder %s50, 3
      %p189 = por %p187, %p188
      %p191 = scmp.ne.s32.totalorder %s174, %s190
      %p192 = scmp.eq.s32.totalorder %s50, 0
      %p193 = por %p191, %p192
      %s194 = ssub.s32 %s52, %s59
      %p195 = scmp.eq.s32.totalorder %s194, 0
      %s197 = sadd.s32 %s196, 1
      %s198 = scalar_select %p195, %s196, %s197
      %p201 = pneg %p195
      %p202 = scmp.eq.s32.totalorder %s44, 3
      %p203 = por %p201, %p202
      %p204 = scmp.ne.s32.totalorder %s196, %s199
      %p205 = scmp.eq.s32.totalorder %s44, 0
      %p206 = por %p204, %p205
      %p207 = scmp.ne.s32.totalorder %s196, %s199
      %p208 = scmp.eq.s32.totalorder %s49, 3
      %p209 = por %p207, %p208
      %p210 = scmp.ne.s32.totalorder %s199, %s200
      %p211 = scmp.eq.s32.totalorder %s49, 0
      %p212 = por %p210, %p211
      %p213 = scmp.ne.s32.totalorder %s199, %s200
      %p214 = scmp.eq.s32.totalorder %s50, 3
      %p215 = por %p213, %p214
      %p217 = scmp.ne.s32.totalorder %s200, %s216
      %p218 = scmp.eq.s32.totalorder %s50, 0
      %p219 = por %p217, %p218
      %s220 = ssub.s32 %s52, %s59
      %p221 = scmp.eq.s32.totalorder %s220, 0
      %s223 = sadd.s32 %s222, 1
      %s224 = scalar_select %p221, %s222, %s223
      %p227 = pneg %p221
      %p228 = scmp.eq.s32.totalorder %s44, 3
      %p229 = por %p227, %p228
      %p230 = scmp.ne.s32.totalorder %s222, %s225
      %p231 = scmp.eq.s32.totalorder %s44, 0
      %p232 = por %p230, %p231
      %p233 = scmp.ne.s32.totalorder %s222, %s225
      %p234 = scmp.eq.s32.totalorder %s49, 3
      %p235 = por %p233, %p234
      %p236 = scmp.ne.s32.totalorder %s225, %s226
      %p237 = scmp.eq.s32.totalorder %s49, 0
      %p238 = por %p236, %p237
      %p239 = scmp.ne.s32.totalorder %s225, %s226
      %p240 = scmp.eq.s32.totalorder %s50, 3
      %p241 = por %p239, %p240
      %p243 = scmp.ne.s32.totalorder %s226, %s242
      %p244 = scmp.eq.s32.totalorder %s50, 0
      %p245 = por %p243, %p244
      %s246 = ssub.s32 %s52, %s59
      %p247 = scmp.eq.s32.totalorder %s246, 0
      %s249 = sadd.s32 %s248, 1
      %s250 = scalar_select %p247, %s248, %s249
      %p253 = pneg %p247
      %p254 = scmp.eq.s32.totalorder %s44, 3
      %p255 = por %p253, %p254
      %p256 = scmp.ne.s32.totalorder %s248, %s251
      %p257 = scmp.eq.s32.totalorder %s44, 0
      %p258 = por %p256, %p257
      %p259 = scmp.ne.s32.totalorder %s248, %s251
      %p260 = scmp.eq.s32.totalorder %s49, 3
      %p261 = por %p259, %p260
      %p262 = scmp.ne.s32.totalorder %s251, %s252
      %p263 = scmp.eq.s32.totalorder %s49, 0
      %p264 = por %p262, %p263
      %p265 = scmp.ne.s32.totalorder %s251, %s252
      %p266 = scmp.eq.s32.totalorder %s50, 3
      %p267 = por %p265, %p266
      %p269 = scmp.ne.s32.totalorder %s252, %s268
      %p270 = scmp.eq.s32.totalorder %s50, 0
      %p271 = por %p269, %p270
      %s272 = ssub.s32 %s52, %s59
      %p273 = scmp.eq.s32.totalorder %s272, 0
      %s275 = sadd.s32 %s274, 1
      %s276 = scalar_select %p273, %s274, %s275
      %p279 = pneg %p273
      %p280 = scmp.eq.s32.totalorder %s44, 3
      %p281 = por %p279, %p280
      %p282 = scmp.ne.s32.totalorder %s274, %s277
      %p283 = scmp.eq.s32.totalorder %s44, 0
      %p284 = por %p282, %p283
      %p285 = scmp.ne.s32.totalorder %s274, %s277
      %p286 = scmp.eq.s32.totalorder %s49, 3
      %p287 = por %p285, %p286
      %p288 = scmp.ne.s32.totalorder %s277, %s278
      %p289 = scmp.eq.s32.totalorder %s49, 0
      %p290 = por %p288, %p289
      %p291 = scmp.ne.s32.totalorder %s277, %s278
      %p292 = scmp.eq.s32.totalorder %s50, 3
      %p293 = por %p291, %p292
      %p295 = scmp.ne.s32.totalorder %s278, %s294
      %p296 = scmp.eq.s32.totalorder %s50, 0
      %p297 = por %p295, %p296
      %s298 = ssub.s32 %s52, %s59
      %p299 = scmp.eq.s32.totalorder %s298, 0
      %s301 = sadd.s32 %s300, 1
      %s302 = scalar_select %p299, %s300, %s301
      %p305 = pneg %p299
      %p306 = scmp.eq.s32.totalorder %s44, 3
      %p307 = por %p305, %p306
      %p308 = scmp.ne.s32.totalorder %s300, %s303
      %p309 = scmp.eq.s32.totalorder %s44, 0
      %p310 = por %p308, %p309
      %p311 = scmp.ne.s32.totalorder %s300, %s303
      %p312 = scmp.eq.s32.totalorder %s49, 3
      %p313 = por %p311, %p312
      %p314 = scmp.ne.s32.totalorder %s303, %s304
      %p315 = scmp.eq.s32.totalorder %s49, 0
      %p316 = por %p314, %p315
      %p317 = scmp.ne.s32.totalorder %s303, %s304
      %p318 = scmp.eq.s32.totalorder %s50, 3
      %p319 = por %p317, %p318
      %p321 = scmp.ne.s32.totalorder %s304, %s320
      %p322 = scmp.eq.s32.totalorder %s50, 0
      %p323 = por %p321, %p322
      %s324 = ssub.s32 %s52, %s59
      %p325 = scmp.eq.s32.totalorder %s324, 0
      %s327 = sadd.s32 %s326, 1
      %s328 = scalar_select %p325, %s326, %s327
      %p331 = pneg %p325
      %p332 = scmp.eq.s32.totalorder %s44, 3
      %p333 = por %p331, %p332
      %p334 = scmp.ne.s32.totalorder %s326, %s329
      %p335 = scmp.eq.s32.totalorder %s44, 0
      %p336 = por %p334, %p335
      %p337 = scmp.ne.s32.totalorder %s326, %s329
      %p338 = scmp.eq.s32.totalorder %s49, 3
      %p339 = por %p337, %p338
      %p340 = scmp.ne.s32.totalorder %s329, %s330
      %p341 = scmp.eq.s32.totalorder %s49, 0
      %p342 = por %p340, %p341
      %p343 = scmp.ne.s32.totalorder %s329, %s330
      %p344 = scmp.eq.s32.totalorder %s50, 3
      %p345 = por %p343, %p344
      %p347 = scmp.ne.s32.totalorder %s330, %s346
      %p348 = scmp.eq.s32.totalorder %s50, 0
      %p349 = por %p347, %p348
      %s350 = ssub.s32 %s52, %s59
      %p351 = scmp.eq.s32.totalorder %s350, 0
      %s353 = sadd.s32 %s352, 1
      %s354 = scalar_select %p351, %s352, %s353
      %p357 = pneg %p351
      %p358 = scmp.eq.s32.totalorder %s44, 3
      %p359 = por %p357, %p358
      %p360 = scmp.ne.s32.totalorder %s352, %s355
      %p361 = scmp.eq.s32.totalorder %s44, 0
      %p362 = por %p360, %p361
      %p363 = scmp.ne.s32.totalorder %s352, %s355
      %p364 = scmp.eq.s32.totalorder %s49, 3
      %p365 = por %p363, %p364
      %p366 = scmp.ne.s32.totalorder %s355, %s356
      %p367 = scmp.eq.s32.totalorder %s49, 0
      %p368 = por %p366, %p367
      %p369 = scmp.ne.s32.totalorder %s355, %s356
      %p370 = scmp.eq.s32.totalorder %s50, 3
      %p371 = por %p369, %p370
      %p373 = scmp.ne.s32.totalorder %s356, %s372
      %p374 = scmp.eq.s32.totalorder %s50, 0
      %p375 = por %p373, %p374
      %s376 = ssub.s32 %s52, %s59
      %p377 = scmp.eq.s32.totalorder %s376, 0
      %s379 = sadd.s32 %s378, 1
      %s380 = scalar_select %p377, %s378, %s379
      %p383 = pneg %p377
      %p384 = scmp.eq.s32.totalorder %s44, 3
      %p385 = por %p383, %p384
      %p386 = scmp.ne.s32.totalorder %s378, %s381
      %p387 = scmp.eq.s32.totalorder %s44, 0
      %p388 = por %p386, %p387
      %p389 = scmp.ne.s32.totalorder %s378, %s381
      %p390 = scmp.eq.s32.totalorder %s49, 3
      %p391 = por %p389, %p390
      %p392 = scmp.ne.s32.totalorder %s381, %s382
      %p393 = scmp.eq.s32.totalorder %s49, 0
      %p394 = por %p392, %p393
      %p395 = scmp.ne.s32.totalorder %s381, %s382
      %p396 = scmp.eq.s32.totalorder %s50, 3
      %p397 = por %p395, %p396
      %p399 = scmp.ne.s32.totalorder %s382, %s398
      %p400 = scmp.eq.s32.totalorder %s50, 0
      %p401 = por %p399, %p400
      %s402 = ssub.s32 %s52, %s59
      %p403 = scmp.eq.s32.totalorder %s402, 0
      %s405 = sadd.s32 %s404, 1
      %s406 = scalar_select %p403, %s404, %s405
      %p409 = pneg %p403
      %p410 = scmp.eq.s32.totalorder %s44, 3
      %p411 = por %p409, %p410
      %p412 = scmp.ne.s32.totalorder %s404, %s407
      %p413 = scmp.eq.s32.totalorder %s44, 0
      %p414 = por %p412, %p413
      %p415 = scmp.ne.s32.totalorder %s404, %s407
      %p416 = scmp.eq.s32.totalorder %s49, 3
      %p417 = por %p415, %p416
      %p418 = scmp.ne.s32.totalorder %s407, %s408
      %p419 = scmp.eq.s32.totalorder %s49, 0
      %p420 = por %p418, %p419
      %p421 = scmp.ne.s32.totalorder %s407, %s408
      %p422 = scmp.eq.s32.totalorder %s50, 3
      %p423 = por %p421, %p422
      %p425 = scmp.ne.s32.totalorder %s408, %s424
      %p426 = scmp.eq.s32.totalorder %s50, 0
      %p427 = por %p425, %p426
      %s428 = ssub.s32 %s52, %s59
      %p429 = scmp.eq.s32.totalorder %s428, 0
      %s431 = sadd.s32 %s430, 1
      %s432 = scalar_select %p429, %s430, %s431
      %p435 = pneg %p429
      %p436 = scmp.eq.s32.totalorder %s44, 3
      %p437 = por %p435, %p436
      %p438 = scmp.ne.s32.totalorder %s430, %s433
      %p439 = scmp.eq.s32.totalorder %s44, 0
      %p440 = por %p438, %p439
      %p441 = scmp.ne.s32.totalorder %s430, %s433
      %p442 = scmp.eq.s32.totalorder %s49, 3
      %p443 = por %p441, %p442
      %p444 = scmp.ne.s32.totalorder %s433, %s434
      %p445 = scmp.eq.s32.totalorder %s49, 0
      %p446 = por %p444, %p445
      %p447 = scmp.ne.s32.totalorder %s433, %s434
      %p448 = scmp.eq.s32.totalorder %s50, 3
      %p449 = por %p447, %p448
      %p451 = scmp.ne.s32.totalorder %s434, %s450
      %p452 = scmp.eq.s32.totalorder %s50, 0
      %p453 = por %p451, %p452
      %s454 = ssub.s32 %s52, %s59
      %p455 = scmp.eq.s32.totalorder %s454, 0
      %s457 = sadd.s32 %s456, 1
      %s458 = scalar_select %p455, %s456, %s457
      %p461 = pneg %p455
      %p462 = scmp.eq.s32.totalorder %s44, 3
      %p463 = por %p461, %p462
      %p464 = scmp.ne.s32.totalorder %s456, %s459
      %p465 = scmp.eq.s32.totalorder %s44, 0
      %p466 = por %p464, %p465
      %p467 = scmp.ne.s32.totalorder %s456, %s459
      %p468 = scmp.eq.s32.totalorder %s49, 3
      %p469 = por %p467, %p468
      %p470 = scmp.ne.s32.totalorder %s459, %s460
      %p471 = scmp.eq.s32.totalorder %s49, 0
      %p472 = por %p470, %p471
      %p473 = scmp.ne.s32.totalorder %s459, %s460
      %p474 = scmp.eq.s32.totalorder %s50, 3
      %p475 = por %p473, %p474
      %p477 = scmp.ne.s32.totalorder %s460, %s476
      %p478 = scmp.eq.s32.totalorder %s50, 0
      %p479 = por %p477, %p478
      %s480 = ssub.s32 %s52, %s59
      %p481 = scmp.eq.s32.totalorder %s480, 0
      %s483 = sadd.s32 %s482, 1
      %s484 = scalar_select %p481, %s482, %s483
      %p487 = pneg %p481
      %p488 = scmp.eq.s32.totalorder %s44, 3
      %p489 = por %p487, %p488
      %p490 = scmp.ne.s32.totalorder %s482, %s485
      %p491 = scmp.eq.s32.totalorder %s44, 0
      %p492 = por %p490, %p491
      %p493 = scmp.ne.s32.totalorder %s482, %s485
      %p494 = scmp.eq.s32.totalorder %s49, 3
      %p495 = por %p493, %p494
      %p496 = scmp.ne.s32.totalorder %s485, %s486
      %p497 = scmp.eq.s32.totalorder %s49, 0
      %p498 = por %p496, %p497
      %p499 = scmp.ne.s32.totalorder %s485, %s486
      %p500 = scmp.eq.s32.totalorder %s50, 3
      %p501 = por %p499, %p500
      %p503 = scmp.ne.s32.totalorder %s486, %s502
      %p504 = scmp.eq.s32.totalorder %s50, 0
      %p505 = por %p503, %p504
      %s506 = ssub.s32 %s52, %s59
      %p507 = scmp.eq.s32.totalorder %s506, 0
      %s509 = sadd.s32 %s508, 1
      %s510 = scalar_select %p507, %s508, %s509
      %p513 = pneg %p507
      %p514 = scmp.eq.s32.totalorder %s44, 3
      %p515 = por %p513, %p514
      %p516 = scmp.ne.s32.totalorder %s508, %s511
      %p517 = scmp.eq.s32.totalorder %s44, 0
      %p518 = por %p516, %p517
      %p519 = scmp.ne.s32.totalorder %s508, %s511
      %p520 = scmp.eq.s32.totalorder %s49, 3
      %p521 = por %p519, %p520
      %p522 = scmp.ne.s32.totalorder %s511, %s512
      %p523 = scmp.eq.s32.totalorder %s49, 0
      %p524 = por %p522, %p523
      %p525 = scmp.ne.s32.totalorder %s511, %s512
      %p526 = scmp.eq.s32.totalorder %s50, 3
      %p527 = por %p525, %p526
      %p529 = scmp.ne.s32.totalorder %s512, %s528
      %p530 = scmp.eq.s32.totalorder %s50, 0
      %p531 = por %p529, %p530
      %s532 = ssub.s32 %s52, %s59
      %p533 = scmp.eq.s32.totalorder %s532, 0
      %s535 = sadd.s32 %s534, 1
      %s536 = scalar_select %p533, %s534, %s535
      %p539 = pneg %p533
      %p540 = scmp.eq.s32.totalorder %s44, 3
      %p541 = por %p539, %p540
      %p542 = scmp.ne.s32.totalorder %s534, %s537
      %p543 = scmp.eq.s32.totalorder %s44, 0
      %p544 = por %p542, %p543
      %p545 = scmp.ne.s32.totalorder %s534, %s537
      %p546 = scmp.eq.s32.totalorder %s49, 3
      %p547 = por %p545, %p546
      %p548 = scmp.ne.s32.totalorder %s537, %s538
      %p549 = scmp.eq.s32.totalorder %s49, 0
      %p550 = por %p548, %p549
      %p551 = scmp.ne.s32.totalorder %s537, %s538
      %p552 = scmp.eq.s32.totalorder %s50, 3
      %p553 = por %p551, %p552
      %p555 = scmp.ne.s32.totalorder %s538, %s554
      %p556 = scmp.eq.s32.totalorder %s50, 0
      %p557 = por %p555, %p556
      %s558 = ssub.s32 %s52, %s59
      %p559 = scmp.eq.s32.totalorder %s558, 0
      %s561 = sadd.s32 %s560, 1
      %s562 = scalar_select %p559, %s560, %s561
      %p565 = pneg %p559
      %p566 = scmp.eq.s32.totalorder %s44, 3
      %p567 = por %p565, %p566
      %p568 = scmp.ne.s32.totalorder %s560, %s563
      %p569 = scmp.eq.s32.totalorder %s44, 0
      %p570 = por %p568, %p569
      %p571 = scmp.ne.s32.totalorder %s560, %s563
      %p572 = scmp.eq.s32.totalorder %s49, 3
      %p573 = por %p571, %p572
      %p574 = scmp.ne.s32.totalorder %s563, %s564
      %p575 = scmp.eq.s32.totalorder %s49, 0
      %p576 = por %p574, %p575
      %p577 = scmp.ne.s32.totalorder %s563, %s564
      %p578 = scmp.eq.s32.totalorder %s50, 3
      %p579 = por %p577, %p578
      %p581 = scmp.ne.s32.totalorder %s564, %s580
      %p582 = scmp.eq.s32.totalorder %s50, 0
      %p583 = por %p581, %p582
      %s584 = ssub.s32 %s52, %s59
      %p585 = scmp.eq.s32.totalorder %s584, 0
      %s587 = sadd.s32 %s586, 1
      %s588 = scalar_select %p585, %s586, %s587
      %p591 = pneg %p585
      %p592 = scmp.eq.s32.totalorder %s44, 3
      %p593 = por %p591, %p592
      %p594 = scmp.ne.s32.totalorder %s586, %s589
      %p595 = scmp.eq.s32.totalorder %s44, 0
      %p596 = por %p594, %p595
      %p597 = scmp.ne.s32.totalorder %s586, %s589
      %p598 = scmp.eq.s32.totalorder %s49, 3
      %p599 = por %p597, %p598
      %p600 = scmp.ne.s32.totalorder %s589, %s590
      %p601 = scmp.eq.s32.totalorder %s49, 0
      %p602 = por %p600, %p601
      %p603 = scmp.ne.s32.totalorder %s589, %s590
      %p604 = scmp.eq.s32.totalorder %s50, 3
      %p605 = por %p603, %p604
      %p607 = scmp.ne.s32.totalorder %s590, %s606
      %p608 = scmp.eq.s32.totalorder %s50, 0
      %p609 = por %p607, %p608
      %s610 = ssub.s32 %s52, %s59
      %p611 = scmp.eq.s32.totalorder %s610, 0
      %s613 = sadd.s32 %s612, 1
      %s614 = scalar_select %p611, %s612, %s613
      %p617 = pneg %p611
      %p618 = scmp.eq.s32.totalorder %s44, 3
      %p619 = por %p617, %p618
      %p620 = scmp.ne.s32.totalorder %s612, %s615
      %p621 = scmp.eq.s32.totalorder %s44, 0
      %p622 = por %p620, %p621
      %p623 = scmp.ne.s32.totalorder %s612, %s615
      %p624 = scmp.eq.s32.totalorder %s49, 3
      %p625 = por %p623, %p624
      %p626 = scmp.ne.s32.totalorder %s615, %s616
      %p627 = scmp.eq.s32.totalorder %s49, 0
      %p628 = por %p626, %p627
      %p629 = scmp.ne.s32.totalorder %s615, %s616
      %p630 = scmp.eq.s32.totalorder %s50, 3
      %p631 = por %p629, %p630
      %p633 = scmp.ne.s32.totalorder %s616, %s632
      %p634 = scmp.eq.s32.totalorder %s50, 0
      %p635 = por %p633, %p634
      %s637 = sadd.s32 %s636, 1
      %p640 = scmp.eq.s32.totalorder %s44, 3
      %p641 = scmp.ne.s32.totalorder %s636, %s638
      %p642 = scmp.eq.s32.totalorder %s44, 0
      %p643 = por %p641, %p642
      %p644 = scmp.ne.s32.totalorder %s636, %s638
      %p645 = scmp.eq.s32.totalorder %s49, 3
      %p646 = por %p644, %p645
      %p647 = scmp.ne.s32.totalorder %s638, %s639
      %p648 = scmp.eq.s32.totalorder %s49, 0
      %p649 = por %p647, %p648
      %p650 = scmp.ne.s32.totalorder %s638, %s639
      %p651 = scmp.eq.s32.totalorder %s50, 3
      %p652 = por %p650, %p651
      %p654 = scmp.ne.s32.totalorder %s639, %s653
      %p655 = scmp.eq.s32.totalorder %s50, 0
      %p656 = por %p654, %p655
      %s658 = sadd.s32 %s657, 1
      %p661 = scmp.eq.s32.totalorder %s44, 3
      %p662 = scmp.ne.s32.totalorder %s657, %s659
      %p663 = scmp.eq.s32.totalorder %s44, 0
      %p664 = por %p662, %p663
      %p665 = scmp.ne.s32.totalorder %s657, %s659
      %p666 = scmp.eq.s32.totalorder %s49, 3
      %p667 = por %p665, %p666
      %p668 = scmp.ne.s32.totalorder %s659, %s660
      %p669 = scmp.eq.s32.totalorder %s49, 0
      %p670 = por %p668, %p669
      %p671 = scmp.ne.s32.totalorder %s659, %s660
      %p672 = scmp.eq.s32.totalorder %s50, 3
      %p673 = por %p671, %p672
      %p675 = scmp.ne.s32.totalorder %s660, %s674
      %p676 = scmp.eq.s32.totalorder %s50, 0
      %p677 = por %p675, %p676
      %s678 = ssub.s32 %s51, %s63
      %p679 = scmp.eq.s32.totalorder %s678, 0
      %s681 = sadd.s32 %s680, 1
      %s682 = scalar_select %p679, %s680, %s681
      %p685 = pneg %p679
      %p686 = scmp.eq.s32.totalorder %s44, 3
      %p687 = por %p685, %p686
      %p688 = scmp.ne.s32.totalorder %s680, %s683
      %p689 = scmp.eq.s32.totalorder %s44, 0
      %p690 = por %p688, %p689
      %p691 = scmp.ne.s32.totalorder %s680, %s683
      %p692 = scmp.eq.s32.totalorder %s49, 3
      %p693 = por %p691, %p692
      %p694 = scmp.ne.s32.totalorder %s683, %s684
      %p695 = scmp.eq.s32.totalorder %s49, 0
      %p696 = por %p694, %p695
      %p697 = scmp.ne.s32.totalorder %s683, %s684
      %p698 = scmp.eq.s32.totalorder %s50, 3
      %p699 = por %p697, %p698
      %p701 = scmp.ne.s32.totalorder %s684, %s700
      %p702 = scmp.eq.s32.totalorder %s50, 0
      %p703 = por %p701, %p702
      %s704 = ssub.s32 %s52, %s59
      %s705 = ssub.s32 %s51, %s63
      %s706 = sor.u32 %s704, %s705
      %p707 = scmp.eq.s32.totalorder %s706, 0
      %s709 = sadd.s32 %s708, 1
      %s710 = scalar_select %p707, %s708, %s709
      %p713 = pneg %p707
      %p714 = scmp.eq.s32.totalorder %s44, 3
      %p715 = por %p713, %p714
      %p716 = scmp.ne.s32.totalorder %s708, %s711
      %p717 = scmp.eq.s32.totalorder %s44, 0
      %p718 = por %p716, %p717
      %p719 = scmp.ne.s32.totalorder %s708, %s711
      %p720 = scmp.eq.s32.totalorder %s49, 3
      %p721 = por %p719, %p720
      %p722 = scmp.ne.s32.totalorder %s711, %s712
      %p723 = scmp.eq.s32.totalorder %s49, 0
      %p724 = por %p722, %p723
      %p725 = scmp.ne.s32.totalorder %s711, %s712
      %p726 = scmp.eq.s32.totalorder %s50, 3
      %p727 = por %p725, %p726
      %p729 = scmp.ne.s32.totalorder %s712, %s728
      %p730 = scmp.eq.s32.totalorder %s50, 0
      %p731 = por %p729, %p730
      %p732 = scmp.le.s32.totalorder 1, %s44
      %p733 = scmp.lt.s32.totalorder %s44, 5
      %p734 = pnand %p732, %p733
      %p735 = pneg %p734
      // Predicated region
      $region9: #{transformer_decoder.1} parent=5 // pred_check
        _
      $region10: #{transformer_decoder.1} parent=5 // pred_check_branch
        %737 = sbr.rel (%p734) target = $region12
      $region11: #{transformer_decoder.1} parent=5 // pred_region
        %s738 = ssub.s32 %s44, 1
        // Predicated region
        $region13: #{transformer_decoder.1} parent=11 // pred_check
          %p739 = pneg %p649
        $region14: #{transformer_decoder.1} parent=11 // pred_check_branch
          %741 = sbr.rel (%p739) target = $region16
        $region15: #{transformer_decoder.1} parent=11 // pred_region
          _
        $region16: #{transformer_decoder.1} parent=11 // pred_fallthru
          _
        // Predicated region
        $region17: #{transformer_decoder.1} parent=11 // pred_check
          %p742 = pneg %p670
        $region18: #{transformer_decoder.1} parent=11 // pred_check_branch
          %744 = sbr.rel (%p742) target = $region20
        $region19: #{transformer_decoder.1} parent=11 // pred_region
          _
        $region20: #{transformer_decoder.1} parent=11 // pred_fallthru
          _
      $region12: #{transformer_decoder.1} parent=5 // pred_fallthru
        _
      %p745 = scmp.lt.s32.totalorder %s44, 4
      // Predicated region
      $region21: #{transformer_decoder.1} parent=5 // pred_check
        %p746 = pneg %p745
      $region22: #{transformer_decoder.1} parent=5 // pred_check_branch
        %748 = sbr.rel (%p746) target = $region24
      $region23: #{transformer_decoder.1} parent=5 // pred_region
        // Predicated region
        $region25: #{transformer_decoder.1} parent=23 // pred_check
          %p749 = pneg %p76
        $region26: #{transformer_decoder.1} parent=23 // pred_check_branch
          %751 = sbr.rel (%p749) target = $region28
        $region27: #{transformer_decoder.1} parent=23 // pred_region
          %p752 = scmp.lt.s32.totalorder %s51, 1
          %s753 = scalar_select %p752, %s51, 1
          %s754 = smul.addr %s753, 8
          %s755 = scalar_lea.vmem %s0, %s754
        $region28: #{transformer_decoder.1} parent=23 // pred_fallthru
          _
        // Predicated region
        $region29: #{transformer_decoder.1} parent=23 // pred_check
          %p756 = pneg %p102
        $region30: #{transformer_decoder.1} parent=23 // pred_check_branch
          %758 = sbr.rel (%p756) target = $region32
        $region31: #{transformer_decoder.1} parent=23 // pred_region
          %s759 = smul.u32 2, %s51
          %p760 = scmp.lt.s32.totalorder %s759, 3
          %s761 = scalar_select %p760, %s759, 3
          %s762 = smul.addr %s761, 4
          %s763 = scalar_lea.vmem %s1, %s762
          %s764 = smul.u32 2, %s51
        $region32: #{transformer_decoder.1} parent=23 // pred_fallthru
          _
        // Predicated region
        $region33: #{transformer_decoder.1} parent=23 // pred_check
          %p765 = pneg %p128
        $region34: #{transformer_decoder.1} parent=23 // pred_check_branch
          %767 = sbr.rel (%p765) target = $region36
        $region35: #{transformer_decoder.1} parent=23 // pred_region
          %s768 = sand.u32 %s118, 1
          %s769 = scalar_lea.sflag [#allocation4], %s768
          %s770 = sand.u32 %s118, 1
          %s771 = smul.addr %s770, 192
          %s772 = scalar_lea.vmem [#allocation3], %s771
          %s774 = ssub.s32 3072, 3072
          %775 = vsyncadd %s769, %s774
          %s776 = smul.addr %s52, 48
          %s777 = smul.addr %s776, 64
          %s778 = scalar_lea.hbm %s2, %s777
          %s779 = sshll.u32 %s772, 4
          %s780 = int_to_ptr.vmem [resolvable:$true] %s779
          %785 = dma.hbm_to_vmem [thread:$0]  %s778, 3072, %s780, %s769, 192, 192, 12
        $region36: #{transformer_decoder.1} parent=23 // pred_fallthru
          _
        // Predicated region
        $region37: #{transformer_decoder.1} parent=23 // pred_check
          %p786 = pneg %p154
        $region38: #{transformer_decoder.1} parent=23 // pred_check_branch
          %788 = sbr.rel (%p786) target = $region40
        $region39: #{transformer_decoder.1} parent=23 // pred_region
          %p789 = scmp.lt.s32.totalorder %s52, 1
          %s790 = scalar_select %p789, %s52, 1
          %s791 = smul.addr %s790, 3
          %s792 = scalar_lea.vmem %s3, %s791
        $region40: #{transformer_decoder.1} parent=23 // pred_fallthru
          _
        // Predicated region
        $region41: #{transformer_decoder.1} parent=23 // pred_check
          %p793 = pneg %p180
        $region42: #{transformer_decoder.1} parent=23 // pred_check_branch
          %795 = sbr.rel (%p793) target = $region44
        $region43: #{transformer_decoder.1} parent=23 // pred_region
          %p796 = scmp.lt.s32.totalorder %s52, 1
          %s797 = scalar_select %p796, %s52, 1
          %s798 = smul.addr %s797, 16
          %s799 = smul.addr %s798, 4
          %s800 = scalar_lea.vmem %s4, %s799
        $region44: #{transformer_decoder.1} parent=23 // pred_fallthru
          _
        // Predicated region
        $region45: #{transformer_decoder.1} parent=23 // pred_check
          %p801 = pneg %p206
        $region46: #{transformer_decoder.1} parent=23 // pred_check_branch
          %803 = sbr.rel (%p801) target = $region48
        $region47: #{transformer_decoder.1} parent=23 // pred_region
          %p804 = scmp.lt.s32.totalorder %s52, 1
          %s805 = scalar_select %p804, %s52, 1
          %s806 = scalar_lea.vmem %s5, %s805
        $region48: #{transformer_decoder.1} parent=23 // pred_fallthru
          _
        // Predicated region
        $region49: #{transformer_decoder.1} parent=23 // pred_check
          %p807 = pneg %p232
        $region50: #{transformer_decoder.1} parent=23 // pred_check_branch
          %809 = sbr.rel (%p807) target = $region52
        $region51: #{transformer_decoder.1} parent=23 // pred_region
          %p810 = scmp.lt.s32.totalorder %s52, 1
          %s811 = scalar_select %p810, %s52, 1
          %s812 = scalar_lea.vmem %s6, %s811
        $region52: #{transformer_decoder.1} parent=23 // pred_fallthru
          _
        // Predicated region
        $region53: #{transformer_decoder.1} parent=23 // pred_check
          %p813 = pneg %p258
        $region54: #{transformer_decoder.1} parent=23 // pred_check_branch
          %815 = sbr.rel (%p813) target = $region56
        $region55: #{transformer_decoder.1} parent=23 // pred_region
          %p816 = scmp.lt.s32.totalorder %s52, 1
          %s817 = scalar_select %p816, %s52, 1
          %s818 = scalar_lea.vmem %s7, %s817
        $region56: #{transformer_decoder.1} parent=23 // pred_fallthru
          _
        // Predicated region
        $region57: #{transformer_decoder.1} parent=23 // pred_check
          %p819 = pneg %p284
        $region58: #{transformer_decoder.1} parent=23 // pred_check_branch
          %821 = sbr.rel (%p819) target = $region60
        $region59: #{transformer_decoder.1} parent=23 // pred_region
          %s822 = sand.u32 %s44, 1
          %s823 = scalar_lea.sflag [#allocation6], %s822
          %s824 = sand.u32 %s274, 1
          %s825 = smul.addr %s824, 64
          %s826 = scalar_lea.vmem [#allocation5], %s825
          %s828 = ssub.s32 1024, 1024
          %829 = vsyncadd %s823, %s828
          %s830 = smul.addr %s52, 16
          %s831 = smul.addr %s830, 64
          %s832 = scalar_lea.hbm %s8, %s831
          %s833 = sshll.u32 %s826, 4
          %s834 = int_to_ptr.vmem [resolvable:$true] %s833
          %839 = dma.hbm_to_vmem [thread:$0]  %s832, 1024, %s834, %s823, 64, 64, 4
        $region60: #{transformer_decoder.1} parent=23 // pred_fallthru
          _
        // Predicated region
        $region61: #{transformer_decoder.1} parent=23 // pred_check
          %p840 = pneg %p310
        $region62: #{transformer_decoder.1} parent=23 // pred_check_branch
          %842 = sbr.rel (%p840) target = $region64
        $region63: #{transformer_decoder.1} parent=23 // pred_region
          %p843 = scmp.lt.s32.totalorder %s52, 1
          %s844 = scalar_select %p843, %s52, 1
          %s845 = scalar_lea.vmem %s9, %s844
        $region64: #{transformer_decoder.1} parent=23 // pred_fallthru
          _
        // Predicated region
        $region65: #{transformer_decoder.1} parent=23 // pred_check
          %p846 = pneg %p336
        $region66: #{transformer_decoder.1} parent=23 // pred_check_branch
          %848 = sbr.rel (%p846) target = $region68
        $region67: #{transformer_decoder.1} parent=23 // pred_region
          %s849 = sand.u32 %s44, 1
          %s850 = scalar_lea.sflag [#allocation6], %s849
          %s851 = sand.u32 %s326, 1
          %s852 = smul.addr %s851, 128
          %s853 = scalar_lea.vmem [#allocation7], %s852
          %s855 = ssub.s32 2048, 2048
          %856 = vsyncadd %s850, %s855
          %s857 = smul.addr %s52, 32
          %s858 = smul.addr %s857, 64
          %s859 = scalar_lea.hbm %s10, %s858
          %s860 = sshll.u32 %s853, 4
          %s861 = int_to_ptr.vmem [resolvable:$true] %s860
          %866 = dma.hbm_to_vmem [thread:$0]  %s859, 2048, %s861, %s850, 128, 128, 8
        $region68: #{transformer_decoder.1} parent=23 // pred_fallthru
          _
        // Predicated region
        $region69: #{transformer_decoder.1} parent=23 // pred_check
          %p867 = pneg %p362
        $region70: #{transformer_decoder.1} parent=23 // pred_check_branch
          %869 = sbr.rel (%p867) target = $region72
        $region71: #{transformer_decoder.1} parent=23 // pred_region
          %p870 = scmp.lt.s32.totalorder %s52, 1
          %s871 = scalar_select %p870, %s52, 1
          %s872 = smul.addr %s871, 2
          %s873 = scalar_lea.vmem %s11, %s872
        $region72: #{transformer_decoder.1} parent=23 // pred_fallthru
          _
        // Predicated region
        $region73: #{transformer_decoder.1} parent=23 // pred_check
          %p874 = pneg %p388
        $region74: #{transformer_decoder.1} parent=23 // pred_check_branch
          %876 = sbr.rel (%p874) target = $region76
        $region75: #{transformer_decoder.1} parent=23 // pred_region
          %s877 = sand.u32 %s44, 1
          %s878 = scalar_lea.sflag [#allocation9], %s877
          %s879 = sand.u32 %s378, 1
          %s880 = smul.addr %s879, 64
          %s881 = scalar_lea.vmem [#allocation8], %s880
          %s883 = ssub.s32 1024, 1024
          %884 = vsyncadd %s878, %s883
          %s885 = smul.addr %s52, 16
          %s886 = smul.addr %s885, 64
          %s887 = scalar_lea.hbm %s12, %s886
          %s888 = sshll.u32 %s881, 4
          %s889 = int_to_ptr.vmem [resolvable:$true] %s888
          %894 = dma.hbm_to_vmem [thread:$0]  %s887, 1024, %s889, %s878, 64, 64, 4
        $region76: #{transformer_decoder.1} parent=23 // pred_fallthru
          _
        // Predicated region
        $region77: #{transformer_decoder.1} parent=23 // pred_check
          %p895 = pneg %p414
        $region78: #{transformer_decoder.1} parent=23 // pred_check_branch
          %897 = sbr.rel (%p895) target = $region80
        $region79: #{transformer_decoder.1} parent=23 // pred_region
          %p898 = scmp.lt.s32.totalorder %s52, 1
          %s899 = scalar_select %p898, %s52, 1
          %s900 = scalar_lea.vmem %s13, %s899
        $region80: #{transformer_decoder.1} parent=23 // pred_fallthru
          _
        // Predicated region
        $region81: #{transformer_decoder.1} parent=23 // pred_check
          %p901 = pneg %p440
        $region82: #{transformer_decoder.1} parent=23 // pred_check_branch
          %903 = sbr.rel (%p901) target = $region84
        $region83: #{transformer_decoder.1} parent=23 // pred_region
          %p904 = scmp.lt.s32.totalorder %s52, 1
          %s905 = scalar_select %p904, %s52, 1
          %s906 = scalar_lea.vmem %s14, %s905
        $region84: #{transformer_decoder.1} parent=23 // pred_fallthru
          _
        // Predicated region
        $region85: #{transformer_decoder.1} parent=23 // pred_check
          %p907 = pneg %p466
        $region86: #{transformer_decoder.1} parent=23 // pred_check_branch
          %909 = sbr.rel (%p907) target = $region88
        $region87: #{transformer_decoder.1} parent=23 // pred_region
          %p910 = scmp.lt.s32.totalorder %s52, 1
          %s911 = scalar_select %p910, %s52, 1
          %s912 = scalar_lea.vmem %s15, %s911
        $region88: #{transformer_decoder.1} parent=23 // pred_fallthru
          _
        // Predicated region
        $region89: #{transformer_decoder.1} parent=23 // pred_check
          %p913 = pneg %p492
        $region90: #{transformer_decoder.1} parent=23 // pred_check_branch
          %915 = sbr.rel (%p913) target = $region92
        $region91: #{transformer_decoder.1} parent=23 // pred_region
          %s916 = sand.u32 %s44, 1
          %s917 = scalar_lea.sflag [#allocation9], %s916
          %s918 = sand.u32 %s482, 1
          %s919 = smul.addr %s918, 128
          %s920 = scalar_lea.vmem [#allocation10], %s919
          %s922 = ssub.s32 2048, 2048
          %923 = vsyncadd %s917, %s922
          %s924 = smul.addr %s52, 32
          %s925 = smul.addr %s924, 64
          %s926 = scalar_lea.hbm %s16, %s925
          %s927 = sshll.u32 %s920, 4
          %s928 = int_to_ptr.vmem [resolvable:$true] %s927
          %933 = dma.hbm_to_vmem [thread:$0]  %s926, 2048, %s928, %s917, 128, 128, 8
        $region92: #{transformer_decoder.1} parent=23 // pred_fallthru
          _
        // Predicated region
        $region93: #{transformer_decoder.1} parent=23 // pred_check
          %p934 = pneg %p518
        $region94: #{transformer_decoder.1} parent=23 // pred_check_branch
          %936 = sbr.rel (%p934) target = $region96
        $region95: #{transformer_decoder.1} parent=23 // pred_region
          %p937 = scmp.lt.s32.totalorder %s52, 1
          %s938 = scalar_select %p937, %s52, 1
          %s939 = smul.addr %s938, 2
          %s940 = scalar_lea.vmem %s17, %s939
        $region96: #{transformer_decoder.1} parent=23 // pred_fallthru
          _
        // Predicated region
        $region97: #{transformer_decoder.1} parent=23 // pred_check
          %p941 = pneg %p544
        $region98: #{transformer_decoder.1} parent=23 // pred_check_branch
          %943 = sbr.rel (%p941) target = $region100
        $region99: #{transformer_decoder.1} parent=23 // pred_region
          %s944 = sand.u32 %s534, 1
          %s945 = scalar_lea.sflag [#allocation12], %s944
          %s946 = sand.u32 %s534, 1
          %s947 = smul.addr %s946, 128
          %s948 = scalar_lea.vmem [#allocation11], %s947
          %s950 = ssub.s32 2048, 2048
          %951 = vsyncadd %s945, %s950
          %s952 = smul.addr %s52, 32
          %s953 = smul.addr %s952, 64
          %s954 = scalar_lea.hbm %s18, %s953
          %s955 = sshll.u32 %s948, 4
          %s956 = int_to_ptr.vmem [resolvable:$true] %s955
          %961 = dma.hbm_to_vmem [thread:$0]  %s954, 2048, %s956, %s945, 64, 64, 4
        $region100: #{transformer_decoder.1} parent=23 // pred_fallthru
          _
        // Predicated region
        $region101: #{transformer_decoder.1} parent=23 // pred_check
          %p962 = pneg %p570
        $region102: #{transformer_decoder.1} parent=23 // pred_check_branch
          %964 = sbr.rel (%p962) target = $region104
        $region103: #{transformer_decoder.1} parent=23 // pred_region
          %p965 = scmp.lt.s32.totalorder %s52, 1
          %s966 = scalar_select %p965, %s52, 1
          %s967 = scalar_lea.vmem %s19, %s966
        $region104: #{transformer_decoder.1} parent=23 // pred_fallthru
          _
        // Predicated region
        $region105: #{transformer_decoder.1} parent=23 // pred_check
          %p968 = pneg %p596
        $region106: #{transformer_decoder.1} parent=23 // pred_check_branch
          %970 = sbr.rel (%p968) target = $region108
        $region107: #{transformer_decoder.1} parent=23 // pred_region
          %p971 = scmp.lt.s32.totalorder %s52, 1
          %s972 = scalar_select %p971, %s52, 1
          %s973 = scalar_lea.vmem %s20, %s972
        $region108: #{transformer_decoder.1} parent=23 // pred_fallthru
          _
        // Predicated region
        $region109: #{transformer_decoder.1} parent=23 // pred_check
          %p974 = pneg %p622
        $region110: #{transformer_decoder.1} parent=23 // pred_check_branch
          %976 = sbr.rel (%p974) target = $region112
        $region111: #{transformer_decoder.1} parent=23 // pred_region
          %p977 = scmp.lt.s32.totalorder %s52, 1
          %s978 = scalar_select %p977, %s52, 1
          %s979 = scalar_lea.vmem %s21, %s978
        $region112: #{transformer_decoder.1} parent=23 // pred_fallthru
          _
      $region24: #{transformer_decoder.1} parent=5 // pred_fallthru
        _
      %p980 = scmp.le.s32.totalorder 1, %s44
      %p981 = scmp.lt.s32.totalorder %s44, 5
      %p982 = pnand %p980, %p981
      %p983 = pneg %p982
      // Predicated region
      $region113: #{transformer_decoder.1} parent=5 // pred_check
        _
      $region114: #{transformer_decoder.1} parent=5 // pred_check_branch
        %985 = sbr.rel (%p982) target = $region116
      $region115: #{transformer_decoder.1} parent=5 // pred_region
        %s986 = ssub.s32 %s44, 1
        %s987 = sand.u32 %s121, 1
        %s988 = scalar_lea.sflag [#allocation4], %s987
        %s989 = sand.u32 %s121, 1
        %s990 = smul.addr %s989, 192
        %s991 = scalar_lea.vmem [#allocation3], %s990
        // Predicated region
        $region117: #{transformer_decoder.1} parent=115 // pred_check
          %p992 = pneg %p134
        $region118: #{transformer_decoder.1} parent=115 // pred_check_branch
          %994 = sbr.rel (%p992) target = $region120
        $region119: #{transformer_decoder.1} parent=115 // pred_region
          %995 = dma.done %s988, 3072
        $region120: #{transformer_decoder.1} parent=115 // pred_fallthru
          _
        %s996 = sand.u32 %s49, 1
        %s997 = scalar_lea.sflag [#allocation6], %s996
        %s998 = sand.u32 %s277, 1
        %s999 = smul.addr %s998, 64
        %s1000 = scalar_lea.vmem [#allocation5], %s999
        // Predicated region
        $region121: #{transformer_decoder.1} parent=115 // pred_check
          %p1001 = pneg %p290
        $region122: #{transformer_decoder.1} parent=115 // pred_check_branch
          %1003 = sbr.rel (%p1001) target = $region124
        $region123: #{transformer_decoder.1} parent=115 // pred_region
          %1004 = dma.done %s997, 1024
        $region124: #{transformer_decoder.1} parent=115 // pred_fallthru
          _
        %s1005 = sand.u32 %s49, 1
        %s1006 = scalar_lea.sflag [#allocation6], %s1005
        %s1007 = sand.u32 %s329, 1
        %s1008 = smul.addr %s1007, 128
        %s1009 = scalar_lea.vmem [#allocation7], %s1008
        // Predicated region
        $region125: #{transformer_decoder.1} parent=115 // pred_check
          %p1010 = pneg %p342
        $region126: #{transformer_decoder.1} parent=115 // pred_check_branch
          %1012 = sbr.rel (%p1010) target = $region128
        $region127: #{transformer_decoder.1} parent=115 // pred_region
          %1013 = dma.done %s1006, 2048
        $region128: #{transformer_decoder.1} parent=115 // pred_fallthru
          _
        %s1014 = sand.u32 %s49, 1
        %s1015 = scalar_lea.sflag [#allocation9], %s1014
        %s1016 = sand.u32 %s381, 1
        %s1017 = smul.addr %s1016, 64
        %s1018 = scalar_lea.vmem [#allocation8], %s1017
        // Predicated region
        $region129: #{transformer_decoder.1} parent=115 // pred_check
          %p1019 = pneg %p394
        $region130: #{transformer_decoder.1} parent=115 // pred_check_branch
          %1021 = sbr.rel (%p1019) target = $region132
        $region131: #{transformer_decoder.1} parent=115 // pred_region
          %1022 = dma.done %s1015, 1024
        $region132: #{transformer_decoder.1} parent=115 // pred_fallthru
          _
        %s1023 = sand.u32 %s49, 1
        %s1024 = scalar_lea.sflag [#allocation9], %s1023
        %s1025 = sand.u32 %s485, 1
        %s1026 = smul.addr %s1025, 128
        %s1027 = scalar_lea.vmem [#allocation10], %s1026
        // Predicated region
        $region133: #{transformer_decoder.1} parent=115 // pred_check
          %p1028 = pneg %p498
        $region134: #{transformer_decoder.1} parent=115 // pred_check_branch
          %1030 = sbr.rel (%p1028) target = $region136
        $region135: #{transformer_decoder.1} parent=115 // pred_region
          %1031 = dma.done %s1024, 2048
        $region136: #{transformer_decoder.1} parent=115 // pred_fallthru
          _
        %s1032 = sand.u32 %s537, 1
        %s1033 = scalar_lea.sflag [#allocation12], %s1032
        %s1034 = sand.u32 %s537, 1
        %s1035 = smul.addr %s1034, 128
        %s1036 = scalar_lea.vmem [#allocation11], %s1035
        // Predicated region
        $region137: #{transformer_decoder.1} parent=115 // pred_check
          %p1037 = pneg %p550
        $region138: #{transformer_decoder.1} parent=115 // pred_check_branch
          %1039 = sbr.rel (%p1037) target = $region140
        $region139: #{transformer_decoder.1} parent=115 // pred_region
          %1040 = dma.done %s1033, 2048
        $region140: #{transformer_decoder.1} parent=115 // pred_fallthru
          _
        %p1041 = scmp.lt.s32.totalorder %s53, 1
        %s1042 = scalar_select %p1041, %s53, 1
        %s1043 = smul.addr %s1042, 8
        %s1044 = scalar_lea.vmem %s0, %s1043
        %p1045 = pneg %p82
        %p1046 = pneg %p79
        %s1047 = smul.u32 2, %s53
        %p1048 = scmp.lt.s32.totalorder %s1047, 3
        %s1049 = scalar_select %p1048, %s1047, 3
        %s1050 = smul.addr %s1049, 4
        %s1051 = scalar_lea.vmem %s1, %s1050
        %p1052 = pneg %p108
        %p1053 = pneg %p105
        %s1054 = sand.u32 %s121, 1
        %s1055 = scalar_lea.sflag [#allocation4], %s1054
        %s1056 = sand.u32 %s121, 1
        %s1057 = smul.addr %s1056, 192
        %s1058 = scalar_lea.vmem [#allocation3], %s1057
        %p1059 = pneg %p134
        %p1060 = pneg %p131
        %p1061 = scmp.lt.s32.totalorder %s54, 1
        %s1062 = scalar_select %p1061, %s54, 1
        %s1063 = smul.addr %s1062, 3
        %s1064 = scalar_lea.vmem %s3, %s1063
        %p1065 = pneg %p160
        %p1066 = pneg %p157
        %p1067 = scmp.lt.s32.totalorder %s54, 1
        %s1068 = scalar_select %p1067, %s54, 1
        %s1069 = smul.addr %s1068, 16
        %s1070 = smul.addr %s1069, 4
        %s1071 = scalar_lea.vmem %s4, %s1070
        %p1072 = pneg %p186
        %p1073 = pneg %p183
        %p1074 = scmp.lt.s32.totalorder %s54, 1
        %s1075 = scalar_select %p1074, %s54, 1
        %s1076 = scalar_lea.vmem %s5, %s1075
        %p1077 = pneg %p212
        %p1078 = pneg %p209
        %p1079 = scmp.lt.s32.totalorder %s54, 1
        %s1080 = scalar_select %p1079, %s54, 1
        %s1081 = scalar_lea.vmem %s6, %s1080
        %p1082 = pneg %p238
        %p1083 = pneg %p235
        %p1084 = scmp.lt.s32.totalorder %s54, 1
        %s1085 = scalar_select %p1084, %s54, 1
        %s1086 = scalar_lea.vmem %s7, %s1085
        %p1087 = pneg %p264
        %p1088 = pneg %p261
        %s1089 = sand.u32 %s49, 1
        %s1090 = scalar_lea.sflag [#allocation6], %s1089
        %s1091 = sand.u32 %s277, 1
        %s1092 = smul.addr %s1091, 64
        %s1093 = scalar_lea.vmem [#allocation5], %s1092
        %p1094 = pneg %p290
        %p1095 = pneg %p287
        %p1096 = scmp.lt.s32.totalorder %s54, 1
        %s1097 = scalar_select %p1096, %s54, 1
        %s1098 = scalar_lea.vmem %s9, %s1097
        %p1099 = pneg %p316
        %p1100 = pneg %p313
        %s1101 = sand.u32 %s49, 1
        %s1102 = scalar_lea.sflag [#allocation6], %s1101
        %s1103 = sand.u32 %s329, 1
        %s1104 = smul.addr %s1103, 128
        %s1105 = scalar_lea.vmem [#allocation7], %s1104
        %p1106 = pneg %p342
        %p1107 = pneg %p339
        %p1108 = scmp.lt.s32.totalorder %s54, 1
        %s1109 = scalar_select %p1108, %s54, 1
        %s1110 = smul.addr %s1109, 2
        %s1111 = scalar_lea.vmem %s11, %s1110
        %p1112 = pneg %p368
        %p1113 = pneg %p365
        %s1114 = sand.u32 %s49, 1
        %s1115 = scalar_lea.sflag [#allocation9], %s1114
        %s1116 = sand.u32 %s381, 1
        %s1117 = smul.addr %s1116, 64
        %s1118 = scalar_lea.vmem [#allocation8], %s1117
        %p1119 = pneg %p394
        %p1120 = pneg %p391
        %p1121 = scmp.lt.s32.totalorder %s54, 1
        %s1122 = scalar_select %p1121, %s54, 1
        %s1123 = scalar_lea.vmem %s13, %s1122
        %p1124 = pneg %p420
        %p1125 = pneg %p417
        %p1126 = scmp.lt.s32.totalorder %s54, 1
        %s1127 = scalar_select %p1126, %s54, 1
        %s1128 = scalar_lea.vmem %s14, %s1127
        %p1129 = pneg %p446
        %p1130 = pneg %p443
        %p1131 = scmp.lt.s32.totalorder %s54, 1
        %s1132 = scalar_select %p1131, %s54, 1
        %s1133 = scalar_lea.vmem %s15, %s1132
        %p1134 = pneg %p472
        %p1135 = pneg %p469
        %s1136 = sand.u32 %s49, 1
        %s1137 = scalar_lea.sflag [#allocation9], %s1136
        %s1138 = sand.u32 %s485, 1
        %s1139 = smul.addr %s1138, 128
        %s1140 = scalar_lea.vmem [#allocation10], %s1139
        %p1141 = pneg %p498
        %p1142 = pneg %p495
        %p1143 = scmp.lt.s32.totalorder %s54, 1
        %s1144 = scalar_select %p1143, %s54, 1
        %s1145 = smul.addr %s1144, 2
        %s1146 = scalar_lea.vmem %s17, %s1145
        %p1147 = pneg %p524
        %p1148 = pneg %p521
        %s1149 = sand.u32 %s537, 1
        %s1150 = scalar_lea.sflag [#allocation12], %s1149
        %s1151 = sand.u32 %s537, 1
        %s1152 = smul.addr %s1151, 128
        %s1153 = scalar_lea.vmem [#allocation11], %s1152
        %p1154 = pneg %p550
        %p1155 = pneg %p547
        %p1156 = scmp.lt.s32.totalorder %s54, 1
        %s1157 = scalar_select %p1156, %s54, 1
        %s1158 = scalar_lea.vmem %s19, %s1157
        %p1159 = pneg %p576
        %p1160 = pneg %p573
        %p1161 = scmp.lt.s32.totalorder %s54, 1
        %s1162 = scalar_select %p1161, %s54, 1
        %s1163 = scalar_lea.vmem %s20, %s1162
        %p1164 = pneg %p602
        %p1165 = pneg %p599
        %p1166 = scmp.lt.s32.totalorder %s54, 1
        %s1167 = scalar_select %p1166, %s54, 1
        %s1168 = scalar_lea.vmem %s21, %s1167
        %p1169 = pneg %p628
        %p1170 = pneg %p625
        %p1171 = pneg %p649
        %p1172 = pneg %p646
        %p1173 = pneg %p670
        %p1174 = pneg %p667
        %p1175 = pneg %p696
        %p1176 = pneg %p693
        %p1177 = scmp.lt.s32.totalorder %s53, 1
        %s1178 = scalar_select %p1177, %s53, 1
        %s1179 = smul.addr %s1178, 8
        %s1180 = scalar_lea.vmem %s24, %s1179
        %p1181 = pneg %p724
        %p1182 = pneg %p721
        %p1183 = scmp.lt.s32.totalorder %s54, 1
        %s1184 = scalar_select %p1183, %s54, 1
        %p1185 = scmp.lt.s32.totalorder %s53, 1
        %s1186 = scalar_select %p1185, %s53, 1
        %s1187 = smul.addr %s1184, 2
        %s1188 = sadd.s32 %s1186, %s1187
        %s1189 = smul.addr %s1188, 8
        %s1190 = scalar_lea.vmem %s25, %s1189
        %p1191 = scmp.lt.s32.totalorder %s53, 1
        %s1192 = scalar_select %p1191, %s53, 1
        %s1193 = smul.addr %s1192, 8
        %s1194 = scalar_lea.vmem %s0, %s1193
        %s1195 = smul.u32 2, %s53
        %p1196 = scmp.lt.s32.totalorder %s1195, 3
        %s1197 = scalar_select %p1196, %s1195, 3
        %s1198 = smul.addr %s1197, 4
        %s1199 = scalar_lea.vmem %s1, %s1198
        %s1200 = smul.u32 2, %s53
        %p1201 = scmp.lt.s32.totalorder %s54, 1
        %s1202 = scalar_select %p1201, %s54, 1
        %s1203 = smul.addr %s1202, 3
        %s1204 = scalar_lea.vmem %s3, %s1203
        %p1205 = scmp.lt.s32.totalorder %s54, 1
        %s1206 = scalar_select %p1205, %s54, 1
        %s1207 = smul.addr %s1206, 16
        %s1208 = smul.addr %s1207, 4
        %s1209 = scalar_lea.vmem %s4, %s1208
        %p1210 = scmp.lt.s32.totalorder %s54, 1
        %s1211 = scalar_select %p1210, %s54, 1
        %s1212 = scalar_lea.vmem %s5, %s1211
        %p1213 = scmp.lt.s32.totalorder %s54, 1
        %s1214 = scalar_select %p1213, %s54, 1
        %s1215 = scalar_lea.vmem %s6, %s1214
        %p1216 = scmp.lt.s32.totalorder %s54, 1
        %s1217 = scalar_select %p1216, %s54, 1
        %s1218 = scalar_lea.vmem %s7, %s1217
        %p1219 = scmp.lt.s32.totalorder %s54, 1
        %s1220 = scalar_select %p1219, %s54, 1
        %s1221 = scalar_lea.vmem %s9, %s1220
        %p1222 = scmp.lt.s32.totalorder %s54, 1
        %s1223 = scalar_select %p1222, %s54, 1
        %s1224 = smul.addr %s1223, 2
        %s1225 = scalar_lea.vmem %s11, %s1224
        %p1226 = scmp.lt.s32.totalorder %s54, 1
        %s1227 = scalar_select %p1226, %s54, 1
        %s1228 = scalar_lea.vmem %s13, %s1227
        %p1229 = scmp.lt.s32.totalorder %s54, 1
        %s1230 = scalar_select %p1229, %s54, 1
        %s1231 = scalar_lea.vmem %s14, %s1230
        %p1232 = scmp.lt.s32.totalorder %s54, 1
        %s1233 = scalar_select %p1232, %s54, 1
        %s1234 = scalar_lea.vmem %s15, %s1233
        %p1235 = scmp.lt.s32.totalorder %s54, 1
        %s1236 = scalar_select %p1235, %s54, 1
        %s1237 = smul.addr %s1236, 2
        %s1238 = scalar_lea.vmem %s17, %s1237
        %p1239 = scmp.lt.s32.totalorder %s54, 1
        %s1240 = scalar_select %p1239, %s54, 1
        %s1241 = scalar_lea.vmem %s19, %s1240
        %p1242 = scmp.lt.s32.totalorder %s54, 1
        %s1243 = scalar_select %p1242, %s54, 1
        %s1244 = scalar_lea.vmem %s20, %s1243
        %p1245 = scmp.lt.s32.totalorder %s54, 1
        %s1246 = scalar_select %p1245, %s54, 1
        %s1247 = scalar_lea.vmem %s21, %s1246
        %p1248 = scmp.lt.s32.totalorder %s53, 1
        %s1249 = scalar_select %p1248, %s53, 1
        %s1250 = smul.addr %s1249, 8
        %s1251 = scalar_lea.vmem %s24, %s1250
        %p1252 = scmp.lt.s32.totalorder %s54, 1
        %s1253 = scalar_select %p1252, %s54, 1
        %p1254 = scmp.lt.s32.totalorder %s53, 1
        %s1255 = scalar_select %p1254, %s53, 1
        %s1256 = smul.addr %s1253, 2
        %s1257 = sadd.s32 %s1255, %s1256
        %s1258 = smul.addr %s1257, 8
        %s1259 = scalar_lea.vmem %s25, %s1258
        %p1261 = scmp.eq.s32.totalorder %s54, 0
        // Predicated region
        $region141: #{transformer_decoder.1} parent=115 // pred_check
          %p1262 = pneg %p1261
        $region142: #{transformer_decoder.1} parent=115 // pred_check_branch
          %1264 = sbr.rel (%p1262) target = $region144
        $region143: #{transformer_decoder.1} parent=115 // pred_region
          %v1265 = vld [vmem:[%s1194] sm:$0xff]
          %1266 = vst [vmem:[#allocation2] sm:$0xff] %v1265
        $region144: #{transformer_decoder.1} parent=115 // pred_fallthru
          _
        %v1267 = vld [vmem:[#allocation2] sm:$0xff]
        %v1268 = vpack.c.bf16 %v1267, %v1267
        %v1269 = vld [vmem:[%s991] sm:$0xff]
        %v1270 = vld [vmem:[%s991 + $0x8] sm:$0xf]
        %v1271 = vld [vmem:[%s991 + $0xc] sm:$0xff]
        %v1272 = vld [vmem:[%s991 + $0x14] sm:$0xf]
        %v1273 = vld [vmem:[%s991 + $0x18] sm:$0xff]
        %v1274 = vld [vmem:[%s991 + $0x20] sm:$0xf]
        %v1275 = vld [vmem:[%s991 + $0x24] sm:$0xff]
        %v1276 = vld [vmem:[%s991 + $0x2c] sm:$0xf]
        %v1277 = vld [vmem:[%s991 + $0x30] sm:$0xff]
        %v1278 = vld [vmem:[%s991 + $0x38] sm:$0xf]
        %v1279 = vld [vmem:[%s991 + $0x3c] sm:$0xff]
        %v1280 = vld [vmem:[%s991 + $0x44] sm:$0xf]
        %v1281 = vld [vmem:[%s991 + $0x48] sm:$0xff]
        %v1282 = vld [vmem:[%s991 + $0x50] sm:$0xf]
        %v1283 = vld [vmem:[%s991 + $0x54] sm:$0xff]
        %v1284 = vld [vmem:[%s991 + $0x5c] sm:$0xf]
        %v1285 = vld [vmem:[%s991 + $0x60] sm:$0xff]
        %v1286 = vld [vmem:[%s991 + $0x68] sm:$0xf]
        %v1287 = vld [vmem:[%s991 + $0x6c] sm:$0xff]
        %v1288 = vld [vmem:[%s991 + $0x74] sm:$0xf]
        %v1289 = vld [vmem:[%s991 + $0x78] sm:$0xff]
        %v1290 = vld [vmem:[%s991 + $0x80] sm:$0xf]
        %v1291 = vld [vmem:[%s991 + $0x84] sm:$0xff]
        %v1292 = vld [vmem:[%s991 + $0x8c] sm:$0xf]
        %v1293 = vld [vmem:[%s991 + $0x90] sm:$0xff]
        %v1294 = vld [vmem:[%s991 + $0x98] sm:$0xf]
        %v1295 = vld [vmem:[%s991 + $0x9c] sm:$0xff]
        %v1296 = vld [vmem:[%s991 + $0xa4] sm:$0xf]
        %v1297 = vld [vmem:[%s991 + $0xa8] sm:$0xff]
        %v1298 = vld [vmem:[%s991 + $0xb0] sm:$0xf]
        %v1299 = vld [vmem:[%s991 + $0xb4] sm:$0xff]
        %v1300 = vld [vmem:[%s991 + $0xbc] sm:$0xf]
        %v1301 = vld [vmem:[%s1204] sm:$0x7]
        %v1303 = vlaneseq
        %v1304 = vshrl.u32 %v1303, 7
        %v1305 = vsub.s32 0, %v1304
        %v1306 = vrot.slane %v1301, %v1305
        %v1307 = vlaneseq
        %v1308 = vshrl.u32 %v1307, 7
        %v1309 = vsub.s32 1, %v1308
        %v1310 = vrot.slane %v1301, %v1309
        %v1311 = vlaneseq
        %v1312 = vshrl.u32 %v1311, 7
        %v1313 = vsub.s32 2, %v1312
        %v1314 = vrot.slane %v1301, %v1313
        %v1350 = vunpack.c.l.b16 %v1269
        %v1351 = vunpack.c.h.b16 %v1269
        %v1352 = vunpack.c.l.b16 %v1270
        %v1353 = vunpack.c.l.b16 %v1271
        %v1354 = vunpack.c.h.b16 %v1271
        %v1355 = vunpack.c.l.b16 %v1272
        %v1356 = vunpack.c.l.b16 %v1273
        %v1357 = vunpack.c.h.b16 %v1273
        %v1358 = vunpack.c.l.b16 %v1274
        %v1359 = vunpack.c.l.b16 %v1275
        %v1360 = vunpack.c.h.b16 %v1275
        %v1361 = vunpack.c.l.b16 %v1276
        %v1362 = vunpack.c.l.b16 %v1277
        %v1363 = vunpack.c.h.b16 %v1277
        %v1364 = vunpack.c.l.b16 %v1278
        %v1365 = vunpack.c.l.b16 %v1279
        %v1366 = vunpack.c.h.b16 %v1279
        %v1367 = vunpack.c.l.b16 %v1280
        %v1368 = vunpack.c.l.b16 %v1281
        %v1369 = vunpack.c.h.b16 %v1281
        %v1370 = vunpack.c.l.b16 %v1282
        %v1371 = vunpack.c.l.b16 %v1283
        %v1372 = vunpack.c.h.b16 %v1283
        %v1373 = vunpack.c.l.b16 %v1284
        %v1374 = vunpack.c.l.b16 %v1285
        %v1375 = vunpack.c.h.b16 %v1285
        %v1376 = vunpack.c.l.b16 %v1286
        %v1377 = vunpack.c.l.b16 %v1287
        %v1378 = vunpack.c.h.b16 %v1287
        %v1379 = vunpack.c.l.b16 %v1288
        %v1380 = vunpack.c.l.b16 %v1289
        %v1381 = vunpack.c.h.b16 %v1289
        %v1382 = vunpack.c.l.b16 %v1290
        %v1383 = vunpack.c.l.b16 %v1291
        %v1384 = vunpack.c.h.b16 %v1291
        %v1385 = vunpack.c.l.b16 %v1292
        %v1386 = vunpack.c.l.b16 %v1293
        %v1387 = vunpack.c.h.b16 %v1293
        %v1388 = vunpack.c.l.b16 %v1294
        %v1389 = vunpack.c.l.b16 %v1295
        %v1390 = vunpack.c.h.b16 %v1295
        %v1391 = vunpack.c.l.b16 %v1296
        %v1392 = vunpack.c.l.b16 %v1297
        %v1393 = vunpack.c.h.b16 %v1297
        %v1394 = vunpack.c.l.b16 %v1298
        %v1395 = vunpack.c.l.b16 %v1299
        %v1396 = vunpack.c.h.b16 %v1299
        %v1397 = vunpack.c.l.b16 %v1300
        %v1398 = vpack.c.b16 %v1353, %v1350
        %v1399 = vpack.c.b16 %v1354, %v1351
        %v1400 = vpack.c.b16 %v1355, %v1352
        %v1401 = vpack.c.b16 %v1359, %v1356
        %v1402 = vpack.c.b16 %v1360, %v1357
        %v1403 = vpack.c.b16 %v1361, %v1358
        %v1404 = vpack.c.b16 %v1365, %v1362
        %v1405 = vpack.c.b16 %v1366, %v1363
        %v1406 = vpack.c.b16 %v1367, %v1364
        %v1407 = vpack.c.b16 %v1371, %v1368
        %v1408 = vpack.c.b16 %v1372, %v1369
        %v1409 = vpack.c.b16 %v1373, %v1370
        %v1410 = vpack.c.b16 %v1377, %v1374
        %v1411 = vpack.c.b16 %v1378, %v1375
        %v1412 = vpack.c.b16 %v1379, %v1376
        %v1413 = vpack.c.b16 %v1383, %v1380
        %v1414 = vpack.c.b16 %v1384, %v1381
        %v1415 = vpack.c.b16 %v1385, %v1382
        %v1416 = vpack.c.b16 %v1389, %v1386
        %v1417 = vpack.c.b16 %v1390, %v1387
        %v1418 = vpack.c.b16 %v1391, %v1388
        %v1419 = vpack.c.b16 %v1395, %v1392
        %v1420 = vpack.c.b16 %v1396, %v1393
        %v1421 = vpack.c.b16 %v1397, %v1394
        %1446 = vmatprep.subr.bf16.mxu0 %v1399
        %1447 = vmatpush1.bf16.msra.mxu0 %v1398
        %1448 = vmatprep.subr.bf16.mxu0 %v1402
        %1449 = vmatpush1.bf16.msra.mxu0 %v1401
        %1450 = vmatprep.subr.bf16.mxu0 %v1405
        %1451 = vmatpush1.bf16.msra.mxu0 %v1404
        %1452 = vmatprep.subr.bf16.mxu0 %v1408
        %1453 = vmatpush1.bf16.msra.mxu0 %v1407
        %1454 = vmatprep.subr.bf16.mxu0 %v1411
        %1455 = vmatpush1.bf16.msra.mxu0 %v1410
        %1456 = vmatprep.subr.bf16.mxu0 %v1414
        %1457 = vmatpush1.bf16.msra.mxu0 %v1413
        %1458 = vmatprep.subr.bf16.mxu0 %v1417
        %1459 = vmatpush1.bf16.msra.mxu0 %v1416
        %1460 = vmatprep.subr.bf16.mxu0 %v1420
        %1461 = vmatpush1.bf16.msra.mxu0 %v1419
        %1462 = vmatprep.subr.bf16.mxu0 0
        %1463 = vmatpush1.bf16.msra.mxu0 0
        %1464 = vmatprep.subr.bf16.mxu0 0
        %1465 = vmatpush1.bf16.msra.mxu0 0
        %1466 = vmatprep.subr.bf16.mxu0 0
        %1467 = vmatpush1.bf16.msra.mxu0 0
        %1468 = vmatprep.subr.bf16.mxu0 0
        %1469 = vmatpush1.bf16.msra.mxu0 0
        %1470 = vmatprep.subr.bf16.mxu0 0
        %1471 = vmatpush1.bf16.msra.mxu0 0
        %1472 = vmatprep.subr.bf16.mxu0 0
        %1473 = vmatpush1.bf16.msra.mxu0 0
        %1474 = vmatprep.subr.bf16.mxu0 0
        %1475 = vmatpush1.bf16.msra.mxu0 0
        %1476 = vmatprep.subr.bf16.mxu0 0
        %1477 = vmatpush1.bf16.msra.mxu0 0
        %1478 = vmatprep.mubr.bf16.mxu0 0
        %1479 = vmatmul.mubr.bf16.gmra.mrb[0].mxu0 %v1268
        %v1480 = vpop.f32.mrb[0].mxu0
        %v1481 = vadd.f32 %v1306, %v1480
        %v1482 = vpop.f32.mrb[0].mxu0
        %v1483 = vadd.f32 %v1310, %v1482
        %v1484 = vpop.f32.mrb[0].mxu0
        %v1485 = vpop.f32.mrb[0].mxu0
        %1486 = vdwg.mxu0
        %1487 = vmatprep.subr.bf16.mxu0 0
        %1488 = vmatpush1.bf16.msra.mxu0 %v1400
        %1489 = vmatprep.subr.bf16.mxu0 0
        %1490 = vmatpush1.bf16.msra.mxu0 %v1403
        %1491 = vmatprep.subr.bf16.mxu0 0
        %1492 = vmatpush1.bf16.msra.mxu0 %v1406
        %1493 = vmatprep.subr.bf16.mxu0 0
        %1494 = vmatpush1.bf16.msra.mxu0 %v1409
        %1495 = vmatprep.subr.bf16.mxu0 0
        %1496 = vmatpush1.bf16.msra.mxu0 %v1412
        %1497 = vmatprep.subr.bf16.mxu0 0
        %1498 = vmatpush1.bf16.msra.mxu0 %v1415
        %1499 = vmatprep.subr.bf16.mxu0 0
        %1500 = vmatpush1.bf16.msra.mxu0 %v1418
        %1501 = vmatprep.subr.bf16.mxu0 0
        %1502 = vmatpush1.bf16.msra.mxu0 %v1421
        %1503 = vmatprep.subr.bf16.mxu0 0
        %1504 = vmatpush1.bf16.msra.mxu0 0
        %1505 = vmatprep.subr.bf16.mxu0 0
        %1506 = vmatpush1.bf16.msra.mxu0 0
        %1507 = vmatprep.subr.bf16.mxu0 0
        %1508 = vmatpush1.bf16.msra.mxu0 0
        %1509 = vmatprep.subr.bf16.mxu0 0
        %1510 = vmatpush1.bf16.msra.mxu0 0
        %1511 = vmatprep.subr.bf16.mxu0 0
        %1512 = vmatpush1.bf16.msra.mxu0 0
        %1513 = vmatprep.subr.bf16.mxu0 0
        %1514 = vmatpush1.bf16.msra.mxu0 0
        %1515 = vmatprep.subr.bf16.mxu0 0
        %1516 = vmatpush1.bf16.msra.mxu0 0
        %1517 = vmatprep.subr.bf16.mxu0 0
        %1518 = vmatpush1.bf16.msra.mxu0 0
        %1519 = vmatprep.mubr.bf16.mxu0 0
        %1520 = vmatmul.mubr.bf16.gmra.mrb[0].mxu0 %v1268
        %v1521 = vpop.f32.mrb[0].mxu0
        %v1522 = vadd.f32 %v1314, %v1521
        %v1523 = vpop.f32.mrb[0].mxu0
        %v1524 = vpop.f32.mrb[0].mxu0
        %v1525 = vpop.f32.mrb[0].mxu0
        %1526 = vdwg.mxu0
        %v1527 = vld [vmem:[%s1209] sm:$0xf]
        %v1528 = vld [vmem:[%s1209 + $0x4] sm:$0xf]
        %v1529 = vld [vmem:[%s1209 + $0x8] sm:$0xf]
        %v1530 = vld [vmem:[%s1209 + $0xc] sm:$0xf]
        %v1531 = vld [vmem:[%s1209 + $0x10] sm:$0xf]
        %v1532 = vld [vmem:[%s1209 + $0x14] sm:$0xf]
        %v1533 = vld [vmem:[%s1209 + $0x18] sm:$0xf]
        %v1534 = vld [vmem:[%s1209 + $0x1c] sm:$0xf]
        %v1535 = vld [vmem:[%s1209 + $0x20] sm:$0xf]
        %v1536 = vld [vmem:[%s1209 + $0x24] sm:$0xf]
        %v1537 = vld [vmem:[%s1209 + $0x28] sm:$0xf]
        %v1538 = vld [vmem:[%s1209 + $0x2c] sm:$0xf]
        %v1539 = vld [vmem:[%s1209 + $0x30] sm:$0xf]
        %v1540 = vld [vmem:[%s1209 + $0x34] sm:$0xf]
        %v1541 = vld [vmem:[%s1209 + $0x38] sm:$0xf]
        %v1542 = vld [vmem:[%s1209 + $0x3c] sm:$0xf]
        %v1543 = vld [vmem:[%s1212] sm:$0x1]
        %v1545 = vlaneseq
        %v1546 = vshrl.u32 %v1545, 7
        %v1547 = vsub.s32 0, %v1546
        %v1548 = vrot.slane %v1543, %v1547
        %v1550 = vadd.f32 %v1548, 0.0
        %v1551 = vpack.c.bf16 %v1481, %v1481
        %v1552 = vpack.c.bf16 %v1483, %v1483
        %v1553 = vpack.c.bf16 %v1522, %v1522
        %vm1554 = vcmask 261120
        %v1556 = vsel %vm1554, %v1551, 0
        %v1559 = vsel %vm1554, %v1552, 0
        %1561 = vmatprep.subr.bf16.mxu0 0
        %1562 = vmatpush1.bf16.xpose.msra.mxu0 %v1559
        %1563 = vmatprep.subr.bf16.mxu0 0
        %1564 = vmatpush1.bf16.xpose.msra.mxu0 0
        %1565 = vmatprep.subr.bf16.mxu0 0
        %1566 = vmatpush1.bf16.xpose.msra.mxu0 0
        %1567 = vmatprep.subr.bf16.mxu0 0
        %1568 = vmatpush1.bf16.xpose.msra.mxu0 0
        %1569 = vmatprep.subr.bf16.mxu0 0
        %1570 = vmatpush1.bf16.xpose.msra.mxu0 0
        %1571 = vmatprep.subr.bf16.mxu0 0
        %1572 = vmatpush1.bf16.xpose.msra.mxu0 0
        %1573 = vmatprep.subr.bf16.mxu0 0
        %1574 = vmatpush1.bf16.xpose.msra.mxu0 0
        %1575 = vmatprep.subr.bf16.mxu0 0
        %1576 = vmatpush1.bf16.xpose.msra.mxu0 0
        %1577 = vmatprep.subr.bf16.mxu0 0
        %1578 = vmatpush1.bf16.xpose.msra.mxu0 0
        %1579 = vmatprep.subr.bf16.mxu0 0
        %1580 = vmatpush1.bf16.xpose.msra.mxu0 0
        %1581 = vmatprep.subr.bf16.mxu0 0
        %1582 = vmatpush1.bf16.xpose.msra.mxu0 0
        %1583 = vmatprep.subr.bf16.mxu0 0
        %1584 = vmatpush1.bf16.xpose.msra.mxu0 0
        %1585 = vmatprep.subr.bf16.mxu0 0
        %1586 = vmatpush1.bf16.xpose.msra.mxu0 0
        %1587 = vmatprep.subr.bf16.mxu0 0
        %1588 = vmatpush1.bf16.xpose.msra.mxu0 0
        %1589 = vmatprep.subr.bf16.mxu0 0
        %1590 = vmatpush1.bf16.xpose.msra.mxu0 0
        %1591 = vmatprep.subr.bf16.mxu0 0
        %1592 = vmatpush1.bf16.xpose.msra.mxu0 0
        %1593 = vmatprep.mubr.bf16.mxu0 0
        %1594 = vmatmul.mubr.bf16.gmra.mrb[0].mxu0 %v1556
        %v1595 = vpop.f32.mrb[0].mxu0
        %v1596 = vadd.f32 0.0, %v1595
        %v1597 = vpop.f32.mrb[0].mxu0
        %v1598 = vpop.f32.mrb[0].mxu0
        %v1599 = vpop.f32.mrb[0].mxu0
        %1600 = vdwg.mxu0
        %v1601 = vmul.f32 %v1596, 0.17677669
        %vm1602 = vcmask 64512
        %v1603 = vsel %vm1602, %v1601, -inf
        %1604 = vmax.xlane.f32.xlu0 %v1603
        %v1605 = vpop.xlane.xlu0 %1604
        %v1606 = vsub.f32 %v1601, %v1605
        %v1607 = vmul.f32 %v1606, 1.442695
        %v1608 = vpow.pop %v1607
        %v1609 = vsel %vm1602, %v1608, 0.0
        %1610 = vadd.xlane.f32.xlu0 %v1609
        %v1611 = vpop.xlane.xlu0 %1610
        %v1612 = vrcp.pop %v1611
        %v1613 = vmul.f32 %v1608, %v1612
        %v1614 = vpack.c.bf16 %v1613, %v1613
        %v1616 = vsel %vm1602, %v1614, 0
        %vm1618 = vcmask 1043456
        %v1620 = vsel %vm1618, %v1553, 0
        %1622 = vmatprep.subr.bf16.mxu0 0
        %1623 = vmatpush1.bf16.msra.mxu0 %v1620
        %1624 = vmatprep.subr.bf16.mxu0 0
        %1625 = vmatpush1.bf16.msra.mxu0 0
        %1626 = vmatprep.subr.bf16.mxu0 0
        %1627 = vmatpush1.bf16.msra.mxu0 0
        %1628 = vmatprep.subr.bf16.mxu0 0
        %1629 = vmatpush1.bf16.msra.mxu0 0
        %1630 = vmatprep.subr.bf16.mxu0 0
        %1631 = vmatpush1.bf16.msra.mxu0 0
        %1632 = vmatprep.subr.bf16.mxu0 0
        %1633 = vmatpush1.bf16.msra.mxu0 0
        %1634 = vmatprep.subr.bf16.mxu0 0
        %1635 = vmatpush1.bf16.msra.mxu0 0
        %1636 = vmatprep.subr.bf16.mxu0 0
        %1637 = vmatpush1.bf16.msra.mxu0 0
        %1638 = vmatprep.subr.bf16.mxu0 0
        %1639 = vmatpush1.bf16.msra.mxu0 0
        %1640 = vmatprep.subr.bf16.mxu0 0
        %1641 = vmatpush1.bf16.msra.mxu0 0
        %1642 = vmatprep.subr.bf16.mxu0 0
        %1643 = vmatpush1.bf16.msra.mxu0 0
        %1644 = vmatprep.subr.bf16.mxu0 0
        %1645 = vmatpush1.bf16.msra.mxu0 0
        %1646 = vmatprep.subr.bf16.mxu0 0
        %1647 = vmatpush1.bf16.msra.mxu0 0
        %1648 = vmatprep.subr.bf16.mxu0 0
        %1649 = vmatpush1.bf16.msra.mxu0 0
        %1650 = vmatprep.subr.bf16.mxu0 0
        %1651 = vmatpush1.bf16.msra.mxu0 0
        %1652 = vmatprep.subr.bf16.mxu0 0
        %1653 = vmatpush1.bf16.msra.mxu0 0
        %1654 = vmatprep.mubr.bf16.mxu0 0
        %1655 = vmatmul.mubr.bf16.gmra.mrb[0].mxu0 %v1616
        %v1656 = vpop.f32.mrb[0].mxu0
        %v1657 = vadd.f32 0.0, %v1656
        %v1658 = vpop.f32.mrb[0].mxu0
        %v1659 = vpop.f32.mrb[0].mxu0
        %v1660 = vpop.f32.mrb[0].mxu0
        %1661 = vdwg.mxu0
        %v1662 = vpack.c.bf16 %v1657, %v1657
        %v1667 = vunpack.c.l.b16 %v1527
        %v1668 = vunpack.c.l.b16 %v1528
        %v1669 = vunpack.c.l.b16 %v1529
        %v1670 = vunpack.c.l.b16 %v1530
        %v1671 = vpack.c.b16 %v1668, %v1667
        %v1672 = vpack.c.b16 %v1670, %v1669
        %v1676 = vsel %vm1554, %v1662, 0
        %1678 = vmatprep.subr.bf16.mxu0 0
        %1679 = vmatpush1.bf16.msra.mxu0 %v1671
        %1680 = vmatprep.subr.bf16.mxu0 0
        %1681 = vmatpush1.bf16.msra.mxu0 %v1672
        %1682 = vmatprep.subr.bf16.mxu0 0
        %1683 = vmatpush1.bf16.msra.mxu0 0
        %1684 = vmatprep.subr.bf16.mxu0 0
        %1685 = vmatpush1.bf16.msra.mxu0 0
        %1686 = vmatprep.subr.bf16.mxu0 0
        %1687 = vmatpush1.bf16.msra.mxu0 0
        %1688 = vmatprep.subr.bf16.mxu0 0
        %1689 = vmatpush1.bf16.msra.mxu0 0
        %1690 = vmatprep.subr.bf16.mxu0 0
        %1691 = vmatpush1.bf16.msra.mxu0 0
        %1692 = vmatprep.subr.bf16.mxu0 0
        %1693 = vmatpush1.bf16.msra.mxu0 0
        %1694 = vmatprep.subr.bf16.mxu0 0
        %1695 = vmatpush1.bf16.msra.mxu0 0
        %1696 = vmatprep.subr.bf16.mxu0 0
        %1697 = vmatpush1.bf16.msra.mxu0 0
        %1698 = vmatprep.subr.bf16.mxu0 0
        %1699 = vmatpush1.bf16.msra.mxu0 0
        %1700 = vmatprep.subr.bf16.mxu0 0
        %1701 = vmatpush1.bf16.msra.mxu0 0
        %1702 = vmatprep.subr.bf16.mxu0 0
        %1703 = vmatpush1.bf16.msra.mxu0 0
        %1704 = vmatprep.subr.bf16.mxu0 0
        %1705 = vmatpush1.bf16.msra.mxu0 0
        %1706 = vmatprep.subr.bf16.mxu0 0
        %1707 = vmatpush1.bf16.msra.mxu0 0
        %1708 = vmatprep.subr.bf16.mxu0 0
        %1709 = vmatpush1.bf16.msra.mxu0 0
        %1710 = vmatprep.mubr.bf16.mxu0 0
        %1711 = vmatmul.mubr.bf16.gmra.mrb[0].mxu0 %v1676
        %v1712 = vpop.f32.mrb[0].mxu0
        %v1713 = vadd.f32 0.0, %v1712
        %v1714 = vpop.f32.mrb[0].mxu0
        %v1715 = vpop.f32.mrb[0].mxu0
        %v1716 = vpop.f32.mrb[0].mxu0
        %1717 = vdwg.mxu0
        %v1718 = vadd.f32 %v1550, %v1713
        %1720 = vrot.lane.b32.xlu0 %v1551, 96
        %v1721 = vpop.permute.xlu0 %1720
        %1723 = vrot.lane.b32.xlu0 %v1552, 96
        %v1724 = vpop.permute.xlu0 %1723
        %v1726 = vsel %vm1554, %v1721, 0
        %v1729 = vsel %vm1554, %v1724, 0
        %1731 = vmatprep.subr.bf16.mxu0 0
        %1732 = vmatpush1.bf16.xpose.msra.mxu0 %v1729
        %1733 = vmatprep.subr.bf16.mxu0 0
        %1734 = vmatpush1.bf16.xpose.msra.mxu0 0
        %1735 = vmatprep.subr.bf16.mxu0 0
        %1736 = vmatpush1.bf16.xpose.msra.mxu0 0
        %1737 = vmatprep.subr.bf16.mxu0 0
        %1738 = vmatpush1.bf16.xpose.msra.mxu0 0
        %1739 = vmatprep.subr.bf16.mxu0 0
        %1740 = vmatpush1.bf16.xpose.msra.mxu0 0
        %1741 = vmatprep.subr.bf16.mxu0 0
        %1742 = vmatpush1.bf16.xpose.msra.mxu0 0
        %1743 = vmatprep.subr.bf16.mxu0 0
        %1744 = vmatpush1.bf16.xpose.msra.mxu0 0
        %1745 = vmatprep.subr.bf16.mxu0 0
        %1746 = vmatpush1.bf16.xpose.msra.mxu0 0
        %1747 = vmatprep.subr.bf16.mxu0 0
        %1748 = vmatpush1.bf16.xpose.msra.mxu0 0
        %1749 = vmatprep.subr.bf16.mxu0 0
        %1750 = vmatpush1.bf16.xpose.msra.mxu0 0
        %1751 = vmatprep.subr.bf16.mxu0 0
        %1752 = vmatpush1.bf16.xpose.msra.mxu0 0
        %1753 = vmatprep.subr.bf16.mxu0 0
        %1754 = vmatpush1.bf16.xpose.msra.mxu0 0
        %1755 = vmatprep.subr.bf16.mxu0 0
        %1756 = vmatpush1.bf16.xpose.msra.mxu0 0
        %1757 = vmatprep.subr.bf16.mxu0 0
        %1758 = vmatpush1.bf16.xpose.msra.mxu0 0
        %1759 = vmatprep.subr.bf16.mxu0 0
        %1760 = vmatpush1.bf16.xpose.msra.mxu0 0
        %1761 = vmatprep.subr.bf16.mxu0 0
        %1762 = vmatpush1.bf16.xpose.msra.mxu0 0
        %1763 = vmatprep.mubr.bf16.mxu0 0
        %1764 = vmatmul.mubr.bf16.gmra.mrb[0].mxu0 %v1726
        %v1765 = vpop.f32.mrb[0].mxu0
        %v1766 = vadd.f32 0.0, %v1765
        %v1767 = vpop.f32.mrb[0].mxu0
        %v1768 = vpop.f32.mrb[0].mxu0
        %v1769 = vpop.f32.mrb[0].mxu0
        %1770 = vdwg.mxu0
        %v1771 = vmul.f32 %v1766, 0.17677669
        %v1772 = vsel %vm1602, %v1771, -inf
        %1773 = vmax.xlane.f32.xlu0 %v1772
        %v1774 = vpop.xlane.xlu0 %1773
        %v1775 = vsub.f32 %v1771, %v1774
        %v1776 = vmul.f32 %v1775, 1.442695
        %v1777 = vpow.pop %v1776
        %v1778 = vsel %vm1602, %v1777, 0.0
        %1779 = vadd.xlane.f32.xlu0 %v1778
        %v1780 = vpop.xlane.xlu0 %1779
        %v1781 = vrcp.pop %v1780
        %v1782 = vmul.f32 %v1777, %v1781
        %v1783 = vpack.c.bf16 %v1782, %v1782
        %1785 = vrot.lane.b32.xlu0 %v1553, 96
        %v1786 = vpop.permute.xlu0 %1785
        %v1788 = vsel %vm1602, %v1783, 0
        %v1791 = vsel %vm1618, %v1786, 0
        %1793 = vmatprep.subr.bf16.mxu0 0
        %1794 = vmatpush1.bf16.msra.mxu0 %v1791
        %1795 = vmatprep.subr.bf16.mxu0 0
        %1796 = vmatpush1.bf16.msra.mxu0 0
        %1797 = vmatprep.subr.bf16.mxu0 0
        %1798 = vmatpush1.bf16.msra.mxu0 0
        %1799 = vmatprep.subr.bf16.mxu0 0
        %1800 = vmatpush1.bf16.msra.mxu0 0
        %1801 = vmatprep.subr.bf16.mxu0 0
        %1802 = vmatpush1.bf16.msra.mxu0 0
        %1803 = vmatprep.subr.bf16.mxu0 0
        %1804 = vmatpush1.bf16.msra.mxu0 0
        %1805 = vmatprep.subr.bf16.mxu0 0
        %1806 = vmatpush1.bf16.msra.mxu0 0
        %1807 = vmatprep.subr.bf16.mxu0 0
        %1808 = vmatpush1.bf16.msra.mxu0 0
        %1809 = vmatprep.subr.bf16.mxu0 0
        %1810 = vmatpush1.bf16.msra.mxu0 0
        %1811 = vmatprep.subr.bf16.mxu0 0
        %1812 = vmatpush1.bf16.msra.mxu0 0
        %1813 = vmatprep.subr.bf16.mxu0 0
        %1814 = vmatpush1.bf16.msra.mxu0 0
        %1815 = vmatprep.subr.bf16.mxu0 0
        %1816 = vmatpush1.bf16.msra.mxu0 0
        %1817 = vmatprep.subr.bf16.mxu0 0
        %1818 = vmatpush1.bf16.msra.mxu0 0
        %1819 = vmatprep.subr.bf16.mxu0 0
        %1820 = vmatpush1.bf16.msra.mxu0 0
        %1821 = vmatprep.subr.bf16.mxu0 0
        %1822 = vmatpush1.bf16.msra.mxu0 0
        %1823 = vmatprep.subr.bf16.mxu0 0
        %1824 = vmatpush1.bf16.msra.mxu0 0
        %1825 = vmatprep.mubr.bf16.mxu0 0
        %1826 = vmatmul.mubr.bf16.gmra.mrb[0].mxu0 %v1788
        %v1827 = vpop.f32.mrb[0].mxu0
        %v1828 = vadd.f32 0.0, %v1827
        %v1829 = vpop.f32.mrb[0].mxu0
        %v1830 = vpop.f32.mrb[0].mxu0
        %v1831 = vpop.f32.mrb[0].mxu0
        %1832 = vdwg.mxu0
        %v1833 = vpack.c.bf16 %v1828, %v1828
        %v1838 = vunpack.c.l.b16 %v1531
        %v1839 = vunpack.c.l.b16 %v1532
        %v1840 = vunpack.c.l.b16 %v1533
        %v1841 = vunpack.c.l.b16 %v1534
        %v1842 = vpack.c.b16 %v1839, %v1838
        %v1843 = vpack.c.b16 %v1841, %v1840
        %v1847 = vsel %vm1554, %v1833, 0
        %1849 = vmatprep.subr.bf16.mxu0 0
        %1850 = vmatpush1.bf16.msra.mxu0 %v1842
        %1851 = vmatprep.subr.bf16.mxu0 0
        %1852 = vmatpush1.bf16.msra.mxu0 %v1843
        %1853 = vmatprep.subr.bf16.mxu0 0
        %1854 = vmatpush1.bf16.msra.mxu0 0
        %1855 = vmatprep.subr.bf16.mxu0 0
        %1856 = vmatpush1.bf16.msra.mxu0 0
        %1857 = vmatprep.subr.bf16.mxu0 0
        %1858 = vmatpush1.bf16.msra.mxu0 0
        %1859 = vmatprep.subr.bf16.mxu0 0
        %1860 = vmatpush1.bf16.msra.mxu0 0
        %1861 = vmatprep.subr.bf16.mxu0 0
        %1862 = vmatpush1.bf16.msra.mxu0 0
        %1863 = vmatprep.subr.bf16.mxu0 0
        %1864 = vmatpush1.bf16.msra.mxu0 0
        %1865 = vmatprep.subr.bf16.mxu0 0
        %1866 = vmatpush1.bf16.msra.mxu0 0
        %1867 = vmatprep.subr.bf16.mxu0 0
        %1868 = vmatpush1.bf16.msra.mxu0 0
        %1869 = vmatprep.subr.bf16.mxu0 0
        %1870 = vmatpush1.bf16.msra.mxu0 0
        %1871 = vmatprep.subr.bf16.mxu0 0
        %1872 = vmatpush1.bf16.msra.mxu0 0
        %1873 = vmatprep.subr.bf16.mxu0 0
        %1874 = vmatpush1.bf16.msra.mxu0 0
        %1875 = vmatprep.subr.bf16.mxu0 0
        %1876 = vmatpush1.bf16.msra.mxu0 0
        %1877 = vmatprep.subr.bf16.mxu0 0
        %1878 = vmatpush1.bf16.msra.mxu0 0
        %1879 = vmatprep.subr.bf16.mxu0 0
        %1880 = vmatpush1.bf16.msra.mxu0 0
        %1881 = vmatprep.mubr.bf16.mxu0 0
        %1882 = vmatmul.mubr.bf16.gmra.mrb[0].mxu0 %v1847
        %v1883 = vpop.f32.mrb[0].mxu0
        %v1884 = vadd.f32 0.0, %v1883
        %v1885 = vpop.f32.mrb[0].mxu0
        %v1886 = vpop.f32.mrb[0].mxu0
        %v1887 = vpop.f32.mrb[0].mxu0
        %1888 = vdwg.mxu0
        %v1889 = vadd.f32 %v1718, %v1884
        %1890 = vrot.lane.b32.xlu0 %v1551, 64
        %v1891 = vpop.permute.xlu0 %1890
        %1892 = vrot.lane.b32.xlu0 %v1552, 64
        %v1893 = vpop.permute.xlu0 %1892
        %v1895 = vsel %vm1554, %v1891, 0
        %v1898 = vsel %vm1554, %v1893, 0
        %1900 = vmatprep.subr.bf16.mxu0 0
        %1901 = vmatpush1.bf16.xpose.msra.mxu0 %v1898
        %1902 = vmatprep.subr.bf16.mxu0 0
        %1903 = vmatpush1.bf16.xpose.msra.mxu0 0
        %1904 = vmatprep.subr.bf16.mxu0 0
        %1905 = vmatpush1.bf16.xpose.msra.mxu0 0
        %1906 = vmatprep.subr.bf16.mxu0 0
        %1907 = vmatpush1.bf16.xpose.msra.mxu0 0
        %1908 = vmatprep.subr.bf16.mxu0 0
        %1909 = vmatpush1.bf16.xpose.msra.mxu0 0
        %1910 = vmatprep.subr.bf16.mxu0 0
        %1911 = vmatpush1.bf16.xpose.msra.mxu0 0
        %1912 = vmatprep.subr.bf16.mxu0 0
        %1913 = vmatpush1.bf16.xpose.msra.mxu0 0
        %1914 = vmatprep.subr.bf16.mxu0 0
        %1915 = vmatpush1.bf16.xpose.msra.mxu0 0
        %1916 = vmatprep.subr.bf16.mxu0 0
        %1917 = vmatpush1.bf16.xpose.msra.mxu0 0
        %1918 = vmatprep.subr.bf16.mxu0 0
        %1919 = vmatpush1.bf16.xpose.msra.mxu0 0
        %1920 = vmatprep.subr.bf16.mxu0 0
        %1921 = vmatpush1.bf16.xpose.msra.mxu0 0
        %1922 = vmatprep.subr.bf16.mxu0 0
        %1923 = vmatpush1.bf16.xpose.msra.mxu0 0
        %1924 = vmatprep.subr.bf16.mxu0 0
        %1925 = vmatpush1.bf16.xpose.msra.mxu0 0
        %1926 = vmatprep.subr.bf16.mxu0 0
        %1927 = vmatpush1.bf16.xpose.msra.mxu0 0
        %1928 = vmatprep.subr.bf16.mxu0 0
        %1929 = vmatpush1.bf16.xpose.msra.mxu0 0
        %1930 = vmatprep.subr.bf16.mxu0 0
        %1931 = vmatpush1.bf16.xpose.msra.mxu0 0
        %1932 = vmatprep.mubr.bf16.mxu0 0
        %1933 = vmatmul.mubr.bf16.gmra.mrb[0].mxu0 %v1895
        %v1934 = vpop.f32.mrb[0].mxu0
        %v1935 = vadd.f32 0.0, %v1934
        %v1936 = vpop.f32.mrb[0].mxu0
        %v1937 = vpop.f32.mrb[0].mxu0
        %v1938 = vpop.f32.mrb[0].mxu0
        %1939 = vdwg.mxu0
        %v1940 = vmul.f32 %v1935, 0.17677669
        %v1941 = vsel %vm1602, %v1940, -inf
        %1942 = vmax.xlane.f32.xlu0 %v1941
        %v1943 = vpop.xlane.xlu0 %1942
        %v1944 = vsub.f32 %v1940, %v1943
        %v1945 = vmul.f32 %v1944, 1.442695
        %v1946 = vpow.pop %v1945
        %v1947 = vsel %vm1602, %v1946, 0.0
        %1948 = vadd.xlane.f32.xlu0 %v1947
        %v1949 = vpop.xlane.xlu0 %1948
        %v1950 = vrcp.pop %v1949
        %v1951 = vmul.f32 %v1946, %v1950
        %v1952 = vpack.c.bf16 %v1951, %v1951
        %1953 = vrot.lane.b32.xlu0 %v1553, 64
        %v1954 = vpop.permute.xlu0 %1953
        %v1956 = vsel %vm1602, %v1952, 0
        %v1959 = vsel %vm1618, %v1954, 0
        %1961 = vmatprep.subr.bf16.mxu0 0
        %1962 = vmatpush1.bf16.msra.mxu0 %v1959
        %1963 = vmatprep.subr.bf16.mxu0 0
        %1964 = vmatpush1.bf16.msra.mxu0 0
        %1965 = vmatprep.subr.bf16.mxu0 0
        %1966 = vmatpush1.bf16.msra.mxu0 0
        %1967 = vmatprep.subr.bf16.mxu0 0
        %1968 = vmatpush1.bf16.msra.mxu0 0
        %1969 = vmatprep.subr.bf16.mxu0 0
        %1970 = vmatpush1.bf16.msra.mxu0 0
        %1971 = vmatprep.subr.bf16.mxu0 0
        %1972 = vmatpush1.bf16.msra.mxu0 0
        %1973 = vmatprep.subr.bf16.mxu0 0
        %1974 = vmatpush1.bf16.msra.mxu0 0
        %1975 = vmatprep.subr.bf16.mxu0 0
        %1976 = vmatpush1.bf16.msra.mxu0 0
        %1977 = vmatprep.subr.bf16.mxu0 0
        %1978 = vmatpush1.bf16.msra.mxu0 0
        %1979 = vmatprep.subr.bf16.mxu0 0
        %1980 = vmatpush1.bf16.msra.mxu0 0
        %1981 = vmatprep.subr.bf16.mxu0 0
        %1982 = vmatpush1.bf16.msra.mxu0 0
        %1983 = vmatprep.subr.bf16.mxu0 0
        %1984 = vmatpush1.bf16.msra.mxu0 0
        %1985 = vmatprep.subr.bf16.mxu0 0
        %1986 = vmatpush1.bf16.msra.mxu0 0
        %1987 = vmatprep.subr.bf16.mxu0 0
        %1988 = vmatpush1.bf16.msra.mxu0 0
        %1989 = vmatprep.subr.bf16.mxu0 0
        %1990 = vmatpush1.bf16.msra.mxu0 0
        %1991 = vmatprep.subr.bf16.mxu0 0
        %1992 = vmatpush1.bf16.msra.mxu0 0
        %1993 = vmatprep.mubr.bf16.mxu0 0
        %1994 = vmatmul.mubr.bf16.gmra.mrb[0].mxu0 %v1956
        %v1995 = vpop.f32.mrb[0].mxu0
        %v1996 = vadd.f32 0.0, %v1995
        %v1997 = vpop.f32.mrb[0].mxu0
        %v1998 = vpop.f32.mrb[0].mxu0
        %v1999 = vpop.f32.mrb[0].mxu0
        %2000 = vdwg.mxu0
        %v2001 = vpack.c.bf16 %v1996, %v1996
        %v2006 = vunpack.c.l.b16 %v1535
        %v2007 = vunpack.c.l.b16 %v1536
        %v2008 = vunpack.c.l.b16 %v1537
        %v2009 = vunpack.c.l.b16 %v1538
        %v2010 = vpack.c.b16 %v2007, %v2006
        %v2011 = vpack.c.b16 %v2009, %v2008
        %v2015 = vsel %vm1554, %v2001, 0
        %2017 = vmatprep.subr.bf16.mxu0 0
        %2018 = vmatpush1.bf16.msra.mxu0 %v2010
        %2019 = vmatprep.subr.bf16.mxu0 0
        %2020 = vmatpush1.bf16.msra.mxu0 %v2011
        %2021 = vmatprep.subr.bf16.mxu0 0
        %2022 = vmatpush1.bf16.msra.mxu0 0
        %2023 = vmatprep.subr.bf16.mxu0 0
        %2024 = vmatpush1.bf16.msra.mxu0 0
        %2025 = vmatprep.subr.bf16.mxu0 0
        %2026 = vmatpush1.bf16.msra.mxu0 0
        %2027 = vmatprep.subr.bf16.mxu0 0
        %2028 = vmatpush1.bf16.msra.mxu0 0
        %2029 = vmatprep.subr.bf16.mxu0 0
        %2030 = vmatpush1.bf16.msra.mxu0 0
        %2031 = vmatprep.subr.bf16.mxu0 0
        %2032 = vmatpush1.bf16.msra.mxu0 0
        %2033 = vmatprep.subr.bf16.mxu0 0
        %2034 = vmatpush1.bf16.msra.mxu0 0
        %2035 = vmatprep.subr.bf16.mxu0 0
        %2036 = vmatpush1.bf16.msra.mxu0 0
        %2037 = vmatprep.subr.bf16.mxu0 0
        %2038 = vmatpush1.bf16.msra.mxu0 0
        %2039 = vmatprep.subr.bf16.mxu0 0
        %2040 = vmatpush1.bf16.msra.mxu0 0
        %2041 = vmatprep.subr.bf16.mxu0 0
        %2042 = vmatpush1.bf16.msra.mxu0 0
        %2043 = vmatprep.subr.bf16.mxu0 0
        %2044 = vmatpush1.bf16.msra.mxu0 0
        %2045 = vmatprep.subr.bf16.mxu0 0
        %2046 = vmatpush1.bf16.msra.mxu0 0
        %2047 = vmatprep.subr.bf16.mxu0 0
        %2048 = vmatpush1.bf16.msra.mxu0 0
        %2049 = vmatprep.mubr.bf16.mxu0 0
        %2050 = vmatmul.mubr.bf16.gmra.mrb[0].mxu0 %v2015
        %v2051 = vpop.f32.mrb[0].mxu0
        %v2052 = vadd.f32 0.0, %v2051
        %v2053 = vpop.f32.mrb[0].mxu0
        %v2054 = vpop.f32.mrb[0].mxu0
        %v2055 = vpop.f32.mrb[0].mxu0
        %2056 = vdwg.mxu0
        %v2057 = vadd.f32 %v1889, %v2052
        %2058 = vrot.lane.b32.xlu0 %v1551, 32
        %v2059 = vpop.permute.xlu0 %2058
        %2060 = vrot.lane.b32.xlu0 %v1552, 32
        %v2061 = vpop.permute.xlu0 %2060
        %v2063 = vsel %vm1554, %v2059, 0
        %v2066 = vsel %vm1554, %v2061, 0
        %2068 = vmatprep.subr.bf16.mxu0 0
        %2069 = vmatpush1.bf16.xpose.msra.mxu0 %v2066
        %2070 = vmatprep.subr.bf16.mxu0 0
        %2071 = vmatpush1.bf16.xpose.msra.mxu0 0
        %2072 = vmatprep.subr.bf16.mxu0 0
        %2073 = vmatpush1.bf16.xpose.msra.mxu0 0
        %2074 = vmatprep.subr.bf16.mxu0 0
        %2075 = vmatpush1.bf16.xpose.msra.mxu0 0
        %2076 = vmatprep.subr.bf16.mxu0 0
        %2077 = vmatpush1.bf16.xpose.msra.mxu0 0
        %2078 = vmatprep.subr.bf16.mxu0 0
        %2079 = vmatpush1.bf16.xpose.msra.mxu0 0
        %2080 = vmatprep.subr.bf16.mxu0 0
        %2081 = vmatpush1.bf16.xpose.msra.mxu0 0
        %2082 = vmatprep.subr.bf16.mxu0 0
        %2083 = vmatpush1.bf16.xpose.msra.mxu0 0
        %2084 = vmatprep.subr.bf16.mxu0 0
        %2085 = vmatpush1.bf16.xpose.msra.mxu0 0
        %2086 = vmatprep.subr.bf16.mxu0 0
        %2087 = vmatpush1.bf16.xpose.msra.mxu0 0
        %2088 = vmatprep.subr.bf16.mxu0 0
        %2089 = vmatpush1.bf16.xpose.msra.mxu0 0
        %2090 = vmatprep.subr.bf16.mxu0 0
        %2091 = vmatpush1.bf16.xpose.msra.mxu0 0
        %2092 = vmatprep.subr.bf16.mxu0 0
        %2093 = vmatpush1.bf16.xpose.msra.mxu0 0
        %2094 = vmatprep.subr.bf16.mxu0 0
        %2095 = vmatpush1.bf16.xpose.msra.mxu0 0
        %2096 = vmatprep.subr.bf16.mxu0 0
        %2097 = vmatpush1.bf16.xpose.msra.mxu0 0
        %2098 = vmatprep.subr.bf16.mxu0 0
        %2099 = vmatpush1.bf16.xpose.msra.mxu0 0
        %2100 = vmatprep.mubr.bf16.mxu0 0
        %2101 = vmatmul.mubr.bf16.gmra.mrb[0].mxu0 %v2063
        %v2102 = vpop.f32.mrb[0].mxu0
        %v2103 = vadd.f32 0.0, %v2102
        %v2104 = vpop.f32.mrb[0].mxu0
        %v2105 = vpop.f32.mrb[0].mxu0
        %v2106 = vpop.f32.mrb[0].mxu0
        %2107 = vdwg.mxu0
        %v2108 = vmul.f32 %v2103, 0.17677669
        %v2109 = vsel %vm1602, %v2108, -inf
        %2110 = vmax.xlane.f32.xlu0 %v2109
        %v2111 = vpop.xlane.xlu0 %2110
        %v2112 = vsub.f32 %v2108, %v2111
        %v2113 = vmul.f32 %v2112, 1.442695
        %v2114 = vpow.pop %v2113
        %v2115 = vsel %vm1602, %v2114, 0.0
        %2116 = vadd.xlane.f32.xlu0 %v2115
        %v2117 = vpop.xlane.xlu0 %2116
        %v2118 = vrcp.pop %v2117
        %v2119 = vmul.f32 %v2114, %v2118
        %v2120 = vpack.c.bf16 %v2119, %v2119
        %2121 = vrot.lane.b32.xlu0 %v1553, 32
        %v2122 = vpop.permute.xlu0 %2121
        %v2124 = vsel %vm1602, %v2120, 0
        %v2127 = vsel %vm1618, %v2122, 0
        %2129 = vmatprep.subr.bf16.mxu0 0
        %2130 = vmatpush1.bf16.msra.mxu0 %v2127
        %2131 = vmatprep.subr.bf16.mxu0 0
        %2132 = vmatpush1.bf16.msra.mxu0 0
        %2133 = vmatprep.subr.bf16.mxu0 0
        %2134 = vmatpush1.bf16.msra.mxu0 0
        %2135 = vmatprep.subr.bf16.mxu0 0
        %2136 = vmatpush1.bf16.msra.mxu0 0
        %2137 = vmatprep.subr.bf16.mxu0 0
        %2138 = vmatpush1.bf16.msra.mxu0 0
        %2139 = vmatprep.subr.bf16.mxu0 0
        %2140 = vmatpush1.bf16.msra.mxu0 0
        %2141 = vmatprep.subr.bf16.mxu0 0
        %2142 = vmatpush1.bf16.msra.mxu0 0
        %2143 = vmatprep.subr.bf16.mxu0 0
        %2144 = vmatpush1.bf16.msra.mxu0 0
        %2145 = vmatprep.subr.bf16.mxu0 0
        %2146 = vmatpush1.bf16.msra.mxu0 0
        %2147 = vmatprep.subr.bf16.mxu0 0
        %2148 = vmatpush1.bf16.msra.mxu0 0
        %2149 = vmatprep.subr.bf16.mxu0 0
        %2150 = vmatpush1.bf16.msra.mxu0 0
        %2151 = vmatprep.subr.bf16.mxu0 0
        %2152 = vmatpush1.bf16.msra.mxu0 0
        %2153 = vmatprep.subr.bf16.mxu0 0
        %2154 = vmatpush1.bf16.msra.mxu0 0
        %2155 = vmatprep.subr.bf16.mxu0 0
        %2156 = vmatpush1.bf16.msra.mxu0 0
        %2157 = vmatprep.subr.bf16.mxu0 0
        %2158 = vmatpush1.bf16.msra.mxu0 0
        %2159 = vmatprep.subr.bf16.mxu0 0
        %2160 = vmatpush1.bf16.msra.mxu0 0
        %2161 = vmatprep.mubr.bf16.mxu0 0
        %2162 = vmatmul.mubr.bf16.gmra.mrb[0].mxu0 %v2124
        %v2163 = vpop.f32.mrb[0].mxu0
        %v2164 = vadd.f32 0.0, %v2163
        %v2165 = vpop.f32.mrb[0].mxu0
        %v2166 = vpop.f32.mrb[0].mxu0
        %v2167 = vpop.f32.mrb[0].mxu0
        %2168 = vdwg.mxu0
        %v2169 = vpack.c.bf16 %v2164, %v2164
        %v2174 = vunpack.c.l.b16 %v1539
        %v2175 = vunpack.c.l.b16 %v1540
        %v2176 = vunpack.c.l.b16 %v1541
        %v2177 = vunpack.c.l.b16 %v1542
        %v2178 = vpack.c.b16 %v2175, %v2174
        %v2179 = vpack.c.b16 %v2177, %v2176
        %v2183 = vsel %vm1554, %v2169, 0
        %2185 = vmatprep.subr.bf16.mxu0 0
        %2186 = vmatpush1.bf16.msra.mxu0 %v2178
        %2187 = vmatprep.subr.bf16.mxu0 0
        %2188 = vmatpush1.bf16.msra.mxu0 %v2179
        %2189 = vmatprep.subr.bf16.mxu0 0
        %2190 = vmatpush1.bf16.msra.mxu0 0
        %2191 = vmatprep.subr.bf16.mxu0 0
        %2192 = vmatpush1.bf16.msra.mxu0 0
        %2193 = vmatprep.subr.bf16.mxu0 0
        %2194 = vmatpush1.bf16.msra.mxu0 0
        %2195 = vmatprep.subr.bf16.mxu0 0
        %2196 = vmatpush1.bf16.msra.mxu0 0
        %2197 = vmatprep.subr.bf16.mxu0 0
        %2198 = vmatpush1.bf16.msra.mxu0 0
        %2199 = vmatprep.subr.bf16.mxu0 0
        %2200 = vmatpush1.bf16.msra.mxu0 0
        %2201 = vmatprep.subr.bf16.mxu0 0
        %2202 = vmatpush1.bf16.msra.mxu0 0
        %2203 = vmatprep.subr.bf16.mxu0 0
        %2204 = vmatpush1.bf16.msra.mxu0 0
        %2205 = vmatprep.subr.bf16.mxu0 0
        %2206 = vmatpush1.bf16.msra.mxu0 0
        %2207 = vmatprep.subr.bf16.mxu0 0
        %2208 = vmatpush1.bf16.msra.mxu0 0
        %2209 = vmatprep.subr.bf16.mxu0 0
        %2210 = vmatpush1.bf16.msra.mxu0 0
        %2211 = vmatprep.subr.bf16.mxu0 0
        %2212 = vmatpush1.bf16.msra.mxu0 0
        %2213 = vmatprep.subr.bf16.mxu0 0
        %2214 = vmatpush1.bf16.msra.mxu0 0
        %2215 = vmatprep.subr.bf16.mxu0 0
        %2216 = vmatpush1.bf16.msra.mxu0 0
        %2217 = vmatprep.mubr.bf16.mxu0 0
        %2218 = vmatmul.mubr.bf16.gmra.mrb[0].mxu0 %v2183
        %v2219 = vpop.f32.mrb[0].mxu0
        %v2220 = vadd.f32 0.0, %v2219
        %v2221 = vpop.f32.mrb[0].mxu0
        %v2222 = vpop.f32.mrb[0].mxu0
        %v2223 = vpop.f32.mrb[0].mxu0
        %2224 = vdwg.mxu0
        %v2225 = vadd.f32 %v2057, %v2220
        %v2226 = vadd.f32 %v1267, %v2225
        %v2227 = vld [vmem:[%s1215] sm:$0x1]
        %v2228 = vld [vmem:[%s1218] sm:$0x1]
        %2229 = vadd.xlane.f32.xlu0 %v2226
        %v2230 = vpop.xlane.xlu0 %2229
        %v2231 = vrcp.pop 128.0
        %v2232 = vmul.f32 %v2230, %v2231
        %v2233 = vmul.f32 %v2226, %v2226
        %2234 = vadd.xlane.f32.xlu0 %v2233
        %v2235 = vpop.xlane.xlu0 %2234
        %v2236 = vmul.f32 %v2235, %v2231
        %v2237 = vmul.f32 %v2232, %v2232
        %v2238 = vsub.f32 %v2236, %v2237
        %v2239 = vmax.f32 %v2238, 0.0
        %v2240 = vsub.f32 %v2226, %v2232
        %v2241 = vadd.f32 %v2239, 1e-05
        %v2242 = vrsqrt.pop %v2241
        %v2243 = vmul.f32 %v2240, %v2242
        %v2245 = vlaneseq
        %v2246 = vshrl.u32 %v2245, 7
        %v2247 = vsub.s32 0, %v2246
        %v2248 = vrot.slane %v2227, %v2247
        %v2250 = vmul.f32 %v2243, %v2248
        %v2252 = vlaneseq
        %v2253 = vshrl.u32 %v2252, 7
        %v2254 = vsub.s32 0, %v2253
        %v2255 = vrot.slane %v2228, %v2254
        %v2257 = vadd.f32 %v2250, %v2255
        %v2258 = vpack.c.bf16 %v2257, %v2257
        %v2259 = vld [vmem:[%s1000] sm:$0xf]
        %v2260 = vld [vmem:[%s1000 + $0x4] sm:$0xf]
        %v2261 = vld [vmem:[%s1000 + $0x8] sm:$0xf]
        %v2262 = vld [vmem:[%s1000 + $0xc] sm:$0xf]
        %v2263 = vld [vmem:[%s1000 + $0x10] sm:$0xf]
        %v2264 = vld [vmem:[%s1000 + $0x14] sm:$0xf]
        %v2265 = vld [vmem:[%s1000 + $0x18] sm:$0xf]
        %v2266 = vld [vmem:[%s1000 + $0x1c] sm:$0xf]
        %v2267 = vld [vmem:[%s1000 + $0x20] sm:$0xf]
        %v2268 = vld [vmem:[%s1000 + $0x24] sm:$0xf]
        %v2269 = vld [vmem:[%s1000 + $0x28] sm:$0xf]
        %v2270 = vld [vmem:[%s1000 + $0x2c] sm:$0xf]
        %v2271 = vld [vmem:[%s1000 + $0x30] sm:$0xf]
        %v2272 = vld [vmem:[%s1000 + $0x34] sm:$0xf]
        %v2273 = vld [vmem:[%s1000 + $0x38] sm:$0xf]
        %v2274 = vld [vmem:[%s1000 + $0x3c] sm:$0xf]
        %v2275 = vld [vmem:[%s1221] sm:$0x1]
        %v2277 = vlaneseq
        %v2278 = vshrl.u32 %v2277, 7
        %v2279 = vsub.s32 0, %v2278
        %v2280 = vrot.slane %v2275, %v2279
        %v2298 = vunpack.c.l.b16 %v2259
        %v2299 = vunpack.c.l.b16 %v2260
        %v2300 = vunpack.c.l.b16 %v2261
        %v2301 = vunpack.c.l.b16 %v2262
        %v2302 = vunpack.c.l.b16 %v2263
        %v2303 = vunpack.c.l.b16 %v2264
        %v2304 = vunpack.c.l.b16 %v2265
        %v2305 = vunpack.c.l.b16 %v2266
        %v2306 = vunpack.c.l.b16 %v2267
        %v2307 = vunpack.c.l.b16 %v2268
        %v2308 = vunpack.c.l.b16 %v2269
        %v2309 = vunpack.c.l.b16 %v2270
        %v2310 = vunpack.c.l.b16 %v2271
        %v2311 = vunpack.c.l.b16 %v2272
        %v2312 = vunpack.c.l.b16 %v2273
        %v2313 = vunpack.c.l.b16 %v2274
        %v2314 = vpack.c.b16 %v2299, %v2298
        %v2315 = vpack.c.b16 %v2301, %v2300
        %v2316 = vpack.c.b16 %v2303, %v2302
        %v2317 = vpack.c.b16 %v2305, %v2304
        %v2318 = vpack.c.b16 %v2307, %v2306
        %v2319 = vpack.c.b16 %v2309, %v2308
        %v2320 = vpack.c.b16 %v2311, %v2310
        %v2321 = vpack.c.b16 %v2313, %v2312
        %2330 = vmatprep.subr.bf16.mxu0 0
        %2331 = vmatpush1.bf16.msra.mxu0 %v2314
        %2332 = vmatprep.subr.bf16.mxu0 0
        %2333 = vmatpush1.bf16.msra.mxu0 %v2315
        %2334 = vmatprep.subr.bf16.mxu0 0
        %2335 = vmatpush1.bf16.msra.mxu0 %v2316
        %2336 = vmatprep.subr.bf16.mxu0 0
        %2337 = vmatpush1.bf16.msra.mxu0 %v2317
        %2338 = vmatprep.subr.bf16.mxu0 0
        %2339 = vmatpush1.bf16.msra.mxu0 %v2318
        %2340 = vmatprep.subr.bf16.mxu0 0
        %2341 = vmatpush1.bf16.msra.mxu0 %v2319
        %2342 = vmatprep.subr.bf16.mxu0 0
        %2343 = vmatpush1.bf16.msra.mxu0 %v2320
        %2344 = vmatprep.subr.bf16.mxu0 0
        %2345 = vmatpush1.bf16.msra.mxu0 %v2321
        %2346 = vmatprep.subr.bf16.mxu0 0
        %2347 = vmatpush1.bf16.msra.mxu0 0
        %2348 = vmatprep.subr.bf16.mxu0 0
        %2349 = vmatpush1.bf16.msra.mxu0 0
        %2350 = vmatprep.subr.bf16.mxu0 0
        %2351 = vmatpush1.bf16.msra.mxu0 0
        %2352 = vmatprep.subr.bf16.mxu0 0
        %2353 = vmatpush1.bf16.msra.mxu0 0
        %2354 = vmatprep.subr.bf16.mxu0 0
        %2355 = vmatpush1.bf16.msra.mxu0 0
        %2356 = vmatprep.subr.bf16.mxu0 0
        %2357 = vmatpush1.bf16.msra.mxu0 0
        %2358 = vmatprep.subr.bf16.mxu0 0
        %2359 = vmatpush1.bf16.msra.mxu0 0
        %2360 = vmatprep.subr.bf16.mxu0 0
        %2361 = vmatpush1.bf16.msra.mxu0 0
        %2362 = vmatprep.mubr.bf16.mxu0 0
        %2363 = vmatmul.mubr.bf16.gmra.mrb[0].mxu0 %v2258
        %v2364 = vpop.f32.mrb[0].mxu0
        %v2365 = vadd.f32 %v2280, %v2364
        %v2366 = vpop.f32.mrb[0].mxu0
        %v2367 = vpop.f32.mrb[0].mxu0
        %v2368 = vpop.f32.mrb[0].mxu0
        %2369 = vdwg.mxu0
        %v2370 = vld [vmem:[%s1199] sm:$0xf]
        %v2371 = vld [vmem:[%s1199 + $0x4] sm:$0xf]
        %v2372 = vld [vmem:[%s1009] sm:$0xff]
        %v2373 = vld [vmem:[%s1009 + $0x8] sm:$0xff]
        %v2374 = vld [vmem:[%s1009 + $0x10] sm:$0xff]
        %v2375 = vld [vmem:[%s1009 + $0x18] sm:$0xff]
        %v2376 = vld [vmem:[%s1009 + $0x20] sm:$0xff]
        %v2377 = vld [vmem:[%s1009 + $0x28] sm:$0xff]
        %v2378 = vld [vmem:[%s1009 + $0x30] sm:$0xff]
        %v2379 = vld [vmem:[%s1009 + $0x38] sm:$0xff]
        %v2380 = vld [vmem:[%s1009 + $0x40] sm:$0xff]
        %v2381 = vld [vmem:[%s1009 + $0x48] sm:$0xff]
        %v2382 = vld [vmem:[%s1009 + $0x50] sm:$0xff]
        %v2383 = vld [vmem:[%s1009 + $0x58] sm:$0xff]
        %v2384 = vld [vmem:[%s1009 + $0x60] sm:$0xff]
        %v2385 = vld [vmem:[%s1009 + $0x68] sm:$0xff]
        %v2386 = vld [vmem:[%s1009 + $0x70] sm:$0xff]
        %v2387 = vld [vmem:[%s1009 + $0x78] sm:$0xff]
        %v2388 = vld [vmem:[%s1225] sm:$0x3]
        %v2390 = vlaneseq
        %v2391 = vshrl.u32 %v2390, 7
        %v2392 = vsub.s32 0, %v2391
        %v2393 = vrot.slane %v2388, %v2392
        %v2394 = vlaneseq
        %v2395 = vshrl.u32 %v2394, 7
        %v2396 = vsub.s32 1, %v2395
        %v2397 = vrot.slane %v2388, %v2396
        %v2402 = vunpack.c.l.b16 %v2370
        %v2403 = vunpack.c.l.b16 %v2371
        %v2404 = vpack.c.b16 %v2403, %v2402
        %v2422 = vunpack.c.l.b16 %v2372
        %v2423 = vunpack.c.h.b16 %v2372
        %v2424 = vunpack.c.l.b16 %v2373
        %v2425 = vunpack.c.h.b16 %v2373
        %v2426 = vunpack.c.l.b16 %v2374
        %v2427 = vunpack.c.h.b16 %v2374
        %v2428 = vunpack.c.l.b16 %v2375
        %v2429 = vunpack.c.h.b16 %v2375
        %v2430 = vunpack.c.l.b16 %v2376
        %v2431 = vunpack.c.h.b16 %v2376
        %v2432 = vunpack.c.l.b16 %v2377
        %v2433 = vunpack.c.h.b16 %v2377
        %v2434 = vunpack.c.l.b16 %v2378
        %v2435 = vunpack.c.h.b16 %v2378
        %v2436 = vunpack.c.l.b16 %v2379
        %v2437 = vunpack.c.h.b16 %v2379
        %v2438 = vunpack.c.l.b16 %v2380
        %v2439 = vunpack.c.h.b16 %v2380
        %v2440 = vunpack.c.l.b16 %v2381
        %v2441 = vunpack.c.h.b16 %v2381
        %v2442 = vunpack.c.l.b16 %v2382
        %v2443 = vunpack.c.h.b16 %v2382
        %v2444 = vunpack.c.l.b16 %v2383
        %v2445 = vunpack.c.h.b16 %v2383
        %v2446 = vunpack.c.l.b16 %v2384
        %v2447 = vunpack.c.h.b16 %v2384
        %v2448 = vunpack.c.l.b16 %v2385
        %v2449 = vunpack.c.h.b16 %v2385
        %v2450 = vunpack.c.l.b16 %v2386
        %v2451 = vunpack.c.h.b16 %v2386
        %v2452 = vunpack.c.l.b16 %v2387
        %v2453 = vunpack.c.h.b16 %v2387
        %v2454 = vpack.c.b16 %v2424, %v2422
        %v2455 = vpack.c.b16 %v2425, %v2423
        %v2456 = vpack.c.b16 %v2428, %v2426
        %v2457 = vpack.c.b16 %v2429, %v2427
        %v2458 = vpack.c.b16 %v2432, %v2430
        %v2459 = vpack.c.b16 %v2433, %v2431
        %v2460 = vpack.c.b16 %v2436, %v2434
        %v2461 = vpack.c.b16 %v2437, %v2435
        %v2462 = vpack.c.b16 %v2440, %v2438
        %v2463 = vpack.c.b16 %v2441, %v2439
        %v2464 = vpack.c.b16 %v2444, %v2442
        %v2465 = vpack.c.b16 %v2445, %v2443
        %v2466 = vpack.c.b16 %v2448, %v2446
        %v2467 = vpack.c.b16 %v2449, %v2447
        %v2468 = vpack.c.b16 %v2452, %v2450
        %v2469 = vpack.c.b16 %v2453, %v2451
        %2486 = vmatprep.subr.bf16.mxu0 %v2455
        %2487 = vmatpush1.bf16.msra.mxu0 %v2454
        %2488 = vmatprep.subr.bf16.mxu0 %v2457
        %2489 = vmatpush1.bf16.msra.mxu0 %v2456
        %2490 = vmatprep.subr.bf16.mxu0 %v2459
        %2491 = vmatpush1.bf16.msra.mxu0 %v2458
        %2492 = vmatprep.subr.bf16.mxu0 %v2461
        %2493 = vmatpush1.bf16.msra.mxu0 %v2460
        %2494 = vmatprep.subr.bf16.mxu0 %v2463
        %2495 = vmatpush1.bf16.msra.mxu0 %v2462
        %2496 = vmatprep.subr.bf16.mxu0 %v2465
        %2497 = vmatpush1.bf16.msra.mxu0 %v2464
        %2498 = vmatprep.subr.bf16.mxu0 %v2467
        %2499 = vmatpush1.bf16.msra.mxu0 %v2466
        %2500 = vmatprep.subr.bf16.mxu0 %v2469
        %2501 = vmatpush1.bf16.msra.mxu0 %v2468
        %2502 = vmatprep.subr.bf16.mxu0 0
        %2503 = vmatpush1.bf16.msra.mxu0 0
        %2504 = vmatprep.subr.bf16.mxu0 0
        %2505 = vmatpush1.bf16.msra.mxu0 0
        %2506 = vmatprep.subr.bf16.mxu0 0
        %2507 = vmatpush1.bf16.msra.mxu0 0
        %2508 = vmatprep.subr.bf16.mxu0 0
        %2509 = vmatpush1.bf16.msra.mxu0 0
        %2510 = vmatprep.subr.bf16.mxu0 0
        %2511 = vmatpush1.bf16.msra.mxu0 0
        %2512 = vmatprep.subr.bf16.mxu0 0
        %2513 = vmatpush1.bf16.msra.mxu0 0
        %2514 = vmatprep.subr.bf16.mxu0 0
        %2515 = vmatpush1.bf16.msra.mxu0 0
        %2516 = vmatprep.subr.bf16.mxu0 0
        %2517 = vmatpush1.bf16.msra.mxu0 0
        %2518 = vmatprep.mubr.bf16.mxu0 0
        %2519 = vmatmul.mubr.bf16.gmra.mrb[0].mxu0 %v2404
        %v2520 = vpop.f32.mrb[0].mxu0
        %v2521 = vadd.f32 %v2393, %v2520
        %v2522 = vpop.f32.mrb[0].mxu0
        %v2523 = vadd.f32 %v2397, %v2522
        %v2524 = vpop.f32.mrb[0].mxu0
        %v2525 = vadd.f32 %v2393, %v2524
        %v2526 = vpop.f32.mrb[0].mxu0
        %v2527 = vadd.f32 %v2397, %v2526
        %2528 = vdwg.mxu0
        %v2529 = vld [vmem:[%s1018] sm:$0xf]
        %v2530 = vld [vmem:[%s1018 + $0x4] sm:$0xf]
        %v2531 = vld [vmem:[%s1018 + $0x8] sm:$0xf]
        %v2532 = vld [vmem:[%s1018 + $0xc] sm:$0xf]
        %v2533 = vld [vmem:[%s1018 + $0x10] sm:$0xf]
        %v2534 = vld [vmem:[%s1018 + $0x14] sm:$0xf]
        %v2535 = vld [vmem:[%s1018 + $0x18] sm:$0xf]
        %v2536 = vld [vmem:[%s1018 + $0x1c] sm:$0xf]
        %v2537 = vld [vmem:[%s1018 + $0x20] sm:$0xf]
        %v2538 = vld [vmem:[%s1018 + $0x24] sm:$0xf]
        %v2539 = vld [vmem:[%s1018 + $0x28] sm:$0xf]
        %v2540 = vld [vmem:[%s1018 + $0x2c] sm:$0xf]
        %v2541 = vld [vmem:[%s1018 + $0x30] sm:$0xf]
        %v2542 = vld [vmem:[%s1018 + $0x34] sm:$0xf]
        %v2543 = vld [vmem:[%s1018 + $0x38] sm:$0xf]
        %v2544 = vld [vmem:[%s1018 + $0x3c] sm:$0xf]
        %v2545 = vld [vmem:[%s1228] sm:$0x1]
        %v2547 = vlaneseq
        %v2548 = vshrl.u32 %v2547, 7
        %v2549 = vsub.s32 0, %v2548
        %v2550 = vrot.slane %v2545, %v2549
        %v2552 = vadd.f32 %v2550, 0.0
        %v2553 = vpack.c.bf16 %v2365, %v2365
        %v2554 = vpack.c.bf16 %v2525, %v2521
        %v2555 = vpack.c.bf16 %v2527, %v2523
        %v2557 = vsel %vm1554, %v2553, 0
        %v2560 = vsel %vm1554, %v2554, 0
        %2562 = vmatprep.subr.bf16.mxu0 0
        %2563 = vmatpush1.bf16.xpose.msra.mxu0 %v2560
        %2564 = vmatprep.subr.bf16.mxu0 0
        %2565 = vmatpush1.bf16.xpose.msra.mxu0 0
        %2566 = vmatprep.subr.bf16.mxu0 0
        %2567 = vmatpush1.bf16.xpose.msra.mxu0 0
        %2568 = vmatprep.subr.bf16.mxu0 0
        %2569 = vmatpush1.bf16.xpose.msra.mxu0 0
        %2570 = vmatprep.subr.bf16.mxu0 0
        %2571 = vmatpush1.bf16.xpose.msra.mxu0 0
        %2572 = vmatprep.subr.bf16.mxu0 0
        %2573 = vmatpush1.bf16.xpose.msra.mxu0 0
        %2574 = vmatprep.subr.bf16.mxu0 0
        %2575 = vmatpush1.bf16.xpose.msra.mxu0 0
        %2576 = vmatprep.subr.bf16.mxu0 0
        %2577 = vmatpush1.bf16.xpose.msra.mxu0 0
        %2578 = vmatprep.subr.bf16.mxu0 0
        %2579 = vmatpush1.bf16.xpose.msra.mxu0 0
        %2580 = vmatprep.subr.bf16.mxu0 0
        %2581 = vmatpush1.bf16.xpose.msra.mxu0 0
        %2582 = vmatprep.subr.bf16.mxu0 0
        %2583 = vmatpush1.bf16.xpose.msra.mxu0 0
        %2584 = vmatprep.subr.bf16.mxu0 0
        %2585 = vmatpush1.bf16.xpose.msra.mxu0 0
        %2586 = vmatprep.subr.bf16.mxu0 0
        %2587 = vmatpush1.bf16.xpose.msra.mxu0 0
        %2588 = vmatprep.subr.bf16.mxu0 0
        %2589 = vmatpush1.bf16.xpose.msra.mxu0 0
        %2590 = vmatprep.subr.bf16.mxu0 0
        %2591 = vmatpush1.bf16.xpose.msra.mxu0 0
        %2592 = vmatprep.subr.bf16.mxu0 0
        %2593 = vmatpush1.bf16.xpose.msra.mxu0 0
        %2594 = vmatprep.mubr.bf16.mxu0 0
        %2595 = vmatmul.mubr.bf16.gmra.mrb[0].mxu0 %v2557
        %v2596 = vpop.f32.mrb[0].mxu0
        %v2597 = vadd.f32 0.0, %v2596
        %v2598 = vpop.f32.mrb[0].mxu0
        %v2599 = vpop.f32.mrb[0].mxu0
        %v2600 = vpop.f32.mrb[0].mxu0
        %2601 = vdwg.mxu0
        %v2602 = vmul.f32 %v2597, 0.17677669
        %vm2603 = vcmask 130048
        %v2604 = vsel %vm2603, %v2602, -inf
        %2605 = vmax.xlane.f32.xlu0 %v2604
        %v2606 = vpop.xlane.xlu0 %2605
        %v2607 = vsub.f32 %v2602, %v2606
        %v2608 = vmul.f32 %v2607, 1.442695
        %v2609 = vpow.pop %v2608
        %v2610 = vsel %vm2603, %v2609, 0.0
        %2611 = vadd.xlane.f32.xlu0 %v2610
        %v2612 = vpop.xlane.xlu0 %2611
        %v2613 = vrcp.pop %v2612
        %v2614 = vmul.f32 %v2609, %v2613
        %v2615 = vadd.f32 %v2614, 0.0
        %v2616 = vpack.c.bf16 %v2614, %v2614
        %v2618 = vsel %vm2603, %v2616, 0
        %2620 = vmatprep.subr.bf16.mxu0 0
        %2621 = vmatpush1.bf16.msra.mxu0 %v2555
        %2622 = vmatprep.subr.bf16.mxu0 0
        %2623 = vmatpush1.bf16.msra.mxu0 0
        %2624 = vmatprep.subr.bf16.mxu0 0
        %2625 = vmatpush1.bf16.msra.mxu0 0
        %2626 = vmatprep.subr.bf16.mxu0 0
        %2627 = vmatpush1.bf16.msra.mxu0 0
        %2628 = vmatprep.subr.bf16.mxu0 0
        %2629 = vmatpush1.bf16.msra.mxu0 0
        %2630 = vmatprep.subr.bf16.mxu0 0
        %2631 = vmatpush1.bf16.msra.mxu0 0
        %2632 = vmatprep.subr.bf16.mxu0 0
        %2633 = vmatpush1.bf16.msra.mxu0 0
        %2634 = vmatprep.subr.bf16.mxu0 0
        %2635 = vmatpush1.bf16.msra.mxu0 0
        %2636 = vmatprep.subr.bf16.mxu0 0
        %2637 = vmatpush1.bf16.msra.mxu0 0
        %2638 = vmatprep.subr.bf16.mxu0 0
        %2639 = vmatpush1.bf16.msra.mxu0 0
        %2640 = vmatprep.subr.bf16.mxu0 0
        %2641 = vmatpush1.bf16.msra.mxu0 0
        %2642 = vmatprep.subr.bf16.mxu0 0
        %2643 = vmatpush1.bf16.msra.mxu0 0
        %2644 = vmatprep.subr.bf16.mxu0 0
        %2645 = vmatpush1.bf16.msra.mxu0 0
        %2646 = vmatprep.subr.bf16.mxu0 0
        %2647 = vmatpush1.bf16.msra.mxu0 0
        %2648 = vmatprep.subr.bf16.mxu0 0
        %2649 = vmatpush1.bf16.msra.mxu0 0
        %2650 = vmatprep.subr.bf16.mxu0 0
        %2651 = vmatpush1.bf16.msra.mxu0 0
        %2652 = vmatprep.mubr.bf16.mxu0 0
        %2653 = vmatmul.mubr.bf16.gmra.mrb[0].mxu0 %v2618
        %v2654 = vpop.f32.mrb[0].mxu0
        %v2655 = vadd.f32 0.0, %v2654
        %v2656 = vpop.f32.mrb[0].mxu0
        %v2657 = vpop.f32.mrb[0].mxu0
        %v2658 = vpop.f32.mrb[0].mxu0
        %2659 = vdwg.mxu0
        %v2660 = vpack.c.bf16 %v2655, %v2655
        %v2665 = vunpack.c.l.b16 %v2529
        %v2666 = vunpack.c.l.b16 %v2530
        %v2667 = vunpack.c.l.b16 %v2531
        %v2668 = vunpack.c.l.b16 %v2532
        %v2669 = vpack.c.b16 %v2666, %v2665
        %v2670 = vpack.c.b16 %v2668, %v2667
        %v2674 = vsel %vm1554, %v2660, 0
        %2676 = vmatprep.subr.bf16.mxu0 0
        %2677 = vmatpush1.bf16.msra.mxu0 %v2669
        %2678 = vmatprep.subr.bf16.mxu0 0
        %2679 = vmatpush1.bf16.msra.mxu0 %v2670
        %2680 = vmatprep.subr.bf16.mxu0 0
        %2681 = vmatpush1.bf16.msra.mxu0 0
        %2682 = vmatprep.subr.bf16.mxu0 0
        %2683 = vmatpush1.bf16.msra.mxu0 0
        %2684 = vmatprep.subr.bf16.mxu0 0
        %2685 = vmatpush1.bf16.msra.mxu0 0
        %2686 = vmatprep.subr.bf16.mxu0 0
        %2687 = vmatpush1.bf16.msra.mxu0 0
        %2688 = vmatprep.subr.bf16.mxu0 0
        %2689 = vmatpush1.bf16.msra.mxu0 0
        %2690 = vmatprep.subr.bf16.mxu0 0
        %2691 = vmatpush1.bf16.msra.mxu0 0
        %2692 = vmatprep.subr.bf16.mxu0 0
        %2693 = vmatpush1.bf16.msra.mxu0 0
        %2694 = vmatprep.subr.bf16.mxu0 0
        %2695 = vmatpush1.bf16.msra.mxu0 0
        %2696 = vmatprep.subr.bf16.mxu0 0
        %2697 = vmatpush1.bf16.msra.mxu0 0
        %2698 = vmatprep.subr.bf16.mxu0 0
        %2699 = vmatpush1.bf16.msra.mxu0 0
        %2700 = vmatprep.subr.bf16.mxu0 0
        %2701 = vmatpush1.bf16.msra.mxu0 0
        %2702 = vmatprep.subr.bf16.mxu0 0
        %2703 = vmatpush1.bf16.msra.mxu0 0
        %2704 = vmatprep.subr.bf16.mxu0 0
        %2705 = vmatpush1.bf16.msra.mxu0 0
        %2706 = vmatprep.subr.bf16.mxu0 0
        %2707 = vmatpush1.bf16.msra.mxu0 0
        %2708 = vmatprep.mubr.bf16.mxu0 0
        %2709 = vmatmul.mubr.bf16.gmra.mrb[0].mxu0 %v2674
        %v2710 = vpop.f32.mrb[0].mxu0
        %v2711 = vadd.f32 0.0, %v2710
        %v2712 = vpop.f32.mrb[0].mxu0
        %v2713 = vpop.f32.mrb[0].mxu0
        %v2714 = vpop.f32.mrb[0].mxu0
        %2715 = vdwg.mxu0
        %v2716 = vadd.f32 %v2552, %v2711
        %2718 = vrot.lane.b32.xlu0 %v2553, 96
        %v2719 = vpop.permute.xlu0 %2718
        %2721 = vrot.lane.b32.xlu0 %v2554, 96
        %v2722 = vpop.permute.xlu0 %2721
        %v2724 = vsel %vm1554, %v2719, 0
        %v2727 = vsel %vm1554, %v2722, 0
        %2729 = vmatprep.subr.bf16.mxu0 0
        %2730 = vmatpush1.bf16.xpose.msra.mxu0 %v2727
        %2731 = vmatprep.subr.bf16.mxu0 0
        %2732 = vmatpush1.bf16.xpose.msra.mxu0 0
        %2733 = vmatprep.subr.bf16.mxu0 0
        %2734 = vmatpush1.bf16.xpose.msra.mxu0 0
        %2735 = vmatprep.subr.bf16.mxu0 0
        %2736 = vmatpush1.bf16.xpose.msra.mxu0 0
        %2737 = vmatprep.subr.bf16.mxu0 0
        %2738 = vmatpush1.bf16.xpose.msra.mxu0 0
        %2739 = vmatprep.subr.bf16.mxu0 0
        %2740 = vmatpush1.bf16.xpose.msra.mxu0 0
        %2741 = vmatprep.subr.bf16.mxu0 0
        %2742 = vmatpush1.bf16.xpose.msra.mxu0 0
        %2743 = vmatprep.subr.bf16.mxu0 0
        %2744 = vmatpush1.bf16.xpose.msra.mxu0 0
        %2745 = vmatprep.subr.bf16.mxu0 0
        %2746 = vmatpush1.bf16.xpose.msra.mxu0 0
        %2747 = vmatprep.subr.bf16.mxu0 0
        %2748 = vmatpush1.bf16.xpose.msra.mxu0 0
        %2749 = vmatprep.subr.bf16.mxu0 0
        %2750 = vmatpush1.bf16.xpose.msra.mxu0 0
        %2751 = vmatprep.subr.bf16.mxu0 0
        %2752 = vmatpush1.bf16.xpose.msra.mxu0 0
        %2753 = vmatprep.subr.bf16.mxu0 0
        %2754 = vmatpush1.bf16.xpose.msra.mxu0 0
        %2755 = vmatprep.subr.bf16.mxu0 0
        %2756 = vmatpush1.bf16.xpose.msra.mxu0 0
        %2757 = vmatprep.subr.bf16.mxu0 0
        %2758 = vmatpush1.bf16.xpose.msra.mxu0 0
        %2759 = vmatprep.subr.bf16.mxu0 0
        %2760 = vmatpush1.bf16.xpose.msra.mxu0 0
        %2761 = vmatprep.mubr.bf16.mxu0 0
        %2762 = vmatmul.mubr.bf16.gmra.mrb[0].mxu0 %v2724
        %v2763 = vpop.f32.mrb[0].mxu0
        %v2764 = vadd.f32 0.0, %v2763
        %v2765 = vpop.f32.mrb[0].mxu0
        %v2766 = vpop.f32.mrb[0].mxu0
        %v2767 = vpop.f32.mrb[0].mxu0
        %2768 = vdwg.mxu0
        %v2769 = vmul.f32 %v2764, 0.17677669
        %v2770 = vsel %vm2603, %v2769, -inf
        %2771 = vmax.xlane.f32.xlu0 %v2770
        %v2772 = vpop.xlane.xlu0 %2771
        %v2773 = vsub.f32 %v2769, %v2772
        %v2774 = vmul.f32 %v2773, 1.442695
        %v2775 = vpow.pop %v2774
        %v2776 = vsel %vm2603, %v2775, 0.0
        %2777 = vadd.xlane.f32.xlu0 %v2776
        %v2778 = vpop.xlane.xlu0 %2777
        %v2779 = vrcp.pop %v2778
        %v2780 = vmul.f32 %v2775, %v2779
        %v2781 = vadd.f32 %v2615, %v2780
        %v2782 = vpack.c.bf16 %v2780, %v2780
        %2784 = vrot.lane.b32.xlu0 %v2555, 96
        %v2785 = vpop.permute.xlu0 %2784
        %v2788 = vsel %vm2603, %v2782, 0
        %2790 = vmatprep.subr.bf16.mxu0 0
        %2791 = vmatpush1.bf16.msra.mxu0 %v2785
        %2792 = vmatprep.subr.bf16.mxu0 0
        %2793 = vmatpush1.bf16.msra.mxu0 0
        %2794 = vmatprep.subr.bf16.mxu0 0
        %2795 = vmatpush1.bf16.msra.mxu0 0
        %2796 = vmatprep.subr.bf16.mxu0 0
        %2797 = vmatpush1.bf16.msra.mxu0 0
        %2798 = vmatprep.subr.bf16.mxu0 0
        %2799 = vmatpush1.bf16.msra.mxu0 0
        %2800 = vmatprep.subr.bf16.mxu0 0
        %2801 = vmatpush1.bf16.msra.mxu0 0
        %2802 = vmatprep.subr.bf16.mxu0 0
        %2803 = vmatpush1.bf16.msra.mxu0 0
        %2804 = vmatprep.subr.bf16.mxu0 0
        %2805 = vmatpush1.bf16.msra.mxu0 0
        %2806 = vmatprep.subr.bf16.mxu0 0
        %2807 = vmatpush1.bf16.msra.mxu0 0
        %2808 = vmatprep.subr.bf16.mxu0 0
        %2809 = vmatpush1.bf16.msra.mxu0 0
        %2810 = vmatprep.subr.bf16.mxu0 0
        %2811 = vmatpush1.bf16.msra.mxu0 0
        %2812 = vmatprep.subr.bf16.mxu0 0
        %2813 = vmatpush1.bf16.msra.mxu0 0
        %2814 = vmatprep.subr.bf16.mxu0 0
        %2815 = vmatpush1.bf16.msra.mxu0 0
        %2816 = vmatprep.subr.bf16.mxu0 0
        %2817 = vmatpush1.bf16.msra.mxu0 0
        %2818 = vmatprep.subr.bf16.mxu0 0
        %2819 = vmatpush1.bf16.msra.mxu0 0
        %2820 = vmatprep.subr.bf16.mxu0 0
        %2821 = vmatpush1.bf16.msra.mxu0 0
        %2822 = vmatprep.mubr.bf16.mxu0 0
        %2823 = vmatmul.mubr.bf16.gmra.mrb[0].mxu0 %v2788
        %v2824 = vpop.f32.mrb[0].mxu0
        %v2825 = vadd.f32 0.0, %v2824
        %v2826 = vpop.f32.mrb[0].mxu0
        %v2827 = vpop.f32.mrb[0].mxu0
        %v2828 = vpop.f32.mrb[0].mxu0
        %2829 = vdwg.mxu0
        %v2830 = vpack.c.bf16 %v2825, %v2825
        %v2835 = vunpack.c.l.b16 %v2533
        %v2836 = vunpack.c.l.b16 %v2534
        %v2837 = vunpack.c.l.b16 %v2535
        %v2838 = vunpack.c.l.b16 %v2536
        %v2839 = vpack.c.b16 %v2836, %v2835
        %v2840 = vpack.c.b16 %v2838, %v2837
        %v2844 = vsel %vm1554, %v2830, 0
        %2846 = vmatprep.subr.bf16.mxu0 0
        %2847 = vmatpush1.bf16.msra.mxu0 %v2839
        %2848 = vmatprep.subr.bf16.mxu0 0
        %2849 = vmatpush1.bf16.msra.mxu0 %v2840
        %2850 = vmatprep.subr.bf16.mxu0 0
        %2851 = vmatpush1.bf16.msra.mxu0 0
        %2852 = vmatprep.subr.bf16.mxu0 0
        %2853 = vmatpush1.bf16.msra.mxu0 0
        %2854 = vmatprep.subr.bf16.mxu0 0
        %2855 = vmatpush1.bf16.msra.mxu0 0
        %2856 = vmatprep.subr.bf16.mxu0 0
        %2857 = vmatpush1.bf16.msra.mxu0 0
        %2858 = vmatprep.subr.bf16.mxu0 0
        %2859 = vmatpush1.bf16.msra.mxu0 0
        %2860 = vmatprep.subr.bf16.mxu0 0
        %2861 = vmatpush1.bf16.msra.mxu0 0
        %2862 = vmatprep.subr.bf16.mxu0 0
        %2863 = vmatpush1.bf16.msra.mxu0 0
        %2864 = vmatprep.subr.bf16.mxu0 0
        %2865 = vmatpush1.bf16.msra.mxu0 0
        %2866 = vmatprep.subr.bf16.mxu0 0
        %2867 = vmatpush1.bf16.msra.mxu0 0
        %2868 = vmatprep.subr.bf16.mxu0 0
        %2869 = vmatpush1.bf16.msra.mxu0 0
        %2870 = vmatprep.subr.bf16.mxu0 0
        %2871 = vmatpush1.bf16.msra.mxu0 0
        %2872 = vmatprep.subr.bf16.mxu0 0
        %2873 = vmatpush1.bf16.msra.mxu0 0
        %2874 = vmatprep.subr.bf16.mxu0 0
        %2875 = vmatpush1.bf16.msra.mxu0 0
        %2876 = vmatprep.subr.bf16.mxu0 0
        %2877 = vmatpush1.bf16.msra.mxu0 0
        %2878 = vmatprep.mubr.bf16.mxu0 0
        %2879 = vmatmul.mubr.bf16.gmra.mrb[0].mxu0 %v2844
        %v2880 = vpop.f32.mrb[0].mxu0
        %v2881 = vadd.f32 0.0, %v2880
        %v2882 = vpop.f32.mrb[0].mxu0
        %v2883 = vpop.f32.mrb[0].mxu0
        %v2884 = vpop.f32.mrb[0].mxu0
        %2885 = vdwg.mxu0
        %v2886 = vadd.f32 %v2716, %v2881
        %2887 = vrot.lane.b32.xlu0 %v2553, 64
        %v2888 = vpop.permute.xlu0 %2887
        %2889 = vrot.lane.b32.xlu0 %v2554, 64
        %v2890 = vpop.permute.xlu0 %2889
        %v2892 = vsel %vm1554, %v2888, 0
        %v2895 = vsel %vm1554, %v2890, 0
        %2897 = vmatprep.subr.bf16.mxu0 0
        %2898 = vmatpush1.bf16.xpose.msra.mxu0 %v2895
        %2899 = vmatprep.subr.bf16.mxu0 0
        %2900 = vmatpush1.bf16.xpose.msra.mxu0 0
        %2901 = vmatprep.subr.bf16.mxu0 0
        %2902 = vmatpush1.bf16.xpose.msra.mxu0 0
        %2903 = vmatprep.subr.bf16.mxu0 0
        %2904 = vmatpush1.bf16.xpose.msra.mxu0 0
        %2905 = vmatprep.subr.bf16.mxu0 0
        %2906 = vmatpush1.bf16.xpose.msra.mxu0 0
        %2907 = vmatprep.subr.bf16.mxu0 0
        %2908 = vmatpush1.bf16.xpose.msra.mxu0 0
        %2909 = vmatprep.subr.bf16.mxu0 0
        %2910 = vmatpush1.bf16.xpose.msra.mxu0 0
        %2911 = vmatprep.subr.bf16.mxu0 0
        %2912 = vmatpush1.bf16.xpose.msra.mxu0 0
        %2913 = vmatprep.subr.bf16.mxu0 0
        %2914 = vmatpush1.bf16.xpose.msra.mxu0 0
        %2915 = vmatprep.subr.bf16.mxu0 0
        %2916 = vmatpush1.bf16.xpose.msra.mxu0 0
        %2917 = vmatprep.subr.bf16.mxu0 0
        %2918 = vmatpush1.bf16.xpose.msra.mxu0 0
        %2919 = vmatprep.subr.bf16.mxu0 0
        %2920 = vmatpush1.bf16.xpose.msra.mxu0 0
        %2921 = vmatprep.subr.bf16.mxu0 0
        %2922 = vmatpush1.bf16.xpose.msra.mxu0 0
        %2923 = vmatprep.subr.bf16.mxu0 0
        %2924 = vmatpush1.bf16.xpose.msra.mxu0 0
        %2925 = vmatprep.subr.bf16.mxu0 0
        %2926 = vmatpush1.bf16.xpose.msra.mxu0 0
        %2927 = vmatprep.subr.bf16.mxu0 0
        %2928 = vmatpush1.bf16.xpose.msra.mxu0 0
        %2929 = vmatprep.mubr.bf16.mxu0 0
        %2930 = vmatmul.mubr.bf16.gmra.mrb[0].mxu0 %v2892
        %v2931 = vpop.f32.mrb[0].mxu0
        %v2932 = vadd.f32 0.0, %v2931
        %v2933 = vpop.f32.mrb[0].mxu0
        %v2934 = vpop.f32.mrb[0].mxu0
        %v2935 = vpop.f32.mrb[0].mxu0
        %2936 = vdwg.mxu0
        %v2937 = vmul.f32 %v2932, 0.17677669
        %v2938 = vsel %vm2603, %v2937, -inf
        %2939 = vmax.xlane.f32.xlu0 %v2938
        %v2940 = vpop.xlane.xlu0 %2939
        %v2941 = vsub.f32 %v2937, %v2940
        %v2942 = vmul.f32 %v2941, 1.442695
        %v2943 = vpow.pop %v2942
        %v2944 = vsel %vm2603, %v2943, 0.0
        %2945 = vadd.xlane.f32.xlu0 %v2944
        %v2946 = vpop.xlane.xlu0 %2945
        %v2947 = vrcp.pop %v2946
        %v2948 = vmul.f32 %v2943, %v2947
        %v2949 = vadd.f32 %v2781, %v2948
        %v2950 = vpack.c.bf16 %v2948, %v2948
        %2951 = vrot.lane.b32.xlu0 %v2555, 64
        %v2952 = vpop.permute.xlu0 %2951
        %v2955 = vsel %vm2603, %v2950, 0
        %2957 = vmatprep.subr.bf16.mxu0 0
        %2958 = vmatpush1.bf16.msra.mxu0 %v2952
        %2959 = vmatprep.subr.bf16.mxu0 0
        %2960 = vmatpush1.bf16.msra.mxu0 0
        %2961 = vmatprep.subr.bf16.mxu0 0
        %2962 = vmatpush1.bf16.msra.mxu0 0
        %2963 = vmatprep.subr.bf16.mxu0 0
        %2964 = vmatpush1.bf16.msra.mxu0 0
        %2965 = vmatprep.subr.bf16.mxu0 0
        %2966 = vmatpush1.bf16.msra.mxu0 0
        %2967 = vmatprep.subr.bf16.mxu0 0
        %2968 = vmatpush1.bf16.msra.mxu0 0
        %2969 = vmatprep.subr.bf16.mxu0 0
        %2970 = vmatpush1.bf16.msra.mxu0 0
        %2971 = vmatprep.subr.bf16.mxu0 0
        %2972 = vmatpush1.bf16.msra.mxu0 0
        %2973 = vmatprep.subr.bf16.mxu0 0
        %2974 = vmatpush1.bf16.msra.mxu0 0
        %2975 = vmatprep.subr.bf16.mxu0 0
        %2976 = vmatpush1.bf16.msra.mxu0 0
        %2977 = vmatprep.subr.bf16.mxu0 0
        %2978 = vmatpush1.bf16.msra.mxu0 0
        %2979 = vmatprep.subr.bf16.mxu0 0
        %2980 = vmatpush1.bf16.msra.mxu0 0
        %2981 = vmatprep.subr.bf16.mxu0 0
        %2982 = vmatpush1.bf16.msra.mxu0 0
        %2983 = vmatprep.subr.bf16.mxu0 0
        %2984 = vmatpush1.bf16.msra.mxu0 0
        %2985 = vmatprep.subr.bf16.mxu0 0
        %2986 = vmatpush1.bf16.msra.mxu0 0
        %2987 = vmatprep.subr.bf16.mxu0 0
        %2988 = vmatpush1.bf16.msra.mxu0 0
        %2989 = vmatprep.mubr.bf16.mxu0 0
        %2990 = vmatmul.mubr.bf16.gmra.mrb[0].mxu0 %v2955
        %v2991 = vpop.f32.mrb[0].mxu0
        %v2992 = vadd.f32 0.0, %v2991
        %v2993 = vpop.f32.mrb[0].mxu0
        %v2994 = vpop.f32.mrb[0].mxu0
        %v2995 = vpop.f32.mrb[0].mxu0
        %2996 = vdwg.mxu0
        %v2997 = vpack.c.bf16 %v2992, %v2992
        %v3002 = vunpack.c.l.b16 %v2537
        %v3003 = vunpack.c.l.b16 %v2538
        %v3004 = vunpack.c.l.b16 %v2539
        %v3005 = vunpack.c.l.b16 %v2540
        %v3006 = vpack.c.b16 %v3003, %v3002
        %v3007 = vpack.c.b16 %v3005, %v3004
        %v3011 = vsel %vm1554, %v2997, 0
        %3013 = vmatprep.subr.bf16.mxu0 0
        %3014 = vmatpush1.bf16.msra.mxu0 %v3006
        %3015 = vmatprep.subr.bf16.mxu0 0
        %3016 = vmatpush1.bf16.msra.mxu0 %v3007
        %3017 = vmatprep.subr.bf16.mxu0 0
        %3018 = vmatpush1.bf16.msra.mxu0 0
        %3019 = vmatprep.subr.bf16.mxu0 0
        %3020 = vmatpush1.bf16.msra.mxu0 0
        %3021 = vmatprep.subr.bf16.mxu0 0
        %3022 = vmatpush1.bf16.msra.mxu0 0
        %3023 = vmatprep.subr.bf16.mxu0 0
        %3024 = vmatpush1.bf16.msra.mxu0 0
        %3025 = vmatprep.subr.bf16.mxu0 0
        %3026 = vmatpush1.bf16.msra.mxu0 0
        %3027 = vmatprep.subr.bf16.mxu0 0
        %3028 = vmatpush1.bf16.msra.mxu0 0
        %3029 = vmatprep.subr.bf16.mxu0 0
        %3030 = vmatpush1.bf16.msra.mxu0 0
        %3031 = vmatprep.subr.bf16.mxu0 0
        %3032 = vmatpush1.bf16.msra.mxu0 0
        %3033 = vmatprep.subr.bf16.mxu0 0
        %3034 = vmatpush1.bf16.msra.mxu0 0
        %3035 = vmatprep.subr.bf16.mxu0 0
        %3036 = vmatpush1.bf16.msra.mxu0 0
        %3037 = vmatprep.subr.bf16.mxu0 0
        %3038 = vmatpush1.bf16.msra.mxu0 0
        %3039 = vmatprep.subr.bf16.mxu0 0
        %3040 = vmatpush1.bf16.msra.mxu0 0
        %3041 = vmatprep.subr.bf16.mxu0 0
        %3042 = vmatpush1.bf16.msra.mxu0 0
        %3043 = vmatprep.subr.bf16.mxu0 0
        %3044 = vmatpush1.bf16.msra.mxu0 0
        %3045 = vmatprep.mubr.bf16.mxu0 0
        %3046 = vmatmul.mubr.bf16.gmra.mrb[0].mxu0 %v3011
        %v3047 = vpop.f32.mrb[0].mxu0
        %v3048 = vadd.f32 0.0, %v3047
        %v3049 = vpop.f32.mrb[0].mxu0
        %v3050 = vpop.f32.mrb[0].mxu0
        %v3051 = vpop.f32.mrb[0].mxu0
        %3052 = vdwg.mxu0
        %v3053 = vadd.f32 %v2886, %v3048
        %3054 = vrot.lane.b32.xlu0 %v2553, 32
        %v3055 = vpop.permute.xlu0 %3054
        %3056 = vrot.lane.b32.xlu0 %v2554, 32
        %v3057 = vpop.permute.xlu0 %3056
        %v3059 = vsel %vm1554, %v3055, 0
        %v3062 = vsel %vm1554, %v3057, 0
        %3064 = vmatprep.subr.bf16.mxu0 0
        %3065 = vmatpush1.bf16.xpose.msra.mxu0 %v3062
        %3066 = vmatprep.subr.bf16.mxu0 0
        %3067 = vmatpush1.bf16.xpose.msra.mxu0 0
        %3068 = vmatprep.subr.bf16.mxu0 0
        %3069 = vmatpush1.bf16.xpose.msra.mxu0 0
        %3070 = vmatprep.subr.bf16.mxu0 0
        %3071 = vmatpush1.bf16.xpose.msra.mxu0 0
        %3072 = vmatprep.subr.bf16.mxu0 0
        %3073 = vmatpush1.bf16.xpose.msra.mxu0 0
        %3074 = vmatprep.subr.bf16.mxu0 0
        %3075 = vmatpush1.bf16.xpose.msra.mxu0 0
        %3076 = vmatprep.subr.bf16.mxu0 0
        %3077 = vmatpush1.bf16.xpose.msra.mxu0 0
        %3078 = vmatprep.subr.bf16.mxu0 0
        %3079 = vmatpush1.bf16.xpose.msra.mxu0 0
        %3080 = vmatprep.subr.bf16.mxu0 0
        %3081 = vmatpush1.bf16.xpose.msra.mxu0 0
        %3082 = vmatprep.subr.bf16.mxu0 0
        %3083 = vmatpush1.bf16.xpose.msra.mxu0 0
        %3084 = vmatprep.subr.bf16.mxu0 0
        %3085 = vmatpush1.bf16.xpose.msra.mxu0 0
        %3086 = vmatprep.subr.bf16.mxu0 0
        %3087 = vmatpush1.bf16.xpose.msra.mxu0 0
        %3088 = vmatprep.subr.bf16.mxu0 0
        %3089 = vmatpush1.bf16.xpose.msra.mxu0 0
        %3090 = vmatprep.subr.bf16.mxu0 0
        %3091 = vmatpush1.bf16.xpose.msra.mxu0 0
        %3092 = vmatprep.subr.bf16.mxu0 0
        %3093 = vmatpush1.bf16.xpose.msra.mxu0 0
        %3094 = vmatprep.subr.bf16.mxu0 0
        %3095 = vmatpush1.bf16.xpose.msra.mxu0 0
        %3096 = vmatprep.mubr.bf16.mxu0 0
        %3097 = vmatmul.mubr.bf16.gmra.mrb[0].mxu0 %v3059
        %v3098 = vpop.f32.mrb[0].mxu0
        %v3099 = vadd.f32 0.0, %v3098
        %v3100 = vpop.f32.mrb[0].mxu0
        %v3101 = vpop.f32.mrb[0].mxu0
        %v3102 = vpop.f32.mrb[0].mxu0
        %3103 = vdwg.mxu0
        %v3104 = vmul.f32 %v3099, 0.17677669
        %v3105 = vsel %vm2603, %v3104, -inf
        %3106 = vmax.xlane.f32.xlu0 %v3105
        %v3107 = vpop.xlane.xlu0 %3106
        %v3108 = vsub.f32 %v3104, %v3107
        %v3109 = vmul.f32 %v3108, 1.442695
        %v3110 = vpow.pop %v3109
        %v3111 = vsel %vm2603, %v3110, 0.0
        %3112 = vadd.xlane.f32.xlu0 %v3111
        %v3113 = vpop.xlane.xlu0 %3112
        %v3114 = vrcp.pop %v3113
        %v3115 = vmul.f32 %v3110, %v3114
        %v3116 = vadd.f32 %v2949, %v3115
        %v3117 = vpack.c.bf16 %v3115, %v3115
        %3118 = vrot.lane.b32.xlu0 %v2555, 32
        %v3119 = vpop.permute.xlu0 %3118
        %v3122 = vsel %vm2603, %v3117, 0
        %3124 = vmatprep.subr.bf16.mxu0 0
        %3125 = vmatpush1.bf16.msra.mxu0 %v3119
        %3126 = vmatprep.subr.bf16.mxu0 0
        %3127 = vmatpush1.bf16.msra.mxu0 0
        %3128 = vmatprep.subr.bf16.mxu0 0
        %3129 = vmatpush1.bf16.msra.mxu0 0
        %3130 = vmatprep.subr.bf16.mxu0 0
        %3131 = vmatpush1.bf16.msra.mxu0 0
        %3132 = vmatprep.subr.bf16.mxu0 0
        %3133 = vmatpush1.bf16.msra.mxu0 0
        %3134 = vmatprep.subr.bf16.mxu0 0
        %3135 = vmatpush1.bf16.msra.mxu0 0
        %3136 = vmatprep.subr.bf16.mxu0 0
        %3137 = vmatpush1.bf16.msra.mxu0 0
        %3138 = vmatprep.subr.bf16.mxu0 0
        %3139 = vmatpush1.bf16.msra.mxu0 0
        %3140 = vmatprep.subr.bf16.mxu0 0
        %3141 = vmatpush1.bf16.msra.mxu0 0
        %3142 = vmatprep.subr.bf16.mxu0 0
        %3143 = vmatpush1.bf16.msra.mxu0 0
        %3144 = vmatprep.subr.bf16.mxu0 0
        %3145 = vmatpush1.bf16.msra.mxu0 0
        %3146 = vmatprep.subr.bf16.mxu0 0
        %3147 = vmatpush1.bf16.msra.mxu0 0
        %3148 = vmatprep.subr.bf16.mxu0 0
        %3149 = vmatpush1.bf16.msra.mxu0 0
        %3150 = vmatprep.subr.bf16.mxu0 0
        %3151 = vmatpush1.bf16.msra.mxu0 0
        %3152 = vmatprep.subr.bf16.mxu0 0
        %3153 = vmatpush1.bf16.msra.mxu0 0
        %3154 = vmatprep.subr.bf16.mxu0 0
        %3155 = vmatpush1.bf16.msra.mxu0 0
        %3156 = vmatprep.mubr.bf16.mxu0 0
        %3157 = vmatmul.mubr.bf16.gmra.mrb[0].mxu0 %v3122
        %v3158 = vpop.f32.mrb[0].mxu0
        %v3159 = vadd.f32 0.0, %v3158
        %v3160 = vpop.f32.mrb[0].mxu0
        %v3161 = vpop.f32.mrb[0].mxu0
        %v3162 = vpop.f32.mrb[0].mxu0
        %3163 = vdwg.mxu0
        %v3164 = vpack.c.bf16 %v3159, %v3159
        %v3169 = vunpack.c.l.b16 %v2541
        %v3170 = vunpack.c.l.b16 %v2542
        %v3171 = vunpack.c.l.b16 %v2543
        %v3172 = vunpack.c.l.b16 %v2544
        %v3173 = vpack.c.b16 %v3170, %v3169
        %v3174 = vpack.c.b16 %v3172, %v3171
        %v3178 = vsel %vm1554, %v3164, 0
        %3180 = vmatprep.subr.bf16.mxu0 0
        %3181 = vmatpush1.bf16.msra.mxu0 %v3173
        %3182 = vmatprep.subr.bf16.mxu0 0
        %3183 = vmatpush1.bf16.msra.mxu0 %v3174
        %3184 = vmatprep.subr.bf16.mxu0 0
        %3185 = vmatpush1.bf16.msra.mxu0 0
        %3186 = vmatprep.subr.bf16.mxu0 0
        %3187 = vmatpush1.bf16.msra.mxu0 0
        %3188 = vmatprep.subr.bf16.mxu0 0
        %3189 = vmatpush1.bf16.msra.mxu0 0
        %3190 = vmatprep.subr.bf16.mxu0 0
        %3191 = vmatpush1.bf16.msra.mxu0 0
        %3192 = vmatprep.subr.bf16.mxu0 0
        %3193 = vmatpush1.bf16.msra.mxu0 0
        %3194 = vmatprep.subr.bf16.mxu0 0
        %3195 = vmatpush1.bf16.msra.mxu0 0
        %3196 = vmatprep.subr.bf16.mxu0 0
        %3197 = vmatpush1.bf16.msra.mxu0 0
        %3198 = vmatprep.subr.bf16.mxu0 0
        %3199 = vmatpush1.bf16.msra.mxu0 0
        %3200 = vmatprep.subr.bf16.mxu0 0
        %3201 = vmatpush1.bf16.msra.mxu0 0
        %3202 = vmatprep.subr.bf16.mxu0 0
        %3203 = vmatpush1.bf16.msra.mxu0 0
        %3204 = vmatprep.subr.bf16.mxu0 0
        %3205 = vmatpush1.bf16.msra.mxu0 0
        %3206 = vmatprep.subr.bf16.mxu0 0
        %3207 = vmatpush1.bf16.msra.mxu0 0
        %3208 = vmatprep.subr.bf16.mxu0 0
        %3209 = vmatpush1.bf16.msra.mxu0 0
        %3210 = vmatprep.subr.bf16.mxu0 0
        %3211 = vmatpush1.bf16.msra.mxu0 0
        %3212 = vmatprep.mubr.bf16.mxu0 0
        %3213 = vmatmul.mubr.bf16.gmra.mrb[0].mxu0 %v3178
        %v3214 = vpop.f32.mrb[0].mxu0
        %v3215 = vadd.f32 0.0, %v3214
        %v3216 = vpop.f32.mrb[0].mxu0
        %v3217 = vpop.f32.mrb[0].mxu0
        %v3218 = vpop.f32.mrb[0].mxu0
        %3219 = vdwg.mxu0
        %v3220 = vadd.f32 %v3053, %v3215
        %v3221 = vmul.f32 %v3116, 0.25
        %v3222 = vadd.f32 %v2257, %v3220
        %v3223 = vld [vmem:[%s1231] sm:$0x1]
        %v3224 = vld [vmem:[%s1234] sm:$0x1]
        %3225 = vadd.xlane.f32.xlu0 %v3222
        %v3226 = vpop.xlane.xlu0 %3225
        %v3227 = vmul.f32 %v3226, %v2231
        %v3228 = vmul.f32 %v3222, %v3222
        %3229 = vadd.xlane.f32.xlu0 %v3228
        %v3230 = vpop.xlane.xlu0 %3229
        %v3231 = vmul.f32 %v3230, %v2231
        %v3232 = vmul.f32 %v3227, %v3227
        %v3233 = vsub.f32 %v3231, %v3232
        %v3234 = vmax.f32 %v3233, 0.0
        %v3235 = vsub.f32 %v3222, %v3227
        %v3236 = vadd.f32 %v3234, 1e-05
        %v3237 = vrsqrt.pop %v3236
        %v3238 = vmul.f32 %v3235, %v3237
        %v3240 = vlaneseq
        %v3241 = vshrl.u32 %v3240, 7
        %v3242 = vsub.s32 0, %v3241
        %v3243 = vrot.slane %v3223, %v3242
        %v3245 = vmul.f32 %v3238, %v3243
        %v3247 = vlaneseq
        %v3248 = vshrl.u32 %v3247, 7
        %v3249 = vsub.s32 0, %v3248
        %v3250 = vrot.slane %v3224, %v3249
        %v3252 = vadd.f32 %v3245, %v3250
        %3253 = vst.msk [vmem:[%s1259] sm:$0xff] %vm2603, %v3221
        %v3254 = vpack.c.bf16 %v3252, %v3252
        %v3255 = vld [vmem:[%s1027] sm:$0xff]
        %v3256 = vld [vmem:[%s1027 + $0x8] sm:$0xff]
        %v3257 = vld [vmem:[%s1027 + $0x10] sm:$0xff]
        %v3258 = vld [vmem:[%s1027 + $0x18] sm:$0xff]
        %v3259 = vld [vmem:[%s1027 + $0x20] sm:$0xff]
        %v3260 = vld [vmem:[%s1027 + $0x28] sm:$0xff]
        %v3261 = vld [vmem:[%s1027 + $0x30] sm:$0xff]
        %v3262 = vld [vmem:[%s1027 + $0x38] sm:$0xff]
        %v3263 = vld [vmem:[%s1027 + $0x40] sm:$0xff]
        %v3264 = vld [vmem:[%s1027 + $0x48] sm:$0xff]
        %v3265 = vld [vmem:[%s1027 + $0x50] sm:$0xff]
        %v3266 = vld [vmem:[%s1027 + $0x58] sm:$0xff]
        %v3267 = vld [vmem:[%s1027 + $0x60] sm:$0xff]
        %v3268 = vld [vmem:[%s1027 + $0x68] sm:$0xff]
        %v3269 = vld [vmem:[%s1027 + $0x70] sm:$0xff]
        %v3270 = vld [vmem:[%s1027 + $0x78] sm:$0xff]
        %v3271 = vld [vmem:[%s1238] sm:$0x3]
        %v3273 = vlaneseq
        %v3274 = vshrl.u32 %v3273, 7
        %v3275 = vsub.s32 0, %v3274
        %v3276 = vrot.slane %v3271, %v3275
        %v3277 = vlaneseq
        %v3278 = vshrl.u32 %v3277, 7
        %v3279 = vsub.s32 1, %v3278
        %v3280 = vrot.slane %v3271, %v3279
        %v3299 = vunpack.c.l.b16 %v3255
        %v3300 = vunpack.c.h.b16 %v3255
        %v3301 = vunpack.c.l.b16 %v3256
        %v3302 = vunpack.c.h.b16 %v3256
        %v3303 = vunpack.c.l.b16 %v3257
        %v3304 = vunpack.c.h.b16 %v3257
        %v3305 = vunpack.c.l.b16 %v3258
        %v3306 = vunpack.c.h.b16 %v3258
        %v3307 = vunpack.c.l.b16 %v3259
        %v3308 = vunpack.c.h.b16 %v3259
        %v3309 = vunpack.c.l.b16 %v3260
        %v3310 = vunpack.c.h.b16 %v3260
        %v3311 = vunpack.c.l.b16 %v3261
        %v3312 = vunpack.c.h.b16 %v3261
        %v3313 = vunpack.c.l.b16 %v3262
        %v3314 = vunpack.c.h.b16 %v3262
        %v3315 = vunpack.c.l.b16 %v3263
        %v3316 = vunpack.c.h.b16 %v3263
        %v3317 = vunpack.c.l.b16 %v3264
        %v3318 = vunpack.c.h.b16 %v3264
        %v3319 = vunpack.c.l.b16 %v3265
        %v3320 = vunpack.c.h.b16 %v3265
        %v3321 = vunpack.c.l.b16 %v3266
        %v3322 = vunpack.c.h.b16 %v3266
        %v3323 = vunpack.c.l.b16 %v3267
        %v3324 = vunpack.c.h.b16 %v3267
        %v3325 = vunpack.c.l.b16 %v3268
        %v3326 = vunpack.c.h.b16 %v3268
        %v3327 = vunpack.c.l.b16 %v3269
        %v3328 = vunpack.c.h.b16 %v3269
        %v3329 = vunpack.c.l.b16 %v3270
        %v3330 = vunpack.c.h.b16 %v3270
        %v3331 = vpack.c.b16 %v3301, %v3299
        %v3332 = vpack.c.b16 %v3302, %v3300
        %v3333 = vpack.c.b16 %v3305, %v3303
        %v3334 = vpack.c.b16 %v3306, %v3304
        %v3335 = vpack.c.b16 %v3309, %v3307
        %v3336 = vpack.c.b16 %v3310, %v3308
        %v3337 = vpack.c.b16 %v3313, %v3311
        %v3338 = vpack.c.b16 %v3314, %v3312
        %v3339 = vpack.c.b16 %v3317, %v3315
        %v3340 = vpack.c.b16 %v3318, %v3316
        %v3341 = vpack.c.b16 %v3321, %v3319
        %v3342 = vpack.c.b16 %v3322, %v3320
        %v3343 = vpack.c.b16 %v3325, %v3323
        %v3344 = vpack.c.b16 %v3326, %v3324
        %v3345 = vpack.c.b16 %v3329, %v3327
        %v3346 = vpack.c.b16 %v3330, %v3328
        %3363 = vmatprep.subr.bf16.mxu0 %v3332
        %3364 = vmatpush1.bf16.msra.mxu0 %v3331
        %3365 = vmatprep.subr.bf16.mxu0 %v3334
        %3366 = vmatpush1.bf16.msra.mxu0 %v3333
        %3367 = vmatprep.subr.bf16.mxu0 %v3336
        %3368 = vmatpush1.bf16.msra.mxu0 %v3335
        %3369 = vmatprep.subr.bf16.mxu0 %v3338
        %3370 = vmatpush1.bf16.msra.mxu0 %v3337
        %3371 = vmatprep.subr.bf16.mxu0 %v3340
        %3372 = vmatpush1.bf16.msra.mxu0 %v3339
        %3373 = vmatprep.subr.bf16.mxu0 %v3342
        %3374 = vmatpush1.bf16.msra.mxu0 %v3341
        %3375 = vmatprep.subr.bf16.mxu0 %v3344
        %3376 = vmatpush1.bf16.msra.mxu0 %v3343
        %3377 = vmatprep.subr.bf16.mxu0 %v3346
        %3378 = vmatpush1.bf16.msra.mxu0 %v3345
        %3379 = vmatprep.subr.bf16.mxu0 0
        %3380 = vmatpush1.bf16.msra.mxu0 0
        %3381 = vmatprep.subr.bf16.mxu0 0
        %3382 = vmatpush1.bf16.msra.mxu0 0
        %3383 = vmatprep.subr.bf16.mxu0 0
        %3384 = vmatpush1.bf16.msra.mxu0 0
        %3385 = vmatprep.subr.bf16.mxu0 0
        %3386 = vmatpush1.bf16.msra.mxu0 0
        %3387 = vmatprep.subr.bf16.mxu0 0
        %3388 = vmatpush1.bf16.msra.mxu0 0
        %3389 = vmatprep.subr.bf16.mxu0 0
        %3390 = vmatpush1.bf16.msra.mxu0 0
        %3391 = vmatprep.subr.bf16.mxu0 0
        %3392 = vmatpush1.bf16.msra.mxu0 0
        %3393 = vmatprep.subr.bf16.mxu0 0
        %3394 = vmatpush1.bf16.msra.mxu0 0
        %3395 = vmatprep.mubr.bf16.mxu0 0
        %3396 = vmatmul.mubr.bf16.gmra.mrb[0].mxu0 %v3254
        %v3397 = vpop.f32.mrb[0].mxu0
        %v3398 = vadd.f32 %v3276, %v3397
        %v3399 = vpop.f32.mrb[0].mxu0
        %v3400 = vadd.f32 %v3280, %v3399
        %v3401 = vpop.f32.mrb[0].mxu0
        %v3402 = vpop.f32.mrb[0].mxu0
        %3403 = vdwg.mxu0
        %v3404 = vmax.f32 %v3398, 0.0
        %v3405 = vmax.f32 %v3400, 0.0
        %v3406 = vpack.c.bf16 %v3404, %v3404
        %v3407 = vpack.c.bf16 %v3405, %v3405
        %v3408 = vld [vmem:[%s1036] sm:$0xf]
        %v3409 = vld [vmem:[%s1036 + $0x4] sm:$0xf]
        %v3410 = vld [vmem:[%s1036 + $0x8] sm:$0xf]
        %v3411 = vld [vmem:[%s1036 + $0xc] sm:$0xf]
        %v3412 = vld [vmem:[%s1036 + $0x10] sm:$0xf]
        %v3413 = vld [vmem:[%s1036 + $0x14] sm:$0xf]
        %v3414 = vld [vmem:[%s1036 + $0x18] sm:$0xf]
        %v3415 = vld [vmem:[%s1036 + $0x1c] sm:$0xf]
        %v3416 = vld [vmem:[%s1036 + $0x20] sm:$0xf]
        %v3417 = vld [vmem:[%s1036 + $0x24] sm:$0xf]
        %v3418 = vld [vmem:[%s1036 + $0x28] sm:$0xf]
        %v3419 = vld [vmem:[%s1036 + $0x2c] sm:$0xf]
        %v3420 = vld [vmem:[%s1036 + $0x30] sm:$0xf]
        %v3421 = vld [vmem:[%s1036 + $0x34] sm:$0xf]
        %v3422 = vld [vmem:[%s1036 + $0x38] sm:$0xf]
        %v3423 = vld [vmem:[%s1036 + $0x3c] sm:$0xf]
        %v3424 = vld [vmem:[%s1036 + $0x40] sm:$0xf]
        %v3425 = vld [vmem:[%s1036 + $0x44] sm:$0xf]
        %v3426 = vld [vmem:[%s1036 + $0x48] sm:$0xf]
        %v3427 = vld [vmem:[%s1036 + $0x4c] sm:$0xf]
        %v3428 = vld [vmem:[%s1036 + $0x50] sm:$0xf]
        %v3429 = vld [vmem:[%s1036 + $0x54] sm:$0xf]
        %v3430 = vld [vmem:[%s1036 + $0x58] sm:$0xf]
        %v3431 = vld [vmem:[%s1036 + $0x5c] sm:$0xf]
        %v3432 = vld [vmem:[%s1036 + $0x60] sm:$0xf]
        %v3433 = vld [vmem:[%s1036 + $0x64] sm:$0xf]
        %v3434 = vld [vmem:[%s1036 + $0x68] sm:$0xf]
        %v3435 = vld [vmem:[%s1036 + $0x6c] sm:$0xf]
        %v3436 = vld [vmem:[%s1036 + $0x70] sm:$0xf]
        %v3437 = vld [vmem:[%s1036 + $0x74] sm:$0xf]
        %v3438 = vld [vmem:[%s1036 + $0x78] sm:$0xf]
        %v3439 = vld [vmem:[%s1036 + $0x7c] sm:$0xf]
        %v3440 = vld [vmem:[%s1241] sm:$0x1]
        %v3442 = vlaneseq
        %v3443 = vshrl.u32 %v3442, 7
        %v3444 = vsub.s32 0, %v3443
        %v3445 = vrot.slane %v3440, %v3444
        %v3479 = vunpack.c.l.b16 %v3408
        %v3480 = vunpack.c.l.b16 %v3409
        %v3481 = vunpack.c.l.b16 %v3410
        %v3482 = vunpack.c.l.b16 %v3411
        %v3483 = vunpack.c.l.b16 %v3412
        %v3484 = vunpack.c.l.b16 %v3413
        %v3485 = vunpack.c.l.b16 %v3414
        %v3486 = vunpack.c.l.b16 %v3415
        %v3487 = vunpack.c.l.b16 %v3416
        %v3488 = vunpack.c.l.b16 %v3417
        %v3489 = vunpack.c.l.b16 %v3418
        %v3490 = vunpack.c.l.b16 %v3419
        %v3491 = vunpack.c.l.b16 %v3420
        %v3492 = vunpack.c.l.b16 %v3421
        %v3493 = vunpack.c.l.b16 %v3422
        %v3494 = vunpack.c.l.b16 %v3423
        %v3495 = vunpack.c.l.b16 %v3424
        %v3496 = vunpack.c.l.b16 %v3425
        %v3497 = vunpack.c.l.b16 %v3426
        %v3498 = vunpack.c.l.b16 %v3427
        %v3499 = vunpack.c.l.b16 %v3428
        %v3500 = vunpack.c.l.b16 %v3429
        %v3501 = vunpack.c.l.b16 %v3430
        %v3502 = vunpack.c.l.b16 %v3431
        %v3503 = vunpack.c.l.b16 %v3432
        %v3504 = vunpack.c.l.b16 %v3433
        %v3505 = vunpack.c.l.b16 %v3434
        %v3506 = vunpack.c.l.b16 %v3435
        %v3507 = vunpack.c.l.b16 %v3436
        %v3508 = vunpack.c.l.b16 %v3437
        %v3509 = vunpack.c.l.b16 %v3438
        %v3510 = vunpack.c.l.b16 %v3439
        %v3511 = vpack.c.b16 %v3480, %v3479
        %v3512 = vpack.c.b16 %v3482, %v3481
        %v3513 = vpack.c.b16 %v3484, %v3483
        %v3514 = vpack.c.b16 %v3486, %v3485
        %v3515 = vpack.c.b16 %v3488, %v3487
        %v3516 = vpack.c.b16 %v3490, %v3489
        %v3517 = vpack.c.b16 %v3492, %v3491
        %v3518 = vpack.c.b16 %v3494, %v3493
        %v3519 = vpack.c.b16 %v3496, %v3495
        %v3520 = vpack.c.b16 %v3498, %v3497
        %v3521 = vpack.c.b16 %v3500, %v3499
        %v3522 = vpack.c.b16 %v3502, %v3501
        %v3523 = vpack.c.b16 %v3504, %v3503
        %v3524 = vpack.c.b16 %v3506, %v3505
        %v3525 = vpack.c.b16 %v3508, %v3507
        %v3526 = vpack.c.b16 %v3510, %v3509
        %3543 = vmatprep.subr.bf16.mxu0 0
        %3544 = vmatpush1.bf16.msra.mxu0 %v3511
        %3545 = vmatprep.subr.bf16.mxu0 0
        %3546 = vmatpush1.bf16.msra.mxu0 %v3512
        %3547 = vmatprep.subr.bf16.mxu0 0
        %3548 = vmatpush1.bf16.msra.mxu0 %v3513
        %3549 = vmatprep.subr.bf16.mxu0 0
        %3550 = vmatpush1.bf16.msra.mxu0 %v3514
        %3551 = vmatprep.subr.bf16.mxu0 0
        %3552 = vmatpush1.bf16.msra.mxu0 %v3515
        %3553 = vmatprep.subr.bf16.mxu0 0
        %3554 = vmatpush1.bf16.msra.mxu0 %v3516
        %3555 = vmatprep.subr.bf16.mxu0 0
        %3556 = vmatpush1.bf16.msra.mxu0 %v3517
        %3557 = vmatprep.subr.bf16.mxu0 0
        %3558 = vmatpush1.bf16.msra.mxu0 %v3518
        %3559 = vmatprep.subr.bf16.mxu0 0
        %3560 = vmatpush1.bf16.msra.mxu0 %v3519
        %3561 = vmatprep.subr.bf16.mxu0 0
        %3562 = vmatpush1.bf16.msra.mxu0 %v3520
        %3563 = vmatprep.subr.bf16.mxu0 0
        %3564 = vmatpush1.bf16.msra.mxu0 %v3521
        %3565 = vmatprep.subr.bf16.mxu0 0
        %3566 = vmatpush1.bf16.msra.mxu0 %v3522
        %3567 = vmatprep.subr.bf16.mxu0 0
        %3568 = vmatpush1.bf16.msra.mxu0 %v3523
        %3569 = vmatprep.subr.bf16.mxu0 0
        %3570 = vmatpush1.bf16.msra.mxu0 %v3524
        %3571 = vmatprep.subr.bf16.mxu0 0
        %3572 = vmatpush1.bf16.msra.mxu0 %v3525
        %3573 = vmatprep.subr.bf16.mxu0 0
        %3574 = vmatpush1.bf16.msra.mxu0 %v3526
        %3575 = vmatprep.mubr.bf16.mxu0 %v3407
        %3576 = vmatmul.mubr.bf16.gmra.mrb[0].mxu0 %v3406
        %v3577 = vpop.f32.mrb[0].mxu0
        %v3578 = vadd.f32 %v3445, %v3577
        %v3579 = vpop.f32.mrb[0].mxu0
        %v3580 = vpop.f32.mrb[0].mxu0
        %v3581 = vpop.f32.mrb[0].mxu0
        %3582 = vdwg.mxu0
        %v3583 = vadd.f32 %v3252, %v3578
        %v3584 = vld [vmem:[%s1244] sm:$0x1]
        %v3585 = vld [vmem:[%s1247] sm:$0x1]
        %3586 = vadd.xlane.f32.xlu0 %v3583
        %v3587 = vpop.xlane.xlu0 %3586
        %v3588 = vmul.f32 %v3587, %v2231
        %v3589 = vmul.f32 %v3583, %v3583
        %3590 = vadd.xlane.f32.xlu0 %v3589
        %v3591 = vpop.xlane.xlu0 %3590
        %v3592 = vmul.f32 %v3591, %v2231
        %v3593 = vmul.f32 %v3588, %v3588
        %v3594 = vsub.f32 %v3592, %v3593
        %v3595 = vmax.f32 %v3594, 0.0
        %v3596 = vsub.f32 %v3583, %v3588
        %v3597 = vadd.f32 %v3595, 1e-05
        %v3598 = vrsqrt.pop %v3597
        %v3599 = vmul.f32 %v3596, %v3598
        %v3601 = vlaneseq
        %v3602 = vshrl.u32 %v3601, 7
        %v3603 = vsub.s32 0, %v3602
        %v3604 = vrot.slane %v3584, %v3603
        %v3606 = vmul.f32 %v3599, %v3604
        %v3608 = vlaneseq
        %v3609 = vshrl.u32 %v3608, 7
        %v3610 = vsub.s32 0, %v3609
        %v3611 = vrot.slane %v3585, %v3610
        %v3613 = vadd.f32 %v3606, %v3611
        %3614 = vst [vmem:[#allocation2] sm:$0xff] %v3613
        %p3615 = scmp.eq.s32.totalorder %s54, 1
        // Predicated region
        $region145: #{transformer_decoder.1} parent=115 // pred_check
          %p3616 = pneg %p3615
        $region146: #{transformer_decoder.1} parent=115 // pred_check_branch
          %3618 = sbr.rel (%p3616) target = $region148
        $region147: #{transformer_decoder.1} parent=115 // pred_region
          %v3619 = vld [vmem:[%s22] sm:$0x1]
          %v3620 = vld [vmem:[%s23] sm:$0x1]
          %3621 = vadd.xlane.f32.xlu0 %v3613
          %v3622 = vpop.xlane.xlu0 %3621
          %v3623 = vmul.f32 %v3622, %v2231
          %v3624 = vmul.f32 %v3613, %v3613
          %3625 = vadd.xlane.f32.xlu0 %v3624
          %v3626 = vpop.xlane.xlu0 %3625
          %v3627 = vmul.f32 %v3626, %v2231
          %v3628 = vmul.f32 %v3623, %v3623
          %v3629 = vsub.f32 %v3627, %v3628
          %v3630 = vmax.f32 %v3629, 0.0
          %v3631 = vsub.f32 %v3613, %v3623
          %v3632 = vadd.f32 %v3630, 1e-05
          %v3633 = vrsqrt.pop %v3632
          %v3634 = vmul.f32 %v3631, %v3633
          %v3636 = vlaneseq
          %v3637 = vshrl.u32 %v3636, 7
          %v3638 = vsub.s32 0, %v3637
          %v3639 = vrot.slane %v3619, %v3638
          %v3641 = vmul.f32 %v3634, %v3639
          %v3643 = vlaneseq
          %v3644 = vshrl.u32 %v3643, 7
          %v3645 = vsub.s32 0, %v3644
          %v3646 = vrot.slane %v3620, %v3645
          %v3648 = vadd.f32 %v3641, %v3646
          %3649 = vst [vmem:[%s1251] sm:$0xff] %v3648
        $region148: #{transformer_decoder.1} parent=115 // pred_fallthru
          _
        %p3650 = scmp.lt.s32.totalorder %s53, 1
        %s3651 = scalar_select %p3650, %s53, 1
        %s3652 = smul.addr %s3651, 8
        %s3653 = scalar_lea.vmem %s24, %s3652
        %p3654 = scmp.lt.s32.totalorder %s54, 1
        %s3655 = scalar_select %p3654, %s54, 1
        %p3656 = scmp.lt.s32.totalorder %s53, 1
        %s3657 = scalar_select %p3656, %s53, 1
        %s3658 = smul.addr %s3655, 2
        %s3659 = sadd.s32 %s3657, %s3658
        %s3660 = smul.addr %s3659, 8
        %s3661 = scalar_lea.vmem %s25, %s3660
        // Predicated region
        $region149: #{transformer_decoder.1} parent=115 // pred_check
          %p3662 = pneg %p693
        $region150: #{transformer_decoder.1} parent=115 // pred_check_branch
          %3664 = sbr.rel (%p3662) target = $region152
        $region151: #{transformer_decoder.1} parent=115 // pred_region
          _
        $region152: #{transformer_decoder.1} parent=115 // pred_fallthru
          _
        // Predicated region
        $region153: #{transformer_decoder.1} parent=115 // pred_check
          %p3665 = pneg %p721
        $region154: #{transformer_decoder.1} parent=115 // pred_check_branch
          %3667 = sbr.rel (%p3665) target = $region156
        $region155: #{transformer_decoder.1} parent=115 // pred_region
          _
        $region156: #{transformer_decoder.1} parent=115 // pred_fallthru
          _
      $region116: #{transformer_decoder.1} parent=5 // pred_fallthru
        _
      %p3668 = scmp.le.s32.totalorder 2, %s44
      // Predicated region
      $region157: #{transformer_decoder.1} parent=5 // pred_check
        %p3669 = pneg %p3668
      $region158: #{transformer_decoder.1} parent=5 // pred_check_branch
        %3671 = sbr.rel (%p3669) target = $region160
      $region159: #{transformer_decoder.1} parent=5 // pred_region
        %s3672 = ssub.s32 %s44, 2
        // Predicated region
        $region161: #{transformer_decoder.1} parent=159 // pred_check
          %p3673 = pneg %p699
        $region162: #{transformer_decoder.1} parent=159 // pred_check_branch
          %3675 = sbr.rel (%p3673) target = $region164
        $region163: #{transformer_decoder.1} parent=159 // pred_region
          %p3676 = scmp.lt.s32.totalorder %s55, 1
          %s3677 = scalar_select %p3676, %s55, 1
          %s3678 = smul.addr %s3677, 8
          %s3679 = scalar_lea.vmem %s24, %s3678
        $region164: #{transformer_decoder.1} parent=159 // pred_fallthru
          _
        // Predicated region
        $region165: #{transformer_decoder.1} parent=159 // pred_check
          %p3680 = pneg %p727
        $region166: #{transformer_decoder.1} parent=159 // pred_check_branch
          %3682 = sbr.rel (%p3680) target = $region168
        $region167: #{transformer_decoder.1} parent=159 // pred_region
          %p3683 = scmp.lt.s32.totalorder %s56, 1
          %s3684 = scalar_select %p3683, %s56, 1
          %p3685 = scmp.lt.s32.totalorder %s55, 1
          %s3686 = scalar_select %p3685, %s55, 1
          %s3687 = smul.addr %s3684, 2
          %s3688 = sadd.s32 %s3686, %s3687
          %s3689 = smul.addr %s3688, 8
          %s3690 = scalar_lea.vmem %s25, %s3689
        $region168: #{transformer_decoder.1} parent=159 // pred_fallthru
          _
      $region160: #{transformer_decoder.1} parent=5 // pred_fallthru
        _
    $region6: #{transformer_decoder.1} parent=1 // loop_footer
      %s48 = sadd.s32 1, %s44
    $region7: #{transformer_decoder.1} parent=1 // loop_footer_branch
      %43 = sbr.rel target = $region3
    $region8: #{transformer_decoder.1} parent=1 // loop_exit
      _
    %3691 = vsyncpa [#allocation4], 1
    %s3692 = scalar_lea.sflag [#allocation4], 1
    %3693 = vsyncpa %s3692, 1
    %3694 = vsyncpa [#allocation6], 1
    %s3695 = scalar_lea.sflag [#allocation6], 1
    %3696 = vsyncpa %s3695, 1
    %3697 = vsyncpa [#allocation9], 1
    %s3698 = scalar_lea.sflag [#allocation9], 1
    %3699 = vsyncpa %s3698, 1
    %3700 = vsyncpa [#allocation12], 1
    %s3701 = scalar_lea.sflag [#allocation12], 1
    %3702 = vsyncpa %s3701, 1

</llo_original>
